<compile_context>
chip_gen: v6e
topology: v6e:2x2x1
jax: 0.10.0
libtpu: 0.0.40
codegen_flags: <defaults>
</compile_context>

<pallas_src>
import jax
import jax.numpy as jnp
import numpy as np
from jax.experimental import pallas as pl
from jax.experimental.pallas import tpu as pltpu

C_CH = 3          # colour channels (hard-coded in the module)
HW   = 96 * 128   # 12288, hard-coded in the module (view(3, 96*128, s_t))
M    = 16 * 16    # 256, implied by v.view(1, 3, 16, 16, s_t)


def fullcnn_kernel(z_ref, tT_ref, t1_ref, v_ref, acc_vm, zabs_acc):
    """Grid axis 0 tiles the K = 96*128 contraction dimension."""
    k = pl.program_id(0)

    @pl.when(k == 0)
    def _init():
        acc_vm[...] = jnp.zeros_like(acc_vm)
        zabs_acc[...] = jnp.zeros_like(zabs_acc)

    z_blk = z_ref[...]      # (C*S, tk)  bf16, lane-dense
    t_blk = tT_ref[...]     # (M,   tk)  bf16, lane-dense

    # vm_T[cs, m] += sum_k z[cs, k] * tT[m, k]  -- single MXU matmul per grid step,
    # contracting the last dim of both operands (no per-channel Python loop).
    acc_vm[...] += jax.lax.dot_general(
        z_blk, t_blk,
        dimension_numbers=(((1,), (1,)), ((), ())),
        preferred_element_type=jnp.float32,
    )
    # running sum(|z|), accumulated in f32
    zabs_acc[...] += jnp.sum(jnp.abs(z_blk.astype(jnp.float32)))

    @pl.when(k == pl.num_programs(0) - 1)
    def _finalize():
        vm = acc_vm[...]                                    # (C*S, M) f32
        # tv_T[cs, n] = sum_m vm_T[cs, m] * t1[n, m]  (single small matmul)
        tv = jax.lax.dot_general(
            vm.astype(jnp.bfloat16), t1_ref[...],
            dimension_numbers=(((1,), (1,)), ((), ())),
            preferred_element_type=jnp.float32,
        )
        r = jnp.sum(jnp.abs(tv)) / zabs_acc[...]            # (1,1) scalar
        v_ref[...] = vm * jax.lax.rsqrt(r)                  # v = vm / sqrt(r), lane-dense store


def fullcnn_forward(tT, z, t1, *, tk=3072):
    """tT: (M, K) f32, z: (C, K, s_t) f32 (the module's self.z layout), t1: (N, M) f32.

    Returns v of shape (1, 3, 16, 16, s_t)."""
    C, K, S = z.shape
    Mm, K2 = tT.shape
    N, M2 = t1.shape
    assert K == K2 == HW and Mm == M2 == M and C == C_CH and K % tk == 0
    CS = C * S

    # __init__-style layout prep: (C, K, S) -> (C*S, K) so every kernel tile is lane-dense.
    z_r = jnp.transpose(z, (0, 2, 1)).reshape(CS, K)

    # Stream operands as bf16 (halves the dominant 12.6 MB tT read); f32 accumulation
    # happens inside the kernel.  The reference below applies the identical casts.
    z_b  = z_r.astype(jnp.bfloat16)
    tT_b = tT.astype(jnp.bfloat16)
    t1_b = t1.astype(jnp.bfloat16)

    cost = pl.CostEstimate(
        flops=2 * CS * K * Mm + 2 * CS * Mm * N,
        transcendentals=1,
        bytes_accessed=z_b.size * 2 + tT_b.size * 2 + t1_b.size * 2 + CS * Mm * 4,
    )

    v_t = pl.pallas_call(
        fullcnn_kernel,
        out_shape=jax.ShapeDtypeStruct((CS, Mm), jnp.float32),
        grid_spec=pltpu.PrefetchScalarGridSpec(
            num_scalar_prefetch=0,
            grid=(K // tk,),
            in_specs=[
                pl.BlockSpec((CS, tk), lambda k: (0, k)),    # z_r tile (lane = tk)
                pl.BlockSpec((Mm, tk), lambda k: (0, k)),    # tT tile (dominant stream, lane = tk)
                pl.BlockSpec((N, M2), lambda k: (0, 0)),     # t1 (resident, used in finalize)
            ],
            out_specs=pl.BlockSpec((CS, Mm), lambda k: (0, 0)),  # lane-dense (last dim = 256)
            scratch_shapes=[
                pltpu.VMEM((CS, Mm), jnp.float32),   # vm_T accumulator (~24 KB)
                pltpu.VMEM((1, 1), jnp.float32),     # sum(|z|) accumulator
            ],
        ),
        compiler_params=pltpu.CompilerParams(
            dimension_semantics=("arbitrary",),   # K is a reduction axis
        ),
        cost_estimate=cost,
    )(z_b, tT_b, t1_b)

    # (C*S, 256) -> (1, C, 16, 16, S): free layout plumbing outside the kernel.
    return v_t.reshape(C, S, 16, 16).transpose(0, 2, 3, 1)[None]


def fullcnn_reference(tT, z, t1):
    """Pure-JAX reference with the same bf16-operand / f32-accumulate precision choice."""
    z_b  = z.astype(jnp.bfloat16)
    tT_b = tT.astype(jnp.bfloat16)
    t1_b = t1.astype(jnp.bfloat16)
    vm = jnp.einsum("mk,cks->cms", tT_b, z_b, preferred_element_type=jnp.float32)
    tv = jnp.einsum("nm,cms->cns", t1_b, vm.astype(jnp.bfloat16),
                    preferred_element_type=jnp.float32)
    r = jnp.sum(jnp.abs(tv)) / jnp.sum(jnp.abs(z_b.astype(jnp.float32)))
    return (vm / jnp.sqrt(r)).reshape(1, C_CH, 16, 16, z.shape[-1])


if __name__ == "__main__":
    s_t = 8   # small rolling/temporal depth

    key = jax.random.PRNGKey(0)
    kz, kt1, ktT, kpos = jax.random.split(key, 4)

    # z is built here already in its __init__ layout (3, 96*128, s_t).
    z = jax.random.normal(kz, (C_CH, HW, s_t), dtype=jnp.float32)
    tT = jax.random.normal(ktT, (M, HW), dtype=jnp.float32) / np.sqrt(HW)
    t1 = jax.random.normal(kt1, (M, M), dtype=jnp.float32) / np.sqrt(M)

    # nn.Parameter pos — deterministic synthetic init; only consumed by VRcnn.
    pos = jax.random.normal(kpos, (C_CH, 16, 16), dtype=jnp.float32)
    # TODO(synk): VRcnn (self.specsrcnn) is not defined in the provided source;
    # the kernel returns the normalised v = (tT @ z) / sqrt(r) that feeds it.

    v = fullcnn_forward(tT, z, t1)
    jax.block_until_ready(v)

    v_ref = fullcnn_reference(tT, z, t1)
    np.testing.assert_allclose(np.asarray(v), np.asarray(v_ref), rtol=2e-3, atol=2e-3)

    print("KERNEL_OK")
</pallas_src>

<mosaic_0001>
module attributes {stable_mosaic.version = 11 : i64} {
  func.func @fullcnn_kernel(%arg0: i32, %arg1: memref<24x3072xbf16, #tpu.memory_space<vmem>>, %arg2: memref<256x3072xbf16, #tpu.memory_space<vmem>>, %arg3: memref<256x256xbf16, #tpu.memory_space<vmem>>, %arg4: memref<24x256xf32, #tpu.memory_space<vmem>>, %arg5: memref<24x256xf32, #tpu.memory_space<vmem>>, %arg6: memref<1x1xf32, #tpu.memory_space<vmem>>) attributes {dimension_semantics = [#tpu.dimension_semantics<arbitrary>], iteration_bounds = array<i64: 4>, scalar_prefetch = 0 : i64, scratch_operands = 2 : i64, tpu.core_type = #tpu.core_type<tc>, window_params = [{transform_indices = @transform_0, window_bounds = array<i64: 24, 3072>}, {transform_indices = @transform_1, window_bounds = array<i64: 256, 3072>}, {pipeline_mode = #tpu.pipeline_mode<synchronous>, transform_indices = @transform_2, window_bounds = array<i64: 256, 256>}, {pipeline_mode = #tpu.pipeline_mode<synchronous>, transform_indices = @transform_3, window_bounds = array<i64: 24, 256>}]} {
    %c0_i32 = arith.constant 0 : i32
    %0 = arith.cmpi eq, %arg0, %c0_i32 : i32
    %1 = arith.extui %0 : i1 to i32
    %c0_i32_0 = arith.constant 0 : i32
    %2 = arith.cmpi ne, %1, %c0_i32_0 : i32
    scf.if %2 {
      %cst_14 = arith.constant 0.000000e+00 : f32
      %22 = vector.broadcast %cst_14 : f32 to vector<24x256xf32>
      %c0_15 = arith.constant 0 : index
      %c0_16 = arith.constant 0 : index
      %23 = vector.load %arg5[%c0_15, %c0_16] : memref<24x256xf32, #tpu.memory_space<vmem>>, vector<24x256xf32>
      tpu.vector_store %arg5[%c0_15, %c0_16], %22 {strides = array<i32>} : memref<24x256xf32, #tpu.memory_space<vmem>>, vector<24x256xf32>,
      %cst_17 = arith.constant 0.000000e+00 : f32
      %24 = vector.broadcast %cst_17 : f32 to vector<1x1xf32>
      %c0_18 = arith.constant 0 : index
      %c0_19 = arith.constant 0 : index
      %25 = vector.load %arg6[%c0_18, %c0_19] : memref<1x1xf32, #tpu.memory_space<vmem>>, vector<1x1xf32>
      tpu.vector_store %arg6[%c0_18, %c0_19], %24 {strides = array<i32>} : memref<1x1xf32, #tpu.memory_space<vmem>>, vector<1x1xf32>,
    } else {
    }
    %c0 = arith.constant 0 : index
    %c0_1 = arith.constant 0 : index
    %3 = vector.load %arg1[%c0, %c0_1] : memref<24x3072xbf16, #tpu.memory_space<vmem>>, vector<24x3072xbf16>
    %c0_2 = arith.constant 0 : index
    %c0_3 = arith.constant 0 : index
    %4 = vector.load %arg2[%c0_2, %c0_3] : memref<256x3072xbf16, #tpu.memory_space<vmem>>, vector<256x3072xbf16>
    %c0_4 = arith.constant 0 : index
    %c0_5 = arith.constant 0 : index
    %5 = vector.load %arg5[%c0_4, %c0_5] : memref<24x256xf32, #tpu.memory_space<vmem>>, vector<24x256xf32>
    %cst = arith.constant dense<0.000000e+00> : vector<24x256xf32>
    %6 = tpu.matmul %3, %4, %cst {dimension_numbers = #tpu.dot_dimension_numbers<[1], [1], [0], [0], [0, 0, 1, 0], [], []>} : vector<24x3072xbf16>, vector<256x3072xbf16>, vector<24x256xf32> -> vector<24x256xf32>
    %7 = arith.addf %5, %6 : vector<24x256xf32>
    %c0_6 = arith.constant 0 : index
    %c0_7 = arith.constant 0 : index
    %8 = vector.load %arg5[%c0_6, %c0_7] : memref<24x256xf32, #tpu.memory_space<vmem>>, vector<24x256xf32>
    tpu.vector_store %arg5[%c0_6, %c0_7], %7 {strides = array<i32>} : memref<24x256xf32, #tpu.memory_space<vmem>>, vector<24x256xf32>,
    %c0_8 = arith.constant 0 : index
    %c0_9 = arith.constant 0 : index
    %9 = vector.load %arg6[%c0_8, %c0_9] : memref<1x1xf32, #tpu.memory_space<vmem>>, vector<1x1xf32>
    %10 = arith.extf %3 : vector<24x3072xbf16> to vector<24x3072xf32>
    %11 = math.absf %10 : vector<24x3072xf32>
    %12 = vector.shape_cast %11 : vector<24x3072xf32> to vector<1x24x3072xf32>
    %cst_10 = arith.constant dense<0.000000e+00> : vector<1xf32>
    %13 = vector.multi_reduction <add>, %12, %cst_10 [1, 2] : vector<1x24x3072xf32> to vector<1xf32>
    %14 = vector.shape_cast %13 : vector<1xf32> to vector<1x1x1xf32>
    %15 = vector.extract %14[0, 0, 0] : f32 from vector<1x1x1xf32>
    %16 = vector.broadcast %15 : f32 to vector<1x1xf32>
    %17 = arith.addf %9, %16 : vector<1x1xf32>
    %c0_11 = arith.constant 0 : index
    %c0_12 = arith.constant 0 : index
    %18 = vector.load %arg6[%c0_11, %c0_12] : memref<1x1xf32, #tpu.memory_space<vmem>>, vector<1x1xf32>
    tpu.vector_store %arg6[%c0_11, %c0_12], %17 {strides = array<i32>} : memref<1x1xf32, #tpu.memory_space<vmem>>, vector<1x1xf32>,
    %c3_i32 = arith.constant 3 : i32
    %19 = arith.cmpi eq, %arg0, %c3_i32 : i32
    %20 = arith.extui %19 : i1 to i32
    %c0_i32_13 = arith.constant 0 : i32
    %21 = arith.cmpi ne, %20, %c0_i32_13 : i32
    scf.if %21 {
      %c0_14 = arith.constant 0 : index
      %c0_15 = arith.constant 0 : index
      %22 = vector.load %arg5[%c0_14, %c0_15] : memref<24x256xf32, #tpu.memory_space<vmem>>, vector<24x256xf32>
      %23 = arith.truncf %22 : vector<24x256xf32> to vector<24x256xbf16>
      %c0_16 = arith.constant 0 : index
      %c0_17 = arith.constant 0 : index
      %24 = vector.load %arg3[%c0_16, %c0_17] : memref<256x256xbf16, #tpu.memory_space<vmem>>, vector<256x256xbf16>
      %cst_18 = arith.constant dense<0.000000e+00> : vector<24x256xf32>
      %25 = tpu.matmul %23, %24, %cst_18 {dimension_numbers = #tpu.dot_dimension_numbers<[1], [1], [0], [0], [0, 0, 1, 0], [], []>} : vector<24x256xbf16>, vector<256x256xbf16>, vector<24x256xf32> -> vector<24x256xf32>
      %26 = math.absf %25 : vector<24x256xf32>
      %27 = vector.shape_cast %26 : vector<24x256xf32> to vector<1x24x256xf32>
      %cst_19 = arith.constant dense<0.000000e+00> : vector<1xf32>
      %28 = vector.multi_reduction <add>, %27, %cst_19 [1, 2] : vector<1x24x256xf32> to vector<1xf32>
      %29 = vector.shape_cast %28 : vector<1xf32> to vector<1x1x1xf32>
      %30 = vector.extract %29[0, 0, 0] : f32 from vector<1x1x1xf32>
      %c0_20 = arith.constant 0 : index
      %c0_21 = arith.constant 0 : index
      %31 = vector.load %arg6[%c0_20, %c0_21] : memref<1x1xf32, #tpu.memory_space<vmem>>, vector<1x1xf32>
      %32 = vector.broadcast %30 : f32 to vector<1x1xf32>
      %33 = arith.divf %32, %31 : vector<1x1xf32>
      %34 = math.rsqrt %33 : vector<1x1xf32>
      %35 = vector.broadcast %34 : vector<1x1xf32> to vector<24x256xf32>
      %36 = arith.mulf %22, %35 : vector<24x256xf32>
      %c0_22 = arith.constant 0 : index
      %c0_23 = arith.constant 0 : index
      %37 = vector.load %arg4[%c0_22, %c0_23] : memref<24x256xf32, #tpu.memory_space<vmem>>, vector<24x256xf32>
      tpu.vector_store %arg4[%c0_22, %c0_23], %36 {strides = array<i32>} : memref<24x256xf32, #tpu.memory_space<vmem>>, vector<24x256xf32>,
    } else {
    }
    return
  }
  func.func @transform_0(%arg0: i32) -> (i32, i32) {
    %c0_i32 = arith.constant 0 : i32
    %c0_i32_0 = arith.constant 0 : i32
    return %c0_i32, %arg0 : i32, i32
  }
  func.func @transform_1(%arg0: i32) -> (i32, i32) {
    %c0_i32 = arith.constant 0 : i32
    %c0_i32_0 = arith.constant 0 : i32
    return %c0_i32, %arg0 : i32, i32
  }
  func.func @transform_2(%arg0: i32) -> (i32, i32) {
    %c0_i32 = arith.constant 0 : i32
    %c0_i32_0 = arith.constant 0 : i32
    %c0_i32_1 = arith.constant 0 : i32
    return %c0_i32, %c0_i32_0 : i32, i32
  }
  func.func @transform_3(%arg0: i32) -> (i32, i32) {
    %c0_i32 = arith.constant 0 : i32
    %c0_i32_0 = arith.constant 0 : i32
    %c0_i32_1 = arith.constant 0 : i32
    return %c0_i32, %c0_i32_0 : i32, i32
  }
}

</mosaic_0001>

<llo_original>
// kernel: tpu_custom_call.1
$region0: #{tpu_custom_call.1}
  #allocation0 [shape = 'u32[]', space=smem, size = 0x4, offset = 0x4, fixed_abs, tag = 'smem constant byte address 0x4 - core index']
  #allocation1 [shape = 'u32[144,128]{1,0:T(1,128)}', space=vmem, size = 0x12000, scoped, tag = 'internal scratch']
  #allocation2 [shape = 'f32[24,256]{1,0:T(8,128)}', space=vmem, size = 0x6000, scoped, tag = 'scratch operand']
  #allocation3 [shape = 'f32[1,1]{1,0:T(1,128)}', space=vmem, size = 0x200, scoped, tag = 'scratch operand']
  %s0 = inlined_call_operand.hbm [shape: bf16[24,12288], index: 0, kind: input, shape index: {}]
  %s1 = inlined_call_operand.hbm [shape: bf16[256,12288], index: 1, kind: input, shape index: {}]
  %s2 = inlined_call_operand.hbm [shape: bf16[256,256], index: 2, kind: input, shape index: {}]
  %s3 = inlined_call_operand.hbm [shape: f32[24,256], index: 3, kind: output, shape index: {}]
  %s4 = sld [smem:[#allocation0]]
  $region65: #{tpu_custom_call.1} parent=0
    _
  %s6 = ssub.s32 1, %s4
  %s7 = scalar_select 0, %s6, %s4
  $region1: #{tpu_custom_call.1} parent=0
    #allocation4 [shape = 'u8[294912]{0}', space=vmem, size = 0x48000, scoped, tag = 'input window, operand 0']
    #allocation5 [shape = 's32[2]{0}', space=sflag, size = 0x8, scoped, tag = 'scoped memory for tpu_custom_call.1']
    #allocation6 [shape = 's32[2]{0}', space=sflag, size = 0x8, scoped, tag = 'scoped memory for tpu_custom_call.1']
    #allocation7 [shape = 'u8[3145728]{0}', space=vmem, size = 0x300000, scoped, tag = 'input window, operand 1']
    #allocation8 [shape = 's32[2]{0}', space=sflag, size = 0x8, scoped, tag = 'scoped memory for tpu_custom_call.1']
    #allocation9 [shape = 'u8[131072]{0}', space=vmem, size = 0x20000, scoped, tag = 'input window, operand 2, single buffered']
    #allocation10 [shape = 'u8[24576]{0}', space=vmem, size = 0x6000, scoped, tag = 'output window, operand 0, single buffered']
    %8 = vsyncpa [#allocation5], 0
    %s9 = scalar_lea.sflag [#allocation5], 1
    %10 = vsyncpa %s9, 0
    %11 = vsyncpa [#allocation8], 0
    %s12 = scalar_lea.sflag [#allocation8], 1
    %13 = vsyncpa %s12, 0
    %14 = vsyncpa [#allocation6], 0
    loop: start=0, step=1, limit=6
    $region2: #{tpu_custom_call.1} parent=1 // loop_pre_header
      _
    $region3: #{tpu_custom_call.1} parent=1 // loop_header
      %s16 = sphi 0, %s20
      %p17 = scmp.ge.s32.totalorder %s16, 6
      %s26 = sphi 0, %s28
      %s29 = sphi 0, %s26
      %s30 = sphi 0, %s29
      %s46 = sphi 0, %s30
      %s52 = sphi 0, %s54
      %s55 = sphi 0, %s52
      %s56 = sphi 0, %s55
      %s72 = sphi 0, %s56
      %s76 = sphi 0, %s76
      %s78 = sphi 0, %s76
      %s79 = sphi 0, %s78
      %s93 = sphi 0, %s79
      %s97 = sphi 0, %s97
      %s99 = sphi 0, %s97
      %s100 = sphi 0, %s99
      %s114 = sphi 0, %s100
    $region4: #{tpu_custom_call.1} parent=1 // loop_header_branch
      %19 = sbr.rel (%p17) target = $region8
    $region5: #{tpu_custom_call.1} parent=1 // loop_body
      %s21 = ssub.s32 %s16, 1
      %s22 = ssub.s32 %s16, 2
      %s23 = sadd.s32 %s16, 1
      %s24 = ssub.s32 %s16, %s23
      %p25 = scmp.eq.s32.totalorder %s24, 0
      %s27 = sadd.s32 %s26, 1
      %s28 = scalar_select %p25, %s26, %s27
      %p31 = pneg %p25
      %p32 = scmp.eq.s32.totalorder %s16, 3
      %p33 = por %p31, %p32
      %p34 = scmp.ne.s32.totalorder %s26, %s29
      %p35 = scmp.eq.s32.totalorder %s16, 0
      %p36 = por %p34, %p35
      %p37 = scmp.ne.s32.totalorder %s26, %s29
      %p38 = scmp.eq.s32.totalorder %s21, 3
      %p39 = por %p37, %p38
      %p40 = scmp.ne.s32.totalorder %s29, %s30
      %p41 = scmp.eq.s32.totalorder %s21, 0
      %p42 = por %p40, %p41
      %p43 = scmp.ne.s32.totalorder %s29, %s30
      %p44 = scmp.eq.s32.totalorder %s22, 3
      %p45 = por %p43, %p44
      %p47 = scmp.ne.s32.totalorder %s30, %s46
      %p48 = scmp.eq.s32.totalorder %s22, 0
      %p49 = por %p47, %p48
      %s50 = ssub.s32 %s16, %s23
      %p51 = scmp.eq.s32.totalorder %s50, 0
      %s53 = sadd.s32 %s52, 1
      %s54 = scalar_select %p51, %s52, %s53
      %p57 = pneg %p51
      %p58 = scmp.eq.s32.totalorder %s16, 3
      %p59 = por %p57, %p58
      %p60 = scmp.ne.s32.totalorder %s52, %s55
      %p61 = scmp.eq.s32.totalorder %s16, 0
      %p62 = por %p60, %p61
      %p63 = scmp.ne.s32.totalorder %s52, %s55
      %p64 = scmp.eq.s32.totalorder %s21, 3
      %p65 = por %p63, %p64
      %p66 = scmp.ne.s32.totalorder %s55, %s56
      %p67 = scmp.eq.s32.totalorder %s21, 0
      %p68 = por %p66, %p67
      %p69 = scmp.ne.s32.totalorder %s55, %s56
      %p70 = scmp.eq.s32.totalorder %s22, 3
      %p71 = por %p69, %p70
      %p73 = scmp.ne.s32.totalorder %s56, %s72
      %p74 = scmp.eq.s32.totalorder %s22, 0
      %p75 = por %p73, %p74
      %s77 = sadd.s32 %s76, 1
      %p80 = scmp.eq.s32.totalorder %s16, 3
      %p81 = scmp.ne.s32.totalorder %s76, %s78
      %p82 = scmp.eq.s32.totalorder %s16, 0
      %p83 = por %p81, %p82
      %p84 = scmp.ne.s32.totalorder %s76, %s78
      %p85 = scmp.eq.s32.totalorder %s21, 3
      %p86 = por %p84, %p85
      %p87 = scmp.ne.s32.totalorder %s78, %s79
      %p88 = scmp.eq.s32.totalorder %s21, 0
      %p89 = por %p87, %p88
      %p90 = scmp.ne.s32.totalorder %s78, %s79
      %p91 = scmp.eq.s32.totalorder %s22, 3
      %p92 = por %p90, %p91
      %p94 = scmp.ne.s32.totalorder %s79, %s93
      %p95 = scmp.eq.s32.totalorder %s22, 0
      %p96 = por %p94, %p95
      %s98 = sadd.s32 %s97, 1
      %p101 = scmp.eq.s32.totalorder %s16, 3
      %p102 = scmp.ne.s32.totalorder %s97, %s99
      %p103 = scmp.eq.s32.totalorder %s16, 0
      %p104 = por %p102, %p103
      %p105 = scmp.ne.s32.totalorder %s97, %s99
      %p106 = scmp.eq.s32.totalorder %s21, 3
      %p107 = por %p105, %p106
      %p108 = scmp.ne.s32.totalorder %s99, %s100
      %p109 = scmp.eq.s32.totalorder %s21, 0
      %p110 = por %p108, %p109
      %p111 = scmp.ne.s32.totalorder %s99, %s100
      %p112 = scmp.eq.s32.totalorder %s22, 3
      %p113 = por %p111, %p112
      %p115 = scmp.ne.s32.totalorder %s100, %s114
      %p116 = scmp.eq.s32.totalorder %s22, 0
      %p117 = por %p115, %p116
      %p118 = scmp.le.s32.totalorder 1, %s16
      %p119 = scmp.lt.s32.totalorder %s16, 5
      %p120 = pnand %p118, %p119
      %p121 = pneg %p120
      // Predicated region
      $region9: #{tpu_custom_call.1} parent=5 // pred_check
        _
      $region10: #{tpu_custom_call.1} parent=5 // pred_check_branch
        %123 = sbr.rel (%p120) target = $region12
      $region11: #{tpu_custom_call.1} parent=5 // pred_region
        %s124 = ssub.s32 %s16, 1
        // Predicated region
        $region13: #{tpu_custom_call.1} parent=11 // pred_check
          %p125 = pneg %p89
        $region14: #{tpu_custom_call.1} parent=11 // pred_check_branch
          %127 = sbr.rel (%p125) target = $region16
        $region15: #{tpu_custom_call.1} parent=11 // pred_region
          %s129 = ssub.s32 4096, 4096
          %130 = vsyncadd [#allocation8], %s129
          %s131 = sshll.u32 [#allocation9], 4
          %s132 = int_to_ptr.vmem [resolvable:$true] %s131
          %137 = dma.hbm_to_vmem [thread:$0]  %s2, 4096, %s132, [#allocation8], 128, 128, 8
        $region16: #{tpu_custom_call.1} parent=11 // pred_fallthru
          _
      $region12: #{tpu_custom_call.1} parent=5 // pred_fallthru
        _
      %p138 = scmp.lt.s32.totalorder %s16, 4
      // Predicated region
      $region17: #{tpu_custom_call.1} parent=5 // pred_check
        %p139 = pneg %p138
      $region18: #{tpu_custom_call.1} parent=5 // pred_check_branch
        %141 = sbr.rel (%p139) target = $region20
      $region19: #{tpu_custom_call.1} parent=5 // pred_region
        // Predicated region
        $region21: #{tpu_custom_call.1} parent=19 // pred_check
          %p142 = pneg %p36
        $region22: #{tpu_custom_call.1} parent=19 // pred_check_branch
          %144 = sbr.rel (%p142) target = $region24
        $region23: #{tpu_custom_call.1} parent=19 // pred_region
          %s145 = sand.u32 %s26, 1
          %s146 = scalar_lea.sflag [#allocation5], %s145
          %s147 = sand.u32 %s26, 1
          %s148 = smul.addr %s147, 288
          %s149 = scalar_lea.vmem [#allocation4], %s148
          %s150 = smul.u32 24, %s16
          %s152 = ssub.s32 4608, 4608
          %153 = vsyncadd %s146, %s152
          %s154 = smul.addr %s150, 64
          %s155 = scalar_lea.hbm %s0, %s154
          %s156 = sshll.u32 %s149, 4
          %s157 = int_to_ptr.vmem [resolvable:$true] %s156
          %162 = dma.hbm_to_vmem [thread:$0]  %s155, 4608, %s157, %s146, 6144, 1536, 96
        $region24: #{tpu_custom_call.1} parent=19 // pred_fallthru
          _
        // Predicated region
        $region25: #{tpu_custom_call.1} parent=19 // pred_check
          %p163 = pneg %p62
        $region26: #{tpu_custom_call.1} parent=19 // pred_check_branch
          %165 = sbr.rel (%p163) target = $region28
        $region27: #{tpu_custom_call.1} parent=19 // pred_region
          %s166 = sand.u32 %s16, 1
          %s167 = scalar_lea.sflag [#allocation8], %s166
          %s168 = sand.u32 %s52, 1
          %s169 = smul.addr %s168, 3072
          %s170 = scalar_lea.vmem [#allocation7], %s169
          %s171 = smul.u32 24, %s16
          %s173 = ssub.s32 49152, 49152
          %174 = vsyncadd %s167, %s173
          %s175 = smul.addr %s171, 64
          %s176 = scalar_lea.hbm %s1, %s175
          %s177 = sshll.u32 %s170, 4
          %s178 = int_to_ptr.vmem [resolvable:$true] %s177
          %183 = dma.hbm_to_vmem [thread:$0]  %s176, 49152, %s178, %s167, 6144, 1536, 96
        $region28: #{tpu_custom_call.1} parent=19 // pred_fallthru
          _
      $region20: #{tpu_custom_call.1} parent=5 // pred_fallthru
        _
      %p184 = scmp.le.s32.totalorder 1, %s16
      %p185 = scmp.lt.s32.totalorder %s16, 5
      %p186 = pnand %p184, %p185
      %p187 = pneg %p186
      // Predicated region
      $region29: #{tpu_custom_call.1} parent=5 // pred_check
        _
      $region30: #{tpu_custom_call.1} parent=5 // pred_check_branch
        %189 = sbr.rel (%p186) target = $region32
      $region31: #{tpu_custom_call.1} parent=5 // pred_region
        %s190 = ssub.s32 %s16, 1
        %s191 = sand.u32 %s29, 1
        %s192 = scalar_lea.sflag [#allocation5], %s191
        %s193 = sand.u32 %s29, 1
        %s194 = smul.addr %s193, 288
        %s195 = scalar_lea.vmem [#allocation4], %s194
        // Predicated region
        $region33: #{tpu_custom_call.1} parent=31 // pred_check
          %p196 = pneg %p42
        $region34: #{tpu_custom_call.1} parent=31 // pred_check_branch
          %198 = sbr.rel (%p196) target = $region36
        $region35: #{tpu_custom_call.1} parent=31 // pred_region
          %199 = dma.done %s192, 4608
        $region36: #{tpu_custom_call.1} parent=31 // pred_fallthru
          _
        %s200 = sand.u32 %s21, 1
        %s201 = scalar_lea.sflag [#allocation8], %s200
        %s202 = sand.u32 %s55, 1
        %s203 = smul.addr %s202, 3072
        %s204 = scalar_lea.vmem [#allocation7], %s203
        // Predicated region
        $region37: #{tpu_custom_call.1} parent=31 // pred_check
          %p205 = pneg %p68
        $region38: #{tpu_custom_call.1} parent=31 // pred_check_branch
          %207 = sbr.rel (%p205) target = $region40
        $region39: #{tpu_custom_call.1} parent=31 // pred_region
          %208 = dma.done %s201, 49152
        $region40: #{tpu_custom_call.1} parent=31 // pred_fallthru
          _
        // Predicated region
        $region41: #{tpu_custom_call.1} parent=31 // pred_check
          %p209 = pneg %p89
        $region42: #{tpu_custom_call.1} parent=31 // pred_check_branch
          %211 = sbr.rel (%p209) target = $region44
        $region43: #{tpu_custom_call.1} parent=31 // pred_region
          %212 = dma.done [#allocation8], 4096
        $region44: #{tpu_custom_call.1} parent=31 // pred_fallthru
          _
        %s213 = sand.u32 %s29, 1
        %s214 = scalar_lea.sflag [#allocation5], %s213
        %s215 = sand.u32 %s29, 1
        %s216 = smul.addr %s215, 288
        %s217 = scalar_lea.vmem [#allocation4], %s216
        %p218 = pneg %p42
        %p219 = pneg %p39
        %s220 = sand.u32 %s21, 1
        %s221 = scalar_lea.sflag [#allocation8], %s220
        %s222 = sand.u32 %s55, 1
        %s223 = smul.addr %s222, 3072
        %s224 = scalar_lea.vmem [#allocation7], %s223
        %p225 = pneg %p68
        %p226 = pneg %p65
        %p227 = pneg %p89
        %p228 = pneg %p86
        %p229 = pneg %p110
        %p230 = pneg %p107
        %s231 = smul.u32 24, %s21
        %s232 = smul.u32 24, %s21
        %p233 = scmp.eq.s32.totalorder %s21, 0
        // Predicated region
        $region45: #{tpu_custom_call.1} parent=31 // pred_check
          %p234 = pneg %p233
        $region46: #{tpu_custom_call.1} parent=31 // pred_check_branch
          %236 = sbr.rel (%p234) target = $region48
        $region47: #{tpu_custom_call.1} parent=31 // pred_region
          %237 = vst [vmem:[#allocation2] sm:$0xff] 0.0
          %238 = vst [vmem:[#allocation2 + $0x8] sm:$0xff] 0.0
          %239 = vst [vmem:[#allocation2 + $0x10] sm:$0xff] 0.0
          %240 = vst [vmem:[#allocation2 + $0x18] sm:$0xff] 0.0
          %241 = vst [vmem:[#allocation2 + $0x20] sm:$0xff] 0.0
          %242 = vst [vmem:[#allocation2 + $0x28] sm:$0xff] 0.0
          %vm243 = vcmask 0
          %244 = vst.msk [vmem:[#allocation3] sm:$0x1] %vm243, 0.0
        $region48: #{tpu_custom_call.1} parent=31 // pred_fallthru
          _
        %v245 = vld [vmem:[%s195] sm:$0xff]
        %v246 = vld [vmem:[%s195 + $0x8] sm:$0xff]
        %v247 = vld [vmem:[%s195 + $0x10] sm:$0xff]
        %v248 = vld [vmem:[%s195 + $0x18] sm:$0xff]
        %v249 = vld [vmem:[%s195 + $0x20] sm:$0xff]
        %v250 = vld [vmem:[%s195 + $0x28] sm:$0xff]
        %v251 = vld [vmem:[%s195 + $0x30] sm:$0xff]
        %v252 = vld [vmem:[%s195 + $0x38] sm:$0xff]
        %v253 = vld [vmem:[%s195 + $0x40] sm:$0xff]
        %v254 = vld [vmem:[%s195 + $0x48] sm:$0xff]
        %v255 = vld [vmem:[%s195 + $0x50] sm:$0xff]
        %v256 = vld [vmem:[%s195 + $0x58] sm:$0xff]
        %v257 = vld [vmem:[%s195 + $0x60] sm:$0xff]
        %v258 = vld [vmem:[%s195 + $0x68] sm:$0xff]
        %v259 = vld [vmem:[%s195 + $0x70] sm:$0xff]
        %v260 = vld [vmem:[%s195 + $0x78] sm:$0xff]
        %v261 = vld [vmem:[%s195 + $0x80] sm:$0xff]
        %v262 = vld [vmem:[%s195 + $0x88] sm:$0xff]
        %v263 = vld [vmem:[%s195 + $0x90] sm:$0xff]
        %v264 = vld [vmem:[%s195 + $0x98] sm:$0xff]
        %v265 = vld [vmem:[%s195 + $0xa0] sm:$0xff]
        %v266 = vld [vmem:[%s195 + $0xa8] sm:$0xff]
        %v267 = vld [vmem:[%s195 + $0xb0] sm:$0xff]
        %v268 = vld [vmem:[%s195 + $0xb8] sm:$0xff]
        %v269 = vld [vmem:[%s195 + $0xc0] sm:$0xff]
        %v270 = vld [vmem:[%s195 + $0xc8] sm:$0xff]
        %v271 = vld [vmem:[%s195 + $0xd0] sm:$0xff]
        %v272 = vld [vmem:[%s195 + $0xd8] sm:$0xff]
        %v273 = vld [vmem:[%s195 + $0xe0] sm:$0xff]
        %v274 = vld [vmem:[%s195 + $0xe8] sm:$0xff]
        %v275 = vld [vmem:[%s195 + $0xf0] sm:$0xff]
        %v276 = vld [vmem:[%s195 + $0xf8] sm:$0xff]
        %v277 = vld [vmem:[%s195 + $0x100] sm:$0xff]
        %v278 = vld [vmem:[%s195 + $0x108] sm:$0xff]
        %v279 = vld [vmem:[%s195 + $0x110] sm:$0xff]
        %v280 = vld [vmem:[%s195 + $0x118] sm:$0xff]
        %v281 = vld [vmem:[%s204] sm:$0xff]
        %v282 = vld [vmem:[%s204 + $0x8] sm:$0xff]
        %v283 = vld [vmem:[%s204 + $0x10] sm:$0xff]
        %v284 = vld [vmem:[%s204 + $0x18] sm:$0xff]
        %v285 = vld [vmem:[%s204 + $0x20] sm:$0xff]
        %v286 = vld [vmem:[%s204 + $0x28] sm:$0xff]
        %v287 = vld [vmem:[%s204 + $0x30] sm:$0xff]
        %v288 = vld [vmem:[%s204 + $0x38] sm:$0xff]
        %v289 = vld [vmem:[%s204 + $0x40] sm:$0xff]
        %v290 = vld [vmem:[%s204 + $0x48] sm:$0xff]
        %v291 = vld [vmem:[%s204 + $0x50] sm:$0xff]
        %v292 = vld [vmem:[%s204 + $0x58] sm:$0xff]
        %v293 = vld [vmem:[%s204 + $0x60] sm:$0xff]
        %v294 = vld [vmem:[%s204 + $0x68] sm:$0xff]
        %v295 = vld [vmem:[%s204 + $0x70] sm:$0xff]
        %v296 = vld [vmem:[%s204 + $0x78] sm:$0xff]
        %v297 = vld [vmem:[%s204 + $0x80] sm:$0xff]
        %v298 = vld [vmem:[%s204 + $0x88] sm:$0xff]
        %v299 = vld [vmem:[%s204 + $0x90] sm:$0xff]
        %v300 = vld [vmem:[%s204 + $0x98] sm:$0xff]
        %v301 = vld [vmem:[%s204 + $0xa0] sm:$0xff]
        %v302 = vld [vmem:[%s204 + $0xa8] sm:$0xff]
        %v303 = vld [vmem:[%s204 + $0xb0] sm:$0xff]
        %v304 = vld [vmem:[%s204 + $0xb8] sm:$0xff]
        %v305 = vld [vmem:[%s204 + $0xc0] sm:$0xff]
        %v306 = vld [vmem:[%s204 + $0xc8] sm:$0xff]
        %v307 = vld [vmem:[%s204 + $0xd0] sm:$0xff]
        %v308 = vld [vmem:[%s204 + $0xd8] sm:$0xff]
        %v309 = vld [vmem:[%s204 + $0xe0] sm:$0xff]
        %v310 = vld [vmem:[%s204 + $0xe8] sm:$0xff]
        %v311 = vld [vmem:[%s204 + $0xf0] sm:$0xff]
        %v312 = vld [vmem:[%s204 + $0xf8] sm:$0xff]
        %v313 = vld [vmem:[%s204 + $0x100] sm:$0xff]
        %v314 = vld [vmem:[%s204 + $0x108] sm:$0xff]
        %v315 = vld [vmem:[%s204 + $0x110] sm:$0xff]
        %v316 = vld [vmem:[%s204 + $0x118] sm:$0xff]
        %v317 = vld [vmem:[%s204 + $0x120] sm:$0xff]
        %v318 = vld [vmem:[%s204 + $0x128] sm:$0xff]
        %v319 = vld [vmem:[%s204 + $0x130] sm:$0xff]
        %v320 = vld [vmem:[%s204 + $0x138] sm:$0xff]
        %v321 = vld [vmem:[%s204 + $0x140] sm:$0xff]
        %v322 = vld [vmem:[%s204 + $0x148] sm:$0xff]
        %v323 = vld [vmem:[%s204 + $0x150] sm:$0xff]
        %v324 = vld [vmem:[%s204 + $0x158] sm:$0xff]
        %v325 = vld [vmem:[%s204 + $0x160] sm:$0xff]
        %v326 = vld [vmem:[%s204 + $0x168] sm:$0xff]
        %v327 = vld [vmem:[%s204 + $0x170] sm:$0xff]
        %v328 = vld [vmem:[%s204 + $0x178] sm:$0xff]
        %v329 = vld [vmem:[%s204 + $0x180] sm:$0xff]
        %v330 = vld [vmem:[%s204 + $0x188] sm:$0xff]
        %v331 = vld [vmem:[%s204 + $0x190] sm:$0xff]
        %v332 = vld [vmem:[%s204 + $0x198] sm:$0xff]
        %v333 = vld [vmem:[%s204 + $0x1a0] sm:$0xff]
        %v334 = vld [vmem:[%s204 + $0x1a8] sm:$0xff]
        %v335 = vld [vmem:[%s204 + $0x1b0] sm:$0xff]
        %v336 = vld [vmem:[%s204 + $0x1b8] sm:$0xff]
        %v337 = vld [vmem:[%s204 + $0x1c0] sm:$0xff]
        %v338 = vld [vmem:[%s204 + $0x1c8] sm:$0xff]
        %v339 = vld [vmem:[%s204 + $0x1d0] sm:$0xff]
        %v340 = vld [vmem:[%s204 + $0x1d8] sm:$0xff]
        %v341 = vld [vmem:[%s204 + $0x1e0] sm:$0xff]
        %v342 = vld [vmem:[%s204 + $0x1e8] sm:$0xff]
        %v343 = vld [vmem:[%s204 + $0x1f0] sm:$0xff]
        %v344 = vld [vmem:[%s204 + $0x1f8] sm:$0xff]
        %v345 = vld [vmem:[%s204 + $0x200] sm:$0xff]
        %v346 = vld [vmem:[%s204 + $0x208] sm:$0xff]
        %v347 = vld [vmem:[%s204 + $0x210] sm:$0xff]
        %v348 = vld [vmem:[%s204 + $0x218] sm:$0xff]
        %v349 = vld [vmem:[%s204 + $0x220] sm:$0xff]
        %v350 = vld [vmem:[%s204 + $0x228] sm:$0xff]
        %v351 = vld [vmem:[%s204 + $0x230] sm:$0xff]
        %v352 = vld [vmem:[%s204 + $0x238] sm:$0xff]
        %v353 = vld [vmem:[%s204 + $0x240] sm:$0xff]
        %v354 = vld [vmem:[%s204 + $0x248] sm:$0xff]
        %v355 = vld [vmem:[%s204 + $0x250] sm:$0xff]
        %v356 = vld [vmem:[%s204 + $0x258] sm:$0xff]
        %v357 = vld [vmem:[%s204 + $0x260] sm:$0xff]
        %v358 = vld [vmem:[%s204 + $0x268] sm:$0xff]
        %v359 = vld [vmem:[%s204 + $0x270] sm:$0xff]
        %v360 = vld [vmem:[%s204 + $0x278] sm:$0xff]
        %v361 = vld [vmem:[%s204 + $0x280] sm:$0xff]
        %v362 = vld [vmem:[%s204 + $0x288] sm:$0xff]
        %v363 = vld [vmem:[%s204 + $0x290] sm:$0xff]
        %v364 = vld [vmem:[%s204 + $0x298] sm:$0xff]
        %v365 = vld [vmem:[%s204 + $0x2a0] sm:$0xff]
        %v366 = vld [vmem:[%s204 + $0x2a8] sm:$0xff]
        %v367 = vld [vmem:[%s204 + $0x2b0] sm:$0xff]
        %v368 = vld [vmem:[%s204 + $0x2b8] sm:$0xff]
        %v369 = vld [vmem:[%s204 + $0x2c0] sm:$0xff]
        %v370 = vld [vmem:[%s204 + $0x2c8] sm:$0xff]
        %v371 = vld [vmem:[%s204 + $0x2d0] sm:$0xff]
        %v372 = vld [vmem:[%s204 + $0x2d8] sm:$0xff]
        %v373 = vld [vmem:[%s204 + $0x2e0] sm:$0xff]
        %v374 = vld [vmem:[%s204 + $0x2e8] sm:$0xff]
        %v375 = vld [vmem:[%s204 + $0x2f0] sm:$0xff]
        %v376 = vld [vmem:[%s204 + $0x2f8] sm:$0xff]
        %v377 = vld [vmem:[%s204 + $0x300] sm:$0xff]
        %v378 = vld [vmem:[%s204 + $0x308] sm:$0xff]
        %v379 = vld [vmem:[%s204 + $0x310] sm:$0xff]
        %v380 = vld [vmem:[%s204 + $0x318] sm:$0xff]
        %v381 = vld [vmem:[%s204 + $0x320] sm:$0xff]
        %v382 = vld [vmem:[%s204 + $0x328] sm:$0xff]
        %v383 = vld [vmem:[%s204 + $0x330] sm:$0xff]
        %v384 = vld [vmem:[%s204 + $0x338] sm:$0xff]
        %v385 = vld [vmem:[%s204 + $0x340] sm:$0xff]
        %v386 = vld [vmem:[%s204 + $0x348] sm:$0xff]
        %v387 = vld [vmem:[%s204 + $0x350] sm:$0xff]
        %v388 = vld [vmem:[%s204 + $0x358] sm:$0xff]
        %v389 = vld [vmem:[%s204 + $0x360] sm:$0xff]
        %v390 = vld [vmem:[%s204 + $0x368] sm:$0xff]
        %v391 = vld [vmem:[%s204 + $0x370] sm:$0xff]
        %v392 = vld [vmem:[%s204 + $0x378] sm:$0xff]
        %v393 = vld [vmem:[%s204 + $0x380] sm:$0xff]
        %v394 = vld [vmem:[%s204 + $0x388] sm:$0xff]
        %v395 = vld [vmem:[%s204 + $0x390] sm:$0xff]
        %v396 = vld [vmem:[%s204 + $0x398] sm:$0xff]
        %v397 = vld [vmem:[%s204 + $0x3a0] sm:$0xff]
        %v398 = vld [vmem:[%s204 + $0x3a8] sm:$0xff]
        %v399 = vld [vmem:[%s204 + $0x3b0] sm:$0xff]
        %v400 = vld [vmem:[%s204 + $0x3b8] sm:$0xff]
        %v401 = vld [vmem:[%s204 + $0x3c0] sm:$0xff]
        %v402 = vld [vmem:[%s204 + $0x3c8] sm:$0xff]
        %v403 = vld [vmem:[%s204 + $0x3d0] sm:$0xff]
        %v404 = vld [vmem:[%s204 + $0x3d8] sm:$0xff]
        %v405 = vld [vmem:[%s204 + $0x3e0] sm:$0xff]
        %v406 = vld [vmem:[%s204 + $0x3e8] sm:$0xff]
        %v407 = vld [vmem:[%s204 + $0x3f0] sm:$0xff]
        %v408 = vld [vmem:[%s204 + $0x3f8] sm:$0xff]
        %v409 = vld [vmem:[%s204 + $0x400] sm:$0xff]
        %v410 = vld [vmem:[%s204 + $0x408] sm:$0xff]
        %v411 = vld [vmem:[%s204 + $0x410] sm:$0xff]
        %v412 = vld [vmem:[%s204 + $0x418] sm:$0xff]
        %v413 = vld [vmem:[%s204 + $0x420] sm:$0xff]
        %v414 = vld [vmem:[%s204 + $0x428] sm:$0xff]
        %v415 = vld [vmem:[%s204 + $0x430] sm:$0xff]
        %v416 = vld [vmem:[%s204 + $0x438] sm:$0xff]
        %v417 = vld [vmem:[%s204 + $0x440] sm:$0xff]
        %v418 = vld [vmem:[%s204 + $0x448] sm:$0xff]
        %v419 = vld [vmem:[%s204 + $0x450] sm:$0xff]
        %v420 = vld [vmem:[%s204 + $0x458] sm:$0xff]
        %v421 = vld [vmem:[%s204 + $0x460] sm:$0xff]
        %v422 = vld [vmem:[%s204 + $0x468] sm:$0xff]
        %v423 = vld [vmem:[%s204 + $0x470] sm:$0xff]
        %v424 = vld [vmem:[%s204 + $0x478] sm:$0xff]
        %v425 = vld [vmem:[%s204 + $0x480] sm:$0xff]
        %v426 = vld [vmem:[%s204 + $0x488] sm:$0xff]
        %v427 = vld [vmem:[%s204 + $0x490] sm:$0xff]
        %v428 = vld [vmem:[%s204 + $0x498] sm:$0xff]
        %v429 = vld [vmem:[%s204 + $0x4a0] sm:$0xff]
        %v430 = vld [vmem:[%s204 + $0x4a8] sm:$0xff]
        %v431 = vld [vmem:[%s204 + $0x4b0] sm:$0xff]
        %v432 = vld [vmem:[%s204 + $0x4b8] sm:$0xff]
        %v433 = vld [vmem:[%s204 + $0x4c0] sm:$0xff]
        %v434 = vld [vmem:[%s204 + $0x4c8] sm:$0xff]
        %v435 = vld [vmem:[%s204 + $0x4d0] sm:$0xff]
        %v436 = vld [vmem:[%s204 + $0x4d8] sm:$0xff]
        %v437 = vld [vmem:[%s204 + $0x4e0] sm:$0xff]
        %v438 = vld [vmem:[%s204 + $0x4e8] sm:$0xff]
        %v439 = vld [vmem:[%s204 + $0x4f0] sm:$0xff]
        %v440 = vld [vmem:[%s204 + $0x4f8] sm:$0xff]
        %v441 = vld [vmem:[%s204 + $0x500] sm:$0xff]
        %v442 = vld [vmem:[%s204 + $0x508] sm:$0xff]
        %v443 = vld [vmem:[%s204 + $0x510] sm:$0xff]
        %v444 = vld [vmem:[%s204 + $0x518] sm:$0xff]
        %v445 = vld [vmem:[%s204 + $0x520] sm:$0xff]
        %v446 = vld [vmem:[%s204 + $0x528] sm:$0xff]
        %v447 = vld [vmem:[%s204 + $0x530] sm:$0xff]
        %v448 = vld [vmem:[%s204 + $0x538] sm:$0xff]
        %v449 = vld [vmem:[%s204 + $0x540] sm:$0xff]
        %v450 = vld [vmem:[%s204 + $0x548] sm:$0xff]
        %v451 = vld [vmem:[%s204 + $0x550] sm:$0xff]
        %v452 = vld [vmem:[%s204 + $0x558] sm:$0xff]
        %v453 = vld [vmem:[%s204 + $0x560] sm:$0xff]
        %v454 = vld [vmem:[%s204 + $0x568] sm:$0xff]
        %v455 = vld [vmem:[%s204 + $0x570] sm:$0xff]
        %v456 = vld [vmem:[%s204 + $0x578] sm:$0xff]
        %v457 = vld [vmem:[%s204 + $0x580] sm:$0xff]
        %v458 = vld [vmem:[%s204 + $0x588] sm:$0xff]
        %v459 = vld [vmem:[%s204 + $0x590] sm:$0xff]
        %v460 = vld [vmem:[%s204 + $0x598] sm:$0xff]
        %v461 = vld [vmem:[%s204 + $0x5a0] sm:$0xff]
        %v462 = vld [vmem:[%s204 + $0x5a8] sm:$0xff]
        %v463 = vld [vmem:[%s204 + $0x5b0] sm:$0xff]
        %v464 = vld [vmem:[%s204 + $0x5b8] sm:$0xff]
        %v465 = vld [vmem:[%s204 + $0x5c0] sm:$0xff]
        %v466 = vld [vmem:[%s204 + $0x5c8] sm:$0xff]
        %v467 = vld [vmem:[%s204 + $0x5d0] sm:$0xff]
        %v468 = vld [vmem:[%s204 + $0x5d8] sm:$0xff]
        %v469 = vld [vmem:[%s204 + $0x5e0] sm:$0xff]
        %v470 = vld [vmem:[%s204 + $0x5e8] sm:$0xff]
        %v471 = vld [vmem:[%s204 + $0x5f0] sm:$0xff]
        %v472 = vld [vmem:[%s204 + $0x5f8] sm:$0xff]
        %v473 = vld [vmem:[%s204 + $0x600] sm:$0xff]
        %v474 = vld [vmem:[%s204 + $0x608] sm:$0xff]
        %v475 = vld [vmem:[%s204 + $0x610] sm:$0xff]
        %v476 = vld [vmem:[%s204 + $0x618] sm:$0xff]
        %v477 = vld [vmem:[%s204 + $0x620] sm:$0xff]
        %v478 = vld [vmem:[%s204 + $0x628] sm:$0xff]
        %v479 = vld [vmem:[%s204 + $0x630] sm:$0xff]
        %v480 = vld [vmem:[%s204 + $0x638] sm:$0xff]
        %v481 = vld [vmem:[%s204 + $0x640] sm:$0xff]
        %v482 = vld [vmem:[%s204 + $0x648] sm:$0xff]
        %v483 = vld [vmem:[%s204 + $0x650] sm:$0xff]
        %v484 = vld [vmem:[%s204 + $0x658] sm:$0xff]
        %v485 = vld [vmem:[%s204 + $0x660] sm:$0xff]
        %v486 = vld [vmem:[%s204 + $0x668] sm:$0xff]
        %v487 = vld [vmem:[%s204 + $0x670] sm:$0xff]
        %v488 = vld [vmem:[%s204 + $0x678] sm:$0xff]
        %v489 = vld [vmem:[%s204 + $0x680] sm:$0xff]
        %v490 = vld [vmem:[%s204 + $0x688] sm:$0xff]
        %v491 = vld [vmem:[%s204 + $0x690] sm:$0xff]
        %v492 = vld [vmem:[%s204 + $0x698] sm:$0xff]
        %v493 = vld [vmem:[%s204 + $0x6a0] sm:$0xff]
        %v494 = vld [vmem:[%s204 + $0x6a8] sm:$0xff]
        %v495 = vld [vmem:[%s204 + $0x6b0] sm:$0xff]
        %v496 = vld [vmem:[%s204 + $0x6b8] sm:$0xff]
        %v497 = vld [vmem:[%s204 + $0x6c0] sm:$0xff]
        %v498 = vld [vmem:[%s204 + $0x6c8] sm:$0xff]
        %v499 = vld [vmem:[%s204 + $0x6d0] sm:$0xff]
        %v500 = vld [vmem:[%s204 + $0x6d8] sm:$0xff]
        %v501 = vld [vmem:[%s204 + $0x6e0] sm:$0xff]
        %v502 = vld [vmem:[%s204 + $0x6e8] sm:$0xff]
        %v503 = vld [vmem:[%s204 + $0x6f0] sm:$0xff]
        %v504 = vld [vmem:[%s204 + $0x6f8] sm:$0xff]
        %v505 = vld [vmem:[%s204 + $0x700] sm:$0xff]
        %v506 = vld [vmem:[%s204 + $0x708] sm:$0xff]
        %v507 = vld [vmem:[%s204 + $0x710] sm:$0xff]
        %v508 = vld [vmem:[%s204 + $0x718] sm:$0xff]
        %v509 = vld [vmem:[%s204 + $0x720] sm:$0xff]
        %v510 = vld [vmem:[%s204 + $0x728] sm:$0xff]
        %v511 = vld [vmem:[%s204 + $0x730] sm:$0xff]
        %v512 = vld [vmem:[%s204 + $0x738] sm:$0xff]
        %v513 = vld [vmem:[%s204 + $0x740] sm:$0xff]
        %v514 = vld [vmem:[%s204 + $0x748] sm:$0xff]
        %v515 = vld [vmem:[%s204 + $0x750] sm:$0xff]
        %v516 = vld [vmem:[%s204 + $0x758] sm:$0xff]
        %v517 = vld [vmem:[%s204 + $0x760] sm:$0xff]
        %v518 = vld [vmem:[%s204 + $0x768] sm:$0xff]
        %v519 = vld [vmem:[%s204 + $0x770] sm:$0xff]
        %v520 = vld [vmem:[%s204 + $0x778] sm:$0xff]
        %v521 = vld [vmem:[%s204 + $0x780] sm:$0xff]
        %v522 = vld [vmem:[%s204 + $0x788] sm:$0xff]
        %v523 = vld [vmem:[%s204 + $0x790] sm:$0xff]
        %v524 = vld [vmem:[%s204 + $0x798] sm:$0xff]
        %v525 = vld [vmem:[%s204 + $0x7a0] sm:$0xff]
        %v526 = vld [vmem:[%s204 + $0x7a8] sm:$0xff]
        %v527 = vld [vmem:[%s204 + $0x7b0] sm:$0xff]
        %v528 = vld [vmem:[%s204 + $0x7b8] sm:$0xff]
        %v529 = vld [vmem:[%s204 + $0x7c0] sm:$0xff]
        %v530 = vld [vmem:[%s204 + $0x7c8] sm:$0xff]
        %v531 = vld [vmem:[%s204 + $0x7d0] sm:$0xff]
        %v532 = vld [vmem:[%s204 + $0x7d8] sm:$0xff]
        %v533 = vld [vmem:[%s204 + $0x7e0] sm:$0xff]
        %v534 = vld [vmem:[%s204 + $0x7e8] sm:$0xff]
        %v535 = vld [vmem:[%s204 + $0x7f0] sm:$0xff]
        %v536 = vld [vmem:[%s204 + $0x7f8] sm:$0xff]
        %v537 = vld [vmem:[%s204 + $0x800] sm:$0xff]
        %v538 = vld [vmem:[%s204 + $0x808] sm:$0xff]
        %v539 = vld [vmem:[%s204 + $0x810] sm:$0xff]
        %v540 = vld [vmem:[%s204 + $0x818] sm:$0xff]
        %v541 = vld [vmem:[%s204 + $0x820] sm:$0xff]
        %v542 = vld [vmem:[%s204 + $0x828] sm:$0xff]
        %v543 = vld [vmem:[%s204 + $0x830] sm:$0xff]
        %v544 = vld [vmem:[%s204 + $0x838] sm:$0xff]
        %v545 = vld [vmem:[%s204 + $0x840] sm:$0xff]
        %v546 = vld [vmem:[%s204 + $0x848] sm:$0xff]
        %v547 = vld [vmem:[%s204 + $0x850] sm:$0xff]
        %v548 = vld [vmem:[%s204 + $0x858] sm:$0xff]
        %v549 = vld [vmem:[%s204 + $0x860] sm:$0xff]
        %v550 = vld [vmem:[%s204 + $0x868] sm:$0xff]
        %v551 = vld [vmem:[%s204 + $0x870] sm:$0xff]
        %v552 = vld [vmem:[%s204 + $0x878] sm:$0xff]
        %v553 = vld [vmem:[%s204 + $0x880] sm:$0xff]
        %v554 = vld [vmem:[%s204 + $0x888] sm:$0xff]
        %v555 = vld [vmem:[%s204 + $0x890] sm:$0xff]
        %v556 = vld [vmem:[%s204 + $0x898] sm:$0xff]
        %v557 = vld [vmem:[%s204 + $0x8a0] sm:$0xff]
        %v558 = vld [vmem:[%s204 + $0x8a8] sm:$0xff]
        %v559 = vld [vmem:[%s204 + $0x8b0] sm:$0xff]
        %v560 = vld [vmem:[%s204 + $0x8b8] sm:$0xff]
        %v561 = vld [vmem:[%s204 + $0x8c0] sm:$0xff]
        %v562 = vld [vmem:[%s204 + $0x8c8] sm:$0xff]
        %v563 = vld [vmem:[%s204 + $0x8d0] sm:$0xff]
        %v564 = vld [vmem:[%s204 + $0x8d8] sm:$0xff]
        %v565 = vld [vmem:[%s204 + $0x8e0] sm:$0xff]
        %v566 = vld [vmem:[%s204 + $0x8e8] sm:$0xff]
        %v567 = vld [vmem:[%s204 + $0x8f0] sm:$0xff]
        %v568 = vld [vmem:[%s204 + $0x8f8] sm:$0xff]
        %v569 = vld [vmem:[%s204 + $0x900] sm:$0xff]
        %v570 = vld [vmem:[%s204 + $0x908] sm:$0xff]
        %v571 = vld [vmem:[%s204 + $0x910] sm:$0xff]
        %v572 = vld [vmem:[%s204 + $0x918] sm:$0xff]
        %v573 = vld [vmem:[%s204 + $0x920] sm:$0xff]
        %v574 = vld [vmem:[%s204 + $0x928] sm:$0xff]
        %v575 = vld [vmem:[%s204 + $0x930] sm:$0xff]
        %v576 = vld [vmem:[%s204 + $0x938] sm:$0xff]
        %v577 = vld [vmem:[%s204 + $0x940] sm:$0xff]
        %v578 = vld [vmem:[%s204 + $0x948] sm:$0xff]
        %v579 = vld [vmem:[%s204 + $0x950] sm:$0xff]
        %v580 = vld [vmem:[%s204 + $0x958] sm:$0xff]
        %v581 = vld [vmem:[%s204 + $0x960] sm:$0xff]
        %v582 = vld [vmem:[%s204 + $0x968] sm:$0xff]
        %v583 = vld [vmem:[%s204 + $0x970] sm:$0xff]
        %v584 = vld [vmem:[%s204 + $0x978] sm:$0xff]
        %v585 = vld [vmem:[%s204 + $0x980] sm:$0xff]
        %v586 = vld [vmem:[%s204 + $0x988] sm:$0xff]
        %v587 = vld [vmem:[%s204 + $0x990] sm:$0xff]
        %v588 = vld [vmem:[%s204 + $0x998] sm:$0xff]
        %v589 = vld [vmem:[%s204 + $0x9a0] sm:$0xff]
        %v590 = vld [vmem:[%s204 + $0x9a8] sm:$0xff]
        %v591 = vld [vmem:[%s204 + $0x9b0] sm:$0xff]
        %v592 = vld [vmem:[%s204 + $0x9b8] sm:$0xff]
        %v593 = vld [vmem:[%s204 + $0x9c0] sm:$0xff]
        %v594 = vld [vmem:[%s204 + $0x9c8] sm:$0xff]
        %v595 = vld [vmem:[%s204 + $0x9d0] sm:$0xff]
        %v596 = vld [vmem:[%s204 + $0x9d8] sm:$0xff]
        %v597 = vld [vmem:[%s204 + $0x9e0] sm:$0xff]
        %v598 = vld [vmem:[%s204 + $0x9e8] sm:$0xff]
        %v599 = vld [vmem:[%s204 + $0x9f0] sm:$0xff]
        %v600 = vld [vmem:[%s204 + $0x9f8] sm:$0xff]
        %v601 = vld [vmem:[%s204 + $0xa00] sm:$0xff]
        %v602 = vld [vmem:[%s204 + $0xa08] sm:$0xff]
        %v603 = vld [vmem:[%s204 + $0xa10] sm:$0xff]
        %v604 = vld [vmem:[%s204 + $0xa18] sm:$0xff]
        %v605 = vld [vmem:[%s204 + $0xa20] sm:$0xff]
        %v606 = vld [vmem:[%s204 + $0xa28] sm:$0xff]
        %v607 = vld [vmem:[%s204 + $0xa30] sm:$0xff]
        %v608 = vld [vmem:[%s204 + $0xa38] sm:$0xff]
        %v609 = vld [vmem:[%s204 + $0xa40] sm:$0xff]
        %v610 = vld [vmem:[%s204 + $0xa48] sm:$0xff]
        %v611 = vld [vmem:[%s204 + $0xa50] sm:$0xff]
        %v612 = vld [vmem:[%s204 + $0xa58] sm:$0xff]
        %v613 = vld [vmem:[%s204 + $0xa60] sm:$0xff]
        %v614 = vld [vmem:[%s204 + $0xa68] sm:$0xff]
        %v615 = vld [vmem:[%s204 + $0xa70] sm:$0xff]
        %v616 = vld [vmem:[%s204 + $0xa78] sm:$0xff]
        %v617 = vld [vmem:[%s204 + $0xa80] sm:$0xff]
        %v618 = vld [vmem:[%s204 + $0xa88] sm:$0xff]
        %v619 = vld [vmem:[%s204 + $0xa90] sm:$0xff]
        %v620 = vld [vmem:[%s204 + $0xa98] sm:$0xff]
        %v621 = vld [vmem:[%s204 + $0xaa0] sm:$0xff]
        %v622 = vld [vmem:[%s204 + $0xaa8] sm:$0xff]
        %v623 = vld [vmem:[%s204 + $0xab0] sm:$0xff]
        %v624 = vld [vmem:[%s204 + $0xab8] sm:$0xff]
        %v625 = vld [vmem:[%s204 + $0xac0] sm:$0xff]
        %v626 = vld [vmem:[%s204 + $0xac8] sm:$0xff]
        %v627 = vld [vmem:[%s204 + $0xad0] sm:$0xff]
        %v628 = vld [vmem:[%s204 + $0xad8] sm:$0xff]
        %v629 = vld [vmem:[%s204 + $0xae0] sm:$0xff]
        %v630 = vld [vmem:[%s204 + $0xae8] sm:$0xff]
        %v631 = vld [vmem:[%s204 + $0xaf0] sm:$0xff]
        %v632 = vld [vmem:[%s204 + $0xaf8] sm:$0xff]
        %v633 = vld [vmem:[%s204 + $0xb00] sm:$0xff]
        %v634 = vld [vmem:[%s204 + $0xb08] sm:$0xff]
        %v635 = vld [vmem:[%s204 + $0xb10] sm:$0xff]
        %v636 = vld [vmem:[%s204 + $0xb18] sm:$0xff]
        %v637 = vld [vmem:[%s204 + $0xb20] sm:$0xff]
        %v638 = vld [vmem:[%s204 + $0xb28] sm:$0xff]
        %v639 = vld [vmem:[%s204 + $0xb30] sm:$0xff]
        %v640 = vld [vmem:[%s204 + $0xb38] sm:$0xff]
        %v641 = vld [vmem:[%s204 + $0xb40] sm:$0xff]
        %v642 = vld [vmem:[%s204 + $0xb48] sm:$0xff]
        %v643 = vld [vmem:[%s204 + $0xb50] sm:$0xff]
        %v644 = vld [vmem:[%s204 + $0xb58] sm:$0xff]
        %v645 = vld [vmem:[%s204 + $0xb60] sm:$0xff]
        %v646 = vld [vmem:[%s204 + $0xb68] sm:$0xff]
        %v647 = vld [vmem:[%s204 + $0xb70] sm:$0xff]
        %v648 = vld [vmem:[%s204 + $0xb78] sm:$0xff]
        %v649 = vld [vmem:[%s204 + $0xb80] sm:$0xff]
        %v650 = vld [vmem:[%s204 + $0xb88] sm:$0xff]
        %v651 = vld [vmem:[%s204 + $0xb90] sm:$0xff]
        %v652 = vld [vmem:[%s204 + $0xb98] sm:$0xff]
        %v653 = vld [vmem:[%s204 + $0xba0] sm:$0xff]
        %v654 = vld [vmem:[%s204 + $0xba8] sm:$0xff]
        %v655 = vld [vmem:[%s204 + $0xbb0] sm:$0xff]
        %v656 = vld [vmem:[%s204 + $0xbb8] sm:$0xff]
        %v657 = vld [vmem:[%s204 + $0xbc0] sm:$0xff]
        %v658 = vld [vmem:[%s204 + $0xbc8] sm:$0xff]
        %v659 = vld [vmem:[%s204 + $0xbd0] sm:$0xff]
        %v660 = vld [vmem:[%s204 + $0xbd8] sm:$0xff]
        %v661 = vld [vmem:[%s204 + $0xbe0] sm:$0xff]
        %v662 = vld [vmem:[%s204 + $0xbe8] sm:$0xff]
        %v663 = vld [vmem:[%s204 + $0xbf0] sm:$0xff]
        %v664 = vld [vmem:[%s204 + $0xbf8] sm:$0xff]
        %v665 = vld [vmem:[#allocation2] sm:$0xff]
        %v666 = vld [vmem:[#allocation2 + $0x8] sm:$0xff]
        %v667 = vld [vmem:[#allocation2 + $0x10] sm:$0xff]
        %v668 = vld [vmem:[#allocation2 + $0x18] sm:$0xff]
        %v669 = vld [vmem:[#allocation2 + $0x20] sm:$0xff]
        %v670 = vld [vmem:[#allocation2 + $0x28] sm:$0xff]
        %v707 = vunpack.c.l.b16 %v245
        %v708 = vunpack.c.h.b16 %v245
        %v709 = vunpack.c.l.b16 %v246
        %v710 = vunpack.c.h.b16 %v246
        %v711 = vunpack.c.l.b16 %v247
        %v712 = vunpack.c.h.b16 %v247
        %v713 = vunpack.c.l.b16 %v248
        %v714 = vunpack.c.h.b16 %v248
        %v715 = vunpack.c.l.b16 %v249
        %v716 = vunpack.c.h.b16 %v249
        %v717 = vunpack.c.l.b16 %v250
        %v718 = vunpack.c.h.b16 %v250
        %v719 = vunpack.c.l.b16 %v251
        %v720 = vunpack.c.h.b16 %v251
        %v721 = vunpack.c.l.b16 %v252
        %v722 = vunpack.c.h.b16 %v252
        %v723 = vunpack.c.l.b16 %v253
        %v724 = vunpack.c.h.b16 %v253
        %v725 = vunpack.c.l.b16 %v254
        %v726 = vunpack.c.h.b16 %v254
        %v727 = vunpack.c.l.b16 %v255
        %v728 = vunpack.c.h.b16 %v255
        %v729 = vunpack.c.l.b16 %v256
        %v730 = vunpack.c.h.b16 %v256
        %v731 = vunpack.c.l.b16 %v257
        %v732 = vunpack.c.h.b16 %v257
        %v733 = vunpack.c.l.b16 %v258
        %v734 = vunpack.c.h.b16 %v258
        %v735 = vunpack.c.l.b16 %v259
        %v736 = vunpack.c.h.b16 %v259
        %v737 = vunpack.c.l.b16 %v260
        %v738 = vunpack.c.h.b16 %v260
        %v739 = vunpack.c.l.b16 %v261
        %v740 = vunpack.c.h.b16 %v261
        %v741 = vunpack.c.l.b16 %v262
        %v742 = vunpack.c.h.b16 %v262
        %v743 = vunpack.c.l.b16 %v263
        %v744 = vunpack.c.h.b16 %v263
        %v745 = vunpack.c.l.b16 %v264
        %v746 = vunpack.c.h.b16 %v264
        %v747 = vunpack.c.l.b16 %v265
        %v748 = vunpack.c.h.b16 %v265
        %v749 = vunpack.c.l.b16 %v266
        %v750 = vunpack.c.h.b16 %v266
        %v751 = vunpack.c.l.b16 %v267
        %v752 = vunpack.c.h.b16 %v267
        %v753 = vunpack.c.l.b16 %v268
        %v754 = vunpack.c.h.b16 %v268
        %v755 = vunpack.c.l.b16 %v269
        %v756 = vunpack.c.h.b16 %v269
        %v757 = vunpack.c.l.b16 %v270
        %v758 = vunpack.c.h.b16 %v270
        %v759 = vunpack.c.l.b16 %v271
        %v760 = vunpack.c.h.b16 %v271
        %v761 = vunpack.c.l.b16 %v272
        %v762 = vunpack.c.h.b16 %v272
        %v763 = vunpack.c.l.b16 %v273
        %v764 = vunpack.c.h.b16 %v273
        %v765 = vunpack.c.l.b16 %v274
        %v766 = vunpack.c.h.b16 %v274
        %v767 = vunpack.c.l.b16 %v275
        %v768 = vunpack.c.h.b16 %v275
        %v769 = vunpack.c.l.b16 %v276
        %v770 = vunpack.c.h.b16 %v276
        %v771 = vunpack.c.l.b16 %v277
        %v772 = vunpack.c.h.b16 %v277
        %v773 = vunpack.c.l.b16 %v278
        %v774 = vunpack.c.h.b16 %v278
        %v775 = vunpack.c.l.b16 %v279
        %v776 = vunpack.c.h.b16 %v279
        %v777 = vunpack.c.l.b16 %v280
        %v778 = vunpack.c.h.b16 %v280
        %v779 = vpack.c.b16 %v731, %v707
        %v780 = vpack.c.b16 %v732, %v708
        %v781 = vpack.c.b16 %v733, %v709
        %v782 = vpack.c.b16 %v734, %v710
        %v783 = vpack.c.b16 %v735, %v711
        %v784 = vpack.c.b16 %v736, %v712
        %v785 = vpack.c.b16 %v737, %v713
        %v786 = vpack.c.b16 %v738, %v714
        %v787 = vpack.c.b16 %v739, %v715
        %v788 = vpack.c.b16 %v740, %v716
        %v789 = vpack.c.b16 %v741, %v717
        %v790 = vpack.c.b16 %v742, %v718
        %v791 = vpack.c.b16 %v743, %v719
        %v792 = vpack.c.b16 %v744, %v720
        %v793 = vpack.c.b16 %v745, %v721
        %v794 = vpack.c.b16 %v746, %v722
        %v795 = vpack.c.b16 %v747, %v723
        %v796 = vpack.c.b16 %v748, %v724
        %v797 = vpack.c.b16 %v749, %v725
        %v798 = vpack.c.b16 %v750, %v726
        %v799 = vpack.c.b16 %v751, %v727
        %v800 = vpack.c.b16 %v752, %v728
        %v801 = vpack.c.b16 %v753, %v729
        %v802 = vpack.c.b16 %v754, %v730
        %v803 = vpack.c.b16 %v755, %v755
        %v804 = vpack.c.b16 %v756, %v756
        %v805 = vpack.c.b16 %v757, %v757
        %v806 = vpack.c.b16 %v758, %v758
        %v807 = vpack.c.b16 %v759, %v759
        %v808 = vpack.c.b16 %v760, %v760
        %v809 = vpack.c.b16 %v761, %v761
        %v810 = vpack.c.b16 %v762, %v762
        %v811 = vpack.c.b16 %v763, %v763
        %v812 = vpack.c.b16 %v764, %v764
        %v813 = vpack.c.b16 %v765, %v765
        %v814 = vpack.c.b16 %v766, %v766
        %v815 = vpack.c.b16 %v767, %v767
        %v816 = vpack.c.b16 %v768, %v768
        %v817 = vpack.c.b16 %v769, %v769
        %v818 = vpack.c.b16 %v770, %v770
        %v819 = vpack.c.b16 %v771, %v771
        %v820 = vpack.c.b16 %v772, %v772
        %v821 = vpack.c.b16 %v773, %v773
        %v822 = vpack.c.b16 %v774, %v774
        %v823 = vpack.c.b16 %v775, %v775
        %v824 = vpack.c.b16 %v776, %v776
        %v825 = vpack.c.b16 %v777, %v777
        %v826 = vpack.c.b16 %v778, %v778
        %v1259 = vunpack.c.l.b16 %v281
        %v1260 = vunpack.c.h.b16 %v281
        %v1261 = vunpack.c.l.b16 %v282
        %v1262 = vunpack.c.h.b16 %v282
        %v1263 = vunpack.c.l.b16 %v283
        %v1264 = vunpack.c.h.b16 %v283
        %v1265 = vunpack.c.l.b16 %v284
        %v1266 = vunpack.c.h.b16 %v284
        %v1267 = vunpack.c.l.b16 %v285
        %v1268 = vunpack.c.h.b16 %v285
        %v1269 = vunpack.c.l.b16 %v286
        %v1270 = vunpack.c.h.b16 %v286
        %v1271 = vunpack.c.l.b16 %v287
        %v1272 = vunpack.c.h.b16 %v287
        %v1273 = vunpack.c.l.b16 %v288
        %v1274 = vunpack.c.h.b16 %v288
        %v1275 = vunpack.c.l.b16 %v289
        %v1276 = vunpack.c.h.b16 %v289
        %v1277 = vunpack.c.l.b16 %v290
        %v1278 = vunpack.c.h.b16 %v290
        %v1279 = vunpack.c.l.b16 %v291
        %v1280 = vunpack.c.h.b16 %v291
        %v1281 = vunpack.c.l.b16 %v292
        %v1282 = vunpack.c.h.b16 %v292
        %v1283 = vunpack.c.l.b16 %v293
        %v1284 = vunpack.c.h.b16 %v293
        %v1285 = vunpack.c.l.b16 %v294
        %v1286 = vunpack.c.h.b16 %v294
        %v1287 = vunpack.c.l.b16 %v295
        %v1288 = vunpack.c.h.b16 %v295
        %v1289 = vunpack.c.l.b16 %v296
        %v1290 = vunpack.c.h.b16 %v296
        %v1291 = vunpack.c.l.b16 %v297
        %v1292 = vunpack.c.h.b16 %v297
        %v1293 = vunpack.c.l.b16 %v298
        %v1294 = vunpack.c.h.b16 %v298
        %v1295 = vunpack.c.l.b16 %v299
        %v1296 = vunpack.c.h.b16 %v299
        %v1297 = vunpack.c.l.b16 %v300
        %v1298 = vunpack.c.h.b16 %v300
        %v1299 = vunpack.c.l.b16 %v301
        %v1300 = vunpack.c.h.b16 %v301
        %v1301 = vunpack.c.l.b16 %v302
        %v1302 = vunpack.c.h.b16 %v302
        %v1303 = vunpack.c.l.b16 %v303
        %v1304 = vunpack.c.h.b16 %v303
        %v1305 = vunpack.c.l.b16 %v304
        %v1306 = vunpack.c.h.b16 %v304
        %v1307 = vunpack.c.l.b16 %v305
        %v1308 = vunpack.c.h.b16 %v305
        %v1309 = vunpack.c.l.b16 %v306
        %v1310 = vunpack.c.h.b16 %v306
        %v1311 = vunpack.c.l.b16 %v307
        %v1312 = vunpack.c.h.b16 %v307
        %v1313 = vunpack.c.l.b16 %v308
        %v1314 = vunpack.c.h.b16 %v308
        %v1315 = vunpack.c.l.b16 %v309
        %v1316 = vunpack.c.h.b16 %v309
        %v1317 = vunpack.c.l.b16 %v310
        %v1318 = vunpack.c.h.b16 %v310
        %v1319 = vunpack.c.l.b16 %v311
        %v1320 = vunpack.c.h.b16 %v311
        %v1321 = vunpack.c.l.b16 %v312
        %v1322 = vunpack.c.h.b16 %v312
        %v1323 = vunpack.c.l.b16 %v313
        %v1324 = vunpack.c.h.b16 %v313
        %v1325 = vunpack.c.l.b16 %v314
        %v1326 = vunpack.c.h.b16 %v314
        %v1327 = vunpack.c.l.b16 %v315
        %v1328 = vunpack.c.h.b16 %v315
        %v1329 = vunpack.c.l.b16 %v316
        %v1330 = vunpack.c.h.b16 %v316
        %v1331 = vunpack.c.l.b16 %v317
        %v1332 = vunpack.c.h.b16 %v317
        %v1333 = vunpack.c.l.b16 %v318
        %v1334 = vunpack.c.h.b16 %v318
        %v1335 = vunpack.c.l.b16 %v319
        %v1336 = vunpack.c.h.b16 %v319
        %v1337 = vunpack.c.l.b16 %v320
        %v1338 = vunpack.c.h.b16 %v320
        %v1339 = vunpack.c.l.b16 %v321
        %v1340 = vunpack.c.h.b16 %v321
        %v1341 = vunpack.c.l.b16 %v322
        %v1342 = vunpack.c.h.b16 %v322
        %v1343 = vunpack.c.l.b16 %v323
        %v1344 = vunpack.c.h.b16 %v323
        %v1345 = vunpack.c.l.b16 %v324
        %v1346 = vunpack.c.h.b16 %v324
        %v1347 = vunpack.c.l.b16 %v325
        %v1348 = vunpack.c.h.b16 %v325
        %v1349 = vunpack.c.l.b16 %v326
        %v1350 = vunpack.c.h.b16 %v326
        %v1351 = vunpack.c.l.b16 %v327
        %v1352 = vunpack.c.h.b16 %v327
        %v1353 = vunpack.c.l.b16 %v328
        %v1354 = vunpack.c.h.b16 %v328
        %v1355 = vunpack.c.l.b16 %v329
        %v1356 = vunpack.c.h.b16 %v329
        %v1357 = vunpack.c.l.b16 %v330
        %v1358 = vunpack.c.h.b16 %v330
        %v1359 = vunpack.c.l.b16 %v331
        %v1360 = vunpack.c.h.b16 %v331
        %v1361 = vunpack.c.l.b16 %v332
        %v1362 = vunpack.c.h.b16 %v332
        %v1363 = vunpack.c.l.b16 %v333
        %v1364 = vunpack.c.h.b16 %v333
        %v1365 = vunpack.c.l.b16 %v334
        %v1366 = vunpack.c.h.b16 %v334
        %v1367 = vunpack.c.l.b16 %v335
        %v1368 = vunpack.c.h.b16 %v335
        %v1369 = vunpack.c.l.b16 %v336
        %v1370 = vunpack.c.h.b16 %v336
        %v1371 = vunpack.c.l.b16 %v337
        %v1372 = vunpack.c.h.b16 %v337
        %v1373 = vunpack.c.l.b16 %v338
        %v1374 = vunpack.c.h.b16 %v338
        %v1375 = vunpack.c.l.b16 %v339
        %v1376 = vunpack.c.h.b16 %v339
        %v1377 = vunpack.c.l.b16 %v340
        %v1378 = vunpack.c.h.b16 %v340
        %v1379 = vunpack.c.l.b16 %v341
        %v1380 = vunpack.c.h.b16 %v341
        %v1381 = vunpack.c.l.b16 %v342
        %v1382 = vunpack.c.h.b16 %v342
        %v1383 = vunpack.c.l.b16 %v343
        %v1384 = vunpack.c.h.b16 %v343
        %v1385 = vunpack.c.l.b16 %v344
        %v1386 = vunpack.c.h.b16 %v344
        %v1387 = vunpack.c.l.b16 %v345
        %v1388 = vunpack.c.h.b16 %v345
        %v1389 = vunpack.c.l.b16 %v346
        %v1390 = vunpack.c.h.b16 %v346
        %v1391 = vunpack.c.l.b16 %v347
        %v1392 = vunpack.c.h.b16 %v347
        %v1393 = vunpack.c.l.b16 %v348
        %v1394 = vunpack.c.h.b16 %v348
        %v1395 = vunpack.c.l.b16 %v349
        %v1396 = vunpack.c.h.b16 %v349
        %v1397 = vunpack.c.l.b16 %v350
        %v1398 = vunpack.c.h.b16 %v350
        %v1399 = vunpack.c.l.b16 %v351
        %v1400 = vunpack.c.h.b16 %v351
        %v1401 = vunpack.c.l.b16 %v352
        %v1402 = vunpack.c.h.b16 %v352
        %v1403 = vunpack.c.l.b16 %v353
        %v1404 = vunpack.c.h.b16 %v353
        %v1405 = vunpack.c.l.b16 %v354
        %v1406 = vunpack.c.h.b16 %v354
        %v1407 = vunpack.c.l.b16 %v355
        %v1408 = vunpack.c.h.b16 %v355
        %v1409 = vunpack.c.l.b16 %v356
        %v1410 = vunpack.c.h.b16 %v356
        %v1411 = vunpack.c.l.b16 %v357
        %v1412 = vunpack.c.h.b16 %v357
        %v1413 = vunpack.c.l.b16 %v358
        %v1414 = vunpack.c.h.b16 %v358
        %v1415 = vunpack.c.l.b16 %v359
        %v1416 = vunpack.c.h.b16 %v359
        %v1417 = vunpack.c.l.b16 %v360
        %v1418 = vunpack.c.h.b16 %v360
        %v1419 = vunpack.c.l.b16 %v361
        %v1420 = vunpack.c.h.b16 %v361
        %v1421 = vunpack.c.l.b16 %v362
        %v1422 = vunpack.c.h.b16 %v362
        %v1423 = vunpack.c.l.b16 %v363
        %v1424 = vunpack.c.h.b16 %v363
        %v1425 = vunpack.c.l.b16 %v364
        %v1426 = vunpack.c.h.b16 %v364
        %v1427 = vunpack.c.l.b16 %v365
        %v1428 = vunpack.c.h.b16 %v365
        %v1429 = vunpack.c.l.b16 %v366
        %v1430 = vunpack.c.h.b16 %v366
        %v1431 = vunpack.c.l.b16 %v367
        %v1432 = vunpack.c.h.b16 %v367
        %v1433 = vunpack.c.l.b16 %v368
        %v1434 = vunpack.c.h.b16 %v368
        %v1435 = vunpack.c.l.b16 %v369
        %v1436 = vunpack.c.h.b16 %v369
        %v1437 = vunpack.c.l.b16 %v370
        %v1438 = vunpack.c.h.b16 %v370
        %v1439 = vunpack.c.l.b16 %v371
        %v1440 = vunpack.c.h.b16 %v371
        %v1441 = vunpack.c.l.b16 %v372
        %v1442 = vunpack.c.h.b16 %v372
        %v1443 = vunpack.c.l.b16 %v373
        %v1444 = vunpack.c.h.b16 %v373
        %v1445 = vunpack.c.l.b16 %v374
        %v1446 = vunpack.c.h.b16 %v374
        %v1447 = vunpack.c.l.b16 %v375
        %v1448 = vunpack.c.h.b16 %v375
        %v1449 = vunpack.c.l.b16 %v376
        %v1450 = vunpack.c.h.b16 %v376
        %v1451 = vunpack.c.l.b16 %v377
        %v1452 = vunpack.c.h.b16 %v377
        %v1453 = vunpack.c.l.b16 %v378
        %v1454 = vunpack.c.h.b16 %v378
        %v1455 = vunpack.c.l.b16 %v379
        %v1456 = vunpack.c.h.b16 %v379
        %v1457 = vunpack.c.l.b16 %v380
        %v1458 = vunpack.c.h.b16 %v380
        %v1459 = vunpack.c.l.b16 %v381
        %v1460 = vunpack.c.h.b16 %v381
        %v1461 = vunpack.c.l.b16 %v382
        %v1462 = vunpack.c.h.b16 %v382
        %v1463 = vunpack.c.l.b16 %v383
        %v1464 = vunpack.c.h.b16 %v383
        %v1465 = vunpack.c.l.b16 %v384
        %v1466 = vunpack.c.h.b16 %v384
        %v1467 = vunpack.c.l.b16 %v385
        %v1468 = vunpack.c.h.b16 %v385
        %v1469 = vunpack.c.l.b16 %v386
        %v1470 = vunpack.c.h.b16 %v386
        %v1471 = vunpack.c.l.b16 %v387
        %v1472 = vunpack.c.h.b16 %v387
        %v1473 = vunpack.c.l.b16 %v388
        %v1474 = vunpack.c.h.b16 %v388
        %v1475 = vunpack.c.l.b16 %v389
        %v1476 = vunpack.c.h.b16 %v389
        %v1477 = vunpack.c.l.b16 %v390
        %v1478 = vunpack.c.h.b16 %v390
        %v1479 = vunpack.c.l.b16 %v391
        %v1480 = vunpack.c.h.b16 %v391
        %v1481 = vunpack.c.l.b16 %v392
        %v1482 = vunpack.c.h.b16 %v392
        %v1483 = vunpack.c.l.b16 %v393
        %v1484 = vunpack.c.h.b16 %v393
        %v1485 = vunpack.c.l.b16 %v394
        %v1486 = vunpack.c.h.b16 %v394
        %v1487 = vunpack.c.l.b16 %v395
        %v1488 = vunpack.c.h.b16 %v395
        %v1489 = vunpack.c.l.b16 %v396
        %v1490 = vunpack.c.h.b16 %v396
        %v1491 = vunpack.c.l.b16 %v397
        %v1492 = vunpack.c.h.b16 %v397
        %v1493 = vunpack.c.l.b16 %v398
        %v1494 = vunpack.c.h.b16 %v398
        %v1495 = vunpack.c.l.b16 %v399
        %v1496 = vunpack.c.h.b16 %v399
        %v1497 = vunpack.c.l.b16 %v400
        %v1498 = vunpack.c.h.b16 %v400
        %v1499 = vunpack.c.l.b16 %v401
        %v1500 = vunpack.c.h.b16 %v401
        %v1501 = vunpack.c.l.b16 %v402
        %v1502 = vunpack.c.h.b16 %v402
        %v1503 = vunpack.c.l.b16 %v403
        %v1504 = vunpack.c.h.b16 %v403
        %v1505 = vunpack.c.l.b16 %v404
        %v1506 = vunpack.c.h.b16 %v404
        %v1507 = vunpack.c.l.b16 %v405
        %v1508 = vunpack.c.h.b16 %v405
        %v1509 = vunpack.c.l.b16 %v406
        %v1510 = vunpack.c.h.b16 %v406
        %v1511 = vunpack.c.l.b16 %v407
        %v1512 = vunpack.c.h.b16 %v407
        %v1513 = vunpack.c.l.b16 %v408
        %v1514 = vunpack.c.h.b16 %v408
        %v1515 = vunpack.c.l.b16 %v409
        %v1516 = vunpack.c.h.b16 %v409
        %v1517 = vunpack.c.l.b16 %v410
        %v1518 = vunpack.c.h.b16 %v410
        %v1519 = vunpack.c.l.b16 %v411
        %v1520 = vunpack.c.h.b16 %v411
        %v1521 = vunpack.c.l.b16 %v412
        %v1522 = vunpack.c.h.b16 %v412
        %v1523 = vunpack.c.l.b16 %v413
        %v1524 = vunpack.c.h.b16 %v413
        %v1525 = vunpack.c.l.b16 %v414
        %v1526 = vunpack.c.h.b16 %v414
        %v1527 = vunpack.c.l.b16 %v415
        %v1528 = vunpack.c.h.b16 %v415
        %v1529 = vunpack.c.l.b16 %v416
        %v1530 = vunpack.c.h.b16 %v416
        %v1531 = vunpack.c.l.b16 %v417
        %v1532 = vunpack.c.h.b16 %v417
        %v1533 = vunpack.c.l.b16 %v418
        %v1534 = vunpack.c.h.b16 %v418
        %v1535 = vunpack.c.l.b16 %v419
        %v1536 = vunpack.c.h.b16 %v419
        %v1537 = vunpack.c.l.b16 %v420
        %v1538 = vunpack.c.h.b16 %v420
        %v1539 = vunpack.c.l.b16 %v421
        %v1540 = vunpack.c.h.b16 %v421
        %v1541 = vunpack.c.l.b16 %v422
        %v1542 = vunpack.c.h.b16 %v422
        %v1543 = vunpack.c.l.b16 %v423
        %v1544 = vunpack.c.h.b16 %v423
        %v1545 = vunpack.c.l.b16 %v424
        %v1546 = vunpack.c.h.b16 %v424
        %v1547 = vunpack.c.l.b16 %v425
        %v1548 = vunpack.c.h.b16 %v425
        %v1549 = vunpack.c.l.b16 %v426
        %v1550 = vunpack.c.h.b16 %v426
        %v1551 = vunpack.c.l.b16 %v427
        %v1552 = vunpack.c.h.b16 %v427
        %v1553 = vunpack.c.l.b16 %v428
        %v1554 = vunpack.c.h.b16 %v428
        %v1555 = vunpack.c.l.b16 %v429
        %v1556 = vunpack.c.h.b16 %v429
        %v1557 = vunpack.c.l.b16 %v430
        %v1558 = vunpack.c.h.b16 %v430
        %v1559 = vunpack.c.l.b16 %v431
        %v1560 = vunpack.c.h.b16 %v431
        %v1561 = vunpack.c.l.b16 %v432
        %v1562 = vunpack.c.h.b16 %v432
        %v1563 = vunpack.c.l.b16 %v433
        %v1564 = vunpack.c.h.b16 %v433
        %v1565 = vunpack.c.l.b16 %v434
        %v1566 = vunpack.c.h.b16 %v434
        %v1567 = vunpack.c.l.b16 %v435
        %v1568 = vunpack.c.h.b16 %v435
        %v1569 = vunpack.c.l.b16 %v436
        %v1570 = vunpack.c.h.b16 %v436
        %v1571 = vunpack.c.l.b16 %v437
        %v1572 = vunpack.c.h.b16 %v437
        %v1573 = vunpack.c.l.b16 %v438
        %v1574 = vunpack.c.h.b16 %v438
        %v1575 = vunpack.c.l.b16 %v439
        %v1576 = vunpack.c.h.b16 %v439
        %v1577 = vunpack.c.l.b16 %v440
        %v1578 = vunpack.c.h.b16 %v440
        %v1579 = vunpack.c.l.b16 %v441
        %v1580 = vunpack.c.h.b16 %v441
        %v1581 = vunpack.c.l.b16 %v442
        %v1582 = vunpack.c.h.b16 %v442
        %v1583 = vunpack.c.l.b16 %v443
        %v1584 = vunpack.c.h.b16 %v443
        %v1585 = vunpack.c.l.b16 %v444
        %v1586 = vunpack.c.h.b16 %v444
        %v1587 = vunpack.c.l.b16 %v445
        %v1588 = vunpack.c.h.b16 %v445
        %v1589 = vunpack.c.l.b16 %v446
        %v1590 = vunpack.c.h.b16 %v446
        %v1591 = vunpack.c.l.b16 %v447
        %v1592 = vunpack.c.h.b16 %v447
        %v1593 = vunpack.c.l.b16 %v448
        %v1594 = vunpack.c.h.b16 %v448
        %v1595 = vunpack.c.l.b16 %v449
        %v1596 = vunpack.c.h.b16 %v449
        %v1597 = vunpack.c.l.b16 %v450
        %v1598 = vunpack.c.h.b16 %v450
        %v1599 = vunpack.c.l.b16 %v451
        %v1600 = vunpack.c.h.b16 %v451
        %v1601 = vunpack.c.l.b16 %v452
        %v1602 = vunpack.c.h.b16 %v452
        %v1603 = vunpack.c.l.b16 %v453
        %v1604 = vunpack.c.h.b16 %v453
        %v1605 = vunpack.c.l.b16 %v454
        %v1606 = vunpack.c.h.b16 %v454
        %v1607 = vunpack.c.l.b16 %v455
        %v1608 = vunpack.c.h.b16 %v455
        %v1609 = vunpack.c.l.b16 %v456
        %v1610 = vunpack.c.h.b16 %v456
        %v1611 = vunpack.c.l.b16 %v457
        %v1612 = vunpack.c.h.b16 %v457
        %v1613 = vunpack.c.l.b16 %v458
        %v1614 = vunpack.c.h.b16 %v458
        %v1615 = vunpack.c.l.b16 %v459
        %v1616 = vunpack.c.h.b16 %v459
        %v1617 = vunpack.c.l.b16 %v460
        %v1618 = vunpack.c.h.b16 %v460
        %v1619 = vunpack.c.l.b16 %v461
        %v1620 = vunpack.c.h.b16 %v461
        %v1621 = vunpack.c.l.b16 %v462
        %v1622 = vunpack.c.h.b16 %v462
        %v1623 = vunpack.c.l.b16 %v463
        %v1624 = vunpack.c.h.b16 %v463
        %v1625 = vunpack.c.l.b16 %v464
        %v1626 = vunpack.c.h.b16 %v464
        %v1627 = vunpack.c.l.b16 %v465
        %v1628 = vunpack.c.h.b16 %v465
        %v1629 = vunpack.c.l.b16 %v466
        %v1630 = vunpack.c.h.b16 %v466
        %v1631 = vunpack.c.l.b16 %v467
        %v1632 = vunpack.c.h.b16 %v467
        %v1633 = vunpack.c.l.b16 %v468
        %v1634 = vunpack.c.h.b16 %v468
        %v1635 = vunpack.c.l.b16 %v469
        %v1636 = vunpack.c.h.b16 %v469
        %v1637 = vunpack.c.l.b16 %v470
        %v1638 = vunpack.c.h.b16 %v470
        %v1639 = vunpack.c.l.b16 %v471
        %v1640 = vunpack.c.h.b16 %v471
        %v1641 = vunpack.c.l.b16 %v472
        %v1642 = vunpack.c.h.b16 %v472
        %v1643 = vunpack.c.l.b16 %v473
        %v1644 = vunpack.c.h.b16 %v473
        %v1645 = vunpack.c.l.b16 %v474
        %v1646 = vunpack.c.h.b16 %v474
        %v1647 = vunpack.c.l.b16 %v475
        %v1648 = vunpack.c.h.b16 %v475
        %v1649 = vunpack.c.l.b16 %v476
        %v1650 = vunpack.c.h.b16 %v476
        %v1651 = vunpack.c.l.b16 %v477
        %v1652 = vunpack.c.h.b16 %v477
        %v1653 = vunpack.c.l.b16 %v478
        %v1654 = vunpack.c.h.b16 %v478
        %v1655 = vunpack.c.l.b16 %v479
        %v1656 = vunpack.c.h.b16 %v479
        %v1657 = vunpack.c.l.b16 %v480
        %v1658 = vunpack.c.h.b16 %v480
        %v1659 = vunpack.c.l.b16 %v481
        %v1660 = vunpack.c.h.b16 %v481
        %v1661 = vunpack.c.l.b16 %v482
        %v1662 = vunpack.c.h.b16 %v482
        %v1663 = vunpack.c.l.b16 %v483
        %v1664 = vunpack.c.h.b16 %v483
        %v1665 = vunpack.c.l.b16 %v484
        %v1666 = vunpack.c.h.b16 %v484
        %v1667 = vunpack.c.l.b16 %v485
        %v1668 = vunpack.c.h.b16 %v485
        %v1669 = vunpack.c.l.b16 %v486
        %v1670 = vunpack.c.h.b16 %v486
        %v1671 = vunpack.c.l.b16 %v487
        %v1672 = vunpack.c.h.b16 %v487
        %v1673 = vunpack.c.l.b16 %v488
        %v1674 = vunpack.c.h.b16 %v488
        %v1675 = vunpack.c.l.b16 %v489
        %v1676 = vunpack.c.h.b16 %v489
        %v1677 = vunpack.c.l.b16 %v490
        %v1678 = vunpack.c.h.b16 %v490
        %v1679 = vunpack.c.l.b16 %v491
        %v1680 = vunpack.c.h.b16 %v491
        %v1681 = vunpack.c.l.b16 %v492
        %v1682 = vunpack.c.h.b16 %v492
        %v1683 = vunpack.c.l.b16 %v493
        %v1684 = vunpack.c.h.b16 %v493
        %v1685 = vunpack.c.l.b16 %v494
        %v1686 = vunpack.c.h.b16 %v494
        %v1687 = vunpack.c.l.b16 %v495
        %v1688 = vunpack.c.h.b16 %v495
        %v1689 = vunpack.c.l.b16 %v496
        %v1690 = vunpack.c.h.b16 %v496
        %v1691 = vunpack.c.l.b16 %v497
        %v1692 = vunpack.c.h.b16 %v497
        %v1693 = vunpack.c.l.b16 %v498
        %v1694 = vunpack.c.h.b16 %v498
        %v1695 = vunpack.c.l.b16 %v499
        %v1696 = vunpack.c.h.b16 %v499
        %v1697 = vunpack.c.l.b16 %v500
        %v1698 = vunpack.c.h.b16 %v500
        %v1699 = vunpack.c.l.b16 %v501
        %v1700 = vunpack.c.h.b16 %v501
        %v1701 = vunpack.c.l.b16 %v502
        %v1702 = vunpack.c.h.b16 %v502
        %v1703 = vunpack.c.l.b16 %v503
        %v1704 = vunpack.c.h.b16 %v503
        %v1705 = vunpack.c.l.b16 %v504
        %v1706 = vunpack.c.h.b16 %v504
        %v1707 = vunpack.c.l.b16 %v505
        %v1708 = vunpack.c.h.b16 %v505
        %v1709 = vunpack.c.l.b16 %v506
        %v1710 = vunpack.c.h.b16 %v506
        %v1711 = vunpack.c.l.b16 %v507
        %v1712 = vunpack.c.h.b16 %v507
        %v1713 = vunpack.c.l.b16 %v508
        %v1714 = vunpack.c.h.b16 %v508
        %v1715 = vunpack.c.l.b16 %v509
        %v1716 = vunpack.c.h.b16 %v509
        %v1717 = vunpack.c.l.b16 %v510
        %v1718 = vunpack.c.h.b16 %v510
        %v1719 = vunpack.c.l.b16 %v511
        %v1720 = vunpack.c.h.b16 %v511
        %v1721 = vunpack.c.l.b16 %v512
        %v1722 = vunpack.c.h.b16 %v512
        %v1723 = vunpack.c.l.b16 %v513
        %v1724 = vunpack.c.h.b16 %v513
        %v1725 = vunpack.c.l.b16 %v514
        %v1726 = vunpack.c.h.b16 %v514
        %v1727 = vunpack.c.l.b16 %v515
        %v1728 = vunpack.c.h.b16 %v515
        %v1729 = vunpack.c.l.b16 %v516
        %v1730 = vunpack.c.h.b16 %v516
        %v1731 = vunpack.c.l.b16 %v517
        %v1732 = vunpack.c.h.b16 %v517
        %v1733 = vunpack.c.l.b16 %v518
        %v1734 = vunpack.c.h.b16 %v518
        %v1735 = vunpack.c.l.b16 %v519
        %v1736 = vunpack.c.h.b16 %v519
        %v1737 = vunpack.c.l.b16 %v520
        %v1738 = vunpack.c.h.b16 %v520
        %v1739 = vunpack.c.l.b16 %v521
        %v1740 = vunpack.c.h.b16 %v521
        %v1741 = vunpack.c.l.b16 %v522
        %v1742 = vunpack.c.h.b16 %v522
        %v1743 = vunpack.c.l.b16 %v523
        %v1744 = vunpack.c.h.b16 %v523
        %v1745 = vunpack.c.l.b16 %v524
        %v1746 = vunpack.c.h.b16 %v524
        %v1747 = vunpack.c.l.b16 %v525
        %v1748 = vunpack.c.h.b16 %v525
        %v1749 = vunpack.c.l.b16 %v526
        %v1750 = vunpack.c.h.b16 %v526
        %v1751 = vunpack.c.l.b16 %v527
        %v1752 = vunpack.c.h.b16 %v527
        %v1753 = vunpack.c.l.b16 %v528
        %v1754 = vunpack.c.h.b16 %v528
        %v1755 = vunpack.c.l.b16 %v529
        %v1756 = vunpack.c.h.b16 %v529
        %v1757 = vunpack.c.l.b16 %v530
        %v1758 = vunpack.c.h.b16 %v530
        %v1759 = vunpack.c.l.b16 %v531
        %v1760 = vunpack.c.h.b16 %v531
        %v1761 = vunpack.c.l.b16 %v532
        %v1762 = vunpack.c.h.b16 %v532
        %v1763 = vunpack.c.l.b16 %v533
        %v1764 = vunpack.c.h.b16 %v533
        %v1765 = vunpack.c.l.b16 %v534
        %v1766 = vunpack.c.h.b16 %v534
        %v1767 = vunpack.c.l.b16 %v535
        %v1768 = vunpack.c.h.b16 %v535
        %v1769 = vunpack.c.l.b16 %v536
        %v1770 = vunpack.c.h.b16 %v536
        %v1771 = vunpack.c.l.b16 %v537
        %v1772 = vunpack.c.h.b16 %v537
        %v1773 = vunpack.c.l.b16 %v538
        %v1774 = vunpack.c.h.b16 %v538
        %v1775 = vunpack.c.l.b16 %v539
        %v1776 = vunpack.c.h.b16 %v539
        %v1777 = vunpack.c.l.b16 %v540
        %v1778 = vunpack.c.h.b16 %v540
        %v1779 = vunpack.c.l.b16 %v541
        %v1780 = vunpack.c.h.b16 %v541
        %v1781 = vunpack.c.l.b16 %v542
        %v1782 = vunpack.c.h.b16 %v542
        %v1783 = vunpack.c.l.b16 %v543
        %v1784 = vunpack.c.h.b16 %v543
        %v1785 = vunpack.c.l.b16 %v544
        %v1786 = vunpack.c.h.b16 %v544
        %v1787 = vunpack.c.l.b16 %v545
        %v1788 = vunpack.c.h.b16 %v545
        %v1789 = vunpack.c.l.b16 %v546
        %v1790 = vunpack.c.h.b16 %v546
        %v1791 = vunpack.c.l.b16 %v547
        %v1792 = vunpack.c.h.b16 %v547
        %v1793 = vunpack.c.l.b16 %v548
        %v1794 = vunpack.c.h.b16 %v548
        %v1795 = vunpack.c.l.b16 %v549
        %v1796 = vunpack.c.h.b16 %v549
        %v1797 = vunpack.c.l.b16 %v550
        %v1798 = vunpack.c.h.b16 %v550
        %v1799 = vunpack.c.l.b16 %v551
        %v1800 = vunpack.c.h.b16 %v551
        %v1801 = vunpack.c.l.b16 %v552
        %v1802 = vunpack.c.h.b16 %v552
        %v1803 = vunpack.c.l.b16 %v553
        %v1804 = vunpack.c.h.b16 %v553
        %v1805 = vunpack.c.l.b16 %v554
        %v1806 = vunpack.c.h.b16 %v554
        %v1807 = vunpack.c.l.b16 %v555
        %v1808 = vunpack.c.h.b16 %v555
        %v1809 = vunpack.c.l.b16 %v556
        %v1810 = vunpack.c.h.b16 %v556
        %v1811 = vunpack.c.l.b16 %v557
        %v1812 = vunpack.c.h.b16 %v557
        %v1813 = vunpack.c.l.b16 %v558
        %v1814 = vunpack.c.h.b16 %v558
        %v1815 = vunpack.c.l.b16 %v559
        %v1816 = vunpack.c.h.b16 %v559
        %v1817 = vunpack.c.l.b16 %v560
        %v1818 = vunpack.c.h.b16 %v560
        %v1819 = vunpack.c.l.b16 %v561
        %v1820 = vunpack.c.h.b16 %v561
        %v1821 = vunpack.c.l.b16 %v562
        %v1822 = vunpack.c.h.b16 %v562
        %v1823 = vunpack.c.l.b16 %v563
        %v1824 = vunpack.c.h.b16 %v563
        %v1825 = vunpack.c.l.b16 %v564
        %v1826 = vunpack.c.h.b16 %v564
        %v1827 = vunpack.c.l.b16 %v565
        %v1828 = vunpack.c.h.b16 %v565
        %v1829 = vunpack.c.l.b16 %v566
        %v1830 = vunpack.c.h.b16 %v566
        %v1831 = vunpack.c.l.b16 %v567
        %v1832 = vunpack.c.h.b16 %v567
        %v1833 = vunpack.c.l.b16 %v568
        %v1834 = vunpack.c.h.b16 %v568
        %v1835 = vunpack.c.l.b16 %v569
        %v1836 = vunpack.c.h.b16 %v569
        %v1837 = vunpack.c.l.b16 %v570
        %v1838 = vunpack.c.h.b16 %v570
        %v1839 = vunpack.c.l.b16 %v571
        %v1840 = vunpack.c.h.b16 %v571
        %v1841 = vunpack.c.l.b16 %v572
        %v1842 = vunpack.c.h.b16 %v572
        %v1843 = vunpack.c.l.b16 %v573
        %v1844 = vunpack.c.h.b16 %v573
        %v1845 = vunpack.c.l.b16 %v574
        %v1846 = vunpack.c.h.b16 %v574
        %v1847 = vunpack.c.l.b16 %v575
        %v1848 = vunpack.c.h.b16 %v575
        %v1849 = vunpack.c.l.b16 %v576
        %v1850 = vunpack.c.h.b16 %v576
        %v1851 = vunpack.c.l.b16 %v577
        %v1852 = vunpack.c.h.b16 %v577
        %v1853 = vunpack.c.l.b16 %v578
        %v1854 = vunpack.c.h.b16 %v578
        %v1855 = vunpack.c.l.b16 %v579
        %v1856 = vunpack.c.h.b16 %v579
        %v1857 = vunpack.c.l.b16 %v580
        %v1858 = vunpack.c.h.b16 %v580
        %v1859 = vunpack.c.l.b16 %v581
        %v1860 = vunpack.c.h.b16 %v581
        %v1861 = vunpack.c.l.b16 %v582
        %v1862 = vunpack.c.h.b16 %v582
        %v1863 = vunpack.c.l.b16 %v583
        %v1864 = vunpack.c.h.b16 %v583
        %v1865 = vunpack.c.l.b16 %v584
        %v1866 = vunpack.c.h.b16 %v584
        %v1867 = vunpack.c.l.b16 %v585
        %v1868 = vunpack.c.h.b16 %v585
        %v1869 = vunpack.c.l.b16 %v586
        %v1870 = vunpack.c.h.b16 %v586
        %v1871 = vunpack.c.l.b16 %v587
        %v1872 = vunpack.c.h.b16 %v587
        %v1873 = vunpack.c.l.b16 %v588
        %v1874 = vunpack.c.h.b16 %v588
        %v1875 = vunpack.c.l.b16 %v589
        %v1876 = vunpack.c.h.b16 %v589
        %v1877 = vunpack.c.l.b16 %v590
        %v1878 = vunpack.c.h.b16 %v590
        %v1879 = vunpack.c.l.b16 %v591
        %v1880 = vunpack.c.h.b16 %v591
        %v1881 = vunpack.c.l.b16 %v592
        %v1882 = vunpack.c.h.b16 %v592
        %v1883 = vunpack.c.l.b16 %v593
        %v1884 = vunpack.c.h.b16 %v593
        %v1885 = vunpack.c.l.b16 %v594
        %v1886 = vunpack.c.h.b16 %v594
        %v1887 = vunpack.c.l.b16 %v595
        %v1888 = vunpack.c.h.b16 %v595
        %v1889 = vunpack.c.l.b16 %v596
        %v1890 = vunpack.c.h.b16 %v596
        %v1891 = vunpack.c.l.b16 %v597
        %v1892 = vunpack.c.h.b16 %v597
        %v1893 = vunpack.c.l.b16 %v598
        %v1894 = vunpack.c.h.b16 %v598
        %v1895 = vunpack.c.l.b16 %v599
        %v1896 = vunpack.c.h.b16 %v599
        %v1897 = vunpack.c.l.b16 %v600
        %v1898 = vunpack.c.h.b16 %v600
        %v1899 = vunpack.c.l.b16 %v601
        %v1900 = vunpack.c.h.b16 %v601
        %v1901 = vunpack.c.l.b16 %v602
        %v1902 = vunpack.c.h.b16 %v602
        %v1903 = vunpack.c.l.b16 %v603
        %v1904 = vunpack.c.h.b16 %v603
        %v1905 = vunpack.c.l.b16 %v604
        %v1906 = vunpack.c.h.b16 %v604
        %v1907 = vunpack.c.l.b16 %v605
        %v1908 = vunpack.c.h.b16 %v605
        %v1909 = vunpack.c.l.b16 %v606
        %v1910 = vunpack.c.h.b16 %v606
        %v1911 = vunpack.c.l.b16 %v607
        %v1912 = vunpack.c.h.b16 %v607
        %v1913 = vunpack.c.l.b16 %v608
        %v1914 = vunpack.c.h.b16 %v608
        %v1915 = vunpack.c.l.b16 %v609
        %v1916 = vunpack.c.h.b16 %v609
        %v1917 = vunpack.c.l.b16 %v610
        %v1918 = vunpack.c.h.b16 %v610
        %v1919 = vunpack.c.l.b16 %v611
        %v1920 = vunpack.c.h.b16 %v611
        %v1921 = vunpack.c.l.b16 %v612
        %v1922 = vunpack.c.h.b16 %v612
        %v1923 = vunpack.c.l.b16 %v613
        %v1924 = vunpack.c.h.b16 %v613
        %v1925 = vunpack.c.l.b16 %v614
        %v1926 = vunpack.c.h.b16 %v614
        %v1927 = vunpack.c.l.b16 %v615
        %v1928 = vunpack.c.h.b16 %v615
        %v1929 = vunpack.c.l.b16 %v616
        %v1930 = vunpack.c.h.b16 %v616
        %v1931 = vunpack.c.l.b16 %v617
        %v1932 = vunpack.c.h.b16 %v617
        %v1933 = vunpack.c.l.b16 %v618
        %v1934 = vunpack.c.h.b16 %v618
        %v1935 = vunpack.c.l.b16 %v619
        %v1936 = vunpack.c.h.b16 %v619
        %v1937 = vunpack.c.l.b16 %v620
        %v1938 = vunpack.c.h.b16 %v620
        %v1939 = vunpack.c.l.b16 %v621
        %v1940 = vunpack.c.h.b16 %v621
        %v1941 = vunpack.c.l.b16 %v622
        %v1942 = vunpack.c.h.b16 %v622
        %v1943 = vunpack.c.l.b16 %v623
        %v1944 = vunpack.c.h.b16 %v623
        %v1945 = vunpack.c.l.b16 %v624
        %v1946 = vunpack.c.h.b16 %v624
        %v1947 = vunpack.c.l.b16 %v625
        %v1948 = vunpack.c.h.b16 %v625
        %v1949 = vunpack.c.l.b16 %v626
        %v1950 = vunpack.c.h.b16 %v626
        %v1951 = vunpack.c.l.b16 %v627
        %v1952 = vunpack.c.h.b16 %v627
        %v1953 = vunpack.c.l.b16 %v628
        %v1954 = vunpack.c.h.b16 %v628
        %v1955 = vunpack.c.l.b16 %v629
        %v1956 = vunpack.c.h.b16 %v629
        %v1957 = vunpack.c.l.b16 %v630
        %v1958 = vunpack.c.h.b16 %v630
        %v1959 = vunpack.c.l.b16 %v631
        %v1960 = vunpack.c.h.b16 %v631
        %v1961 = vunpack.c.l.b16 %v632
        %v1962 = vunpack.c.h.b16 %v632
        %v1963 = vunpack.c.l.b16 %v633
        %v1964 = vunpack.c.h.b16 %v633
        %v1965 = vunpack.c.l.b16 %v634
        %v1966 = vunpack.c.h.b16 %v634
        %v1967 = vunpack.c.l.b16 %v635
        %v1968 = vunpack.c.h.b16 %v635
        %v1969 = vunpack.c.l.b16 %v636
        %v1970 = vunpack.c.h.b16 %v636
        %v1971 = vunpack.c.l.b16 %v637
        %v1972 = vunpack.c.h.b16 %v637
        %v1973 = vunpack.c.l.b16 %v638
        %v1974 = vunpack.c.h.b16 %v638
        %v1975 = vunpack.c.l.b16 %v639
        %v1976 = vunpack.c.h.b16 %v639
        %v1977 = vunpack.c.l.b16 %v640
        %v1978 = vunpack.c.h.b16 %v640
        %v1979 = vunpack.c.l.b16 %v641
        %v1980 = vunpack.c.h.b16 %v641
        %v1981 = vunpack.c.l.b16 %v642
        %v1982 = vunpack.c.h.b16 %v642
        %v1983 = vunpack.c.l.b16 %v643
        %v1984 = vunpack.c.h.b16 %v643
        %v1985 = vunpack.c.l.b16 %v644
        %v1986 = vunpack.c.h.b16 %v644
        %v1987 = vunpack.c.l.b16 %v645
        %v1988 = vunpack.c.h.b16 %v645
        %v1989 = vunpack.c.l.b16 %v646
        %v1990 = vunpack.c.h.b16 %v646
        %v1991 = vunpack.c.l.b16 %v647
        %v1992 = vunpack.c.h.b16 %v647
        %v1993 = vunpack.c.l.b16 %v648
        %v1994 = vunpack.c.h.b16 %v648
        %v1995 = vunpack.c.l.b16 %v649
        %v1996 = vunpack.c.h.b16 %v649
        %v1997 = vunpack.c.l.b16 %v650
        %v1998 = vunpack.c.h.b16 %v650
        %v1999 = vunpack.c.l.b16 %v651
        %v2000 = vunpack.c.h.b16 %v651
        %v2001 = vunpack.c.l.b16 %v652
        %v2002 = vunpack.c.h.b16 %v652
        %v2003 = vunpack.c.l.b16 %v653
        %v2004 = vunpack.c.h.b16 %v653
        %v2005 = vunpack.c.l.b16 %v654
        %v2006 = vunpack.c.h.b16 %v654
        %v2007 = vunpack.c.l.b16 %v655
        %v2008 = vunpack.c.h.b16 %v655
        %v2009 = vunpack.c.l.b16 %v656
        %v2010 = vunpack.c.h.b16 %v656
        %v2011 = vunpack.c.l.b16 %v657
        %v2012 = vunpack.c.h.b16 %v657
        %v2013 = vunpack.c.l.b16 %v658
        %v2014 = vunpack.c.h.b16 %v658
        %v2015 = vunpack.c.l.b16 %v659
        %v2016 = vunpack.c.h.b16 %v659
        %v2017 = vunpack.c.l.b16 %v660
        %v2018 = vunpack.c.h.b16 %v660
        %v2019 = vunpack.c.l.b16 %v661
        %v2020 = vunpack.c.h.b16 %v661
        %v2021 = vunpack.c.l.b16 %v662
        %v2022 = vunpack.c.h.b16 %v662
        %v2023 = vunpack.c.l.b16 %v663
        %v2024 = vunpack.c.h.b16 %v663
        %v2025 = vunpack.c.l.b16 %v664
        %v2026 = vunpack.c.h.b16 %v664
        %v2027 = vpack.c.b16 %v1283, %v1259
        %v2028 = vpack.c.b16 %v1284, %v1260
        %v2029 = vpack.c.b16 %v1285, %v1261
        %v2030 = vpack.c.b16 %v1286, %v1262
        %v2031 = vpack.c.b16 %v1287, %v1263
        %v2032 = vpack.c.b16 %v1288, %v1264
        %v2033 = vpack.c.b16 %v1289, %v1265
        %v2034 = vpack.c.b16 %v1290, %v1266
        %v2035 = vpack.c.b16 %v1291, %v1267
        %v2036 = vpack.c.b16 %v1292, %v1268
        %v2037 = vpack.c.b16 %v1293, %v1269
        %v2038 = vpack.c.b16 %v1294, %v1270
        %v2039 = vpack.c.b16 %v1295, %v1271
        %v2040 = vpack.c.b16 %v1296, %v1272
        %v2041 = vpack.c.b16 %v1297, %v1273
        %v2042 = vpack.c.b16 %v1298, %v1274
        %v2043 = vpack.c.b16 %v1299, %v1275
        %v2044 = vpack.c.b16 %v1300, %v1276
        %v2045 = vpack.c.b16 %v1301, %v1277
        %v2046 = vpack.c.b16 %v1302, %v1278
        %v2047 = vpack.c.b16 %v1303, %v1279
        %v2048 = vpack.c.b16 %v1304, %v1280
        %v2049 = vpack.c.b16 %v1305, %v1281
        %v2050 = vpack.c.b16 %v1306, %v1282
        %v2051 = vpack.c.b16 %v1331, %v1307
        %v2052 = vpack.c.b16 %v1332, %v1308
        %v2053 = vpack.c.b16 %v1333, %v1309
        %v2054 = vpack.c.b16 %v1334, %v1310
        %v2055 = vpack.c.b16 %v1335, %v1311
        %v2056 = vpack.c.b16 %v1336, %v1312
        %v2057 = vpack.c.b16 %v1337, %v1313
        %v2058 = vpack.c.b16 %v1338, %v1314
        %v2059 = vpack.c.b16 %v1339, %v1315
        %v2060 = vpack.c.b16 %v1340, %v1316
        %v2061 = vpack.c.b16 %v1341, %v1317
        %v2062 = vpack.c.b16 %v1342, %v1318
        %v2063 = vpack.c.b16 %v1343, %v1319
        %v2064 = vpack.c.b16 %v1344, %v1320
        %v2065 = vpack.c.b16 %v1345, %v1321
        %v2066 = vpack.c.b16 %v1346, %v1322
        %v2067 = vpack.c.b16 %v1347, %v1323
        %v2068 = vpack.c.b16 %v1348, %v1324
        %v2069 = vpack.c.b16 %v1349, %v1325
        %v2070 = vpack.c.b16 %v1350, %v1326
        %v2071 = vpack.c.b16 %v1351, %v1327
        %v2072 = vpack.c.b16 %v1352, %v1328
        %v2073 = vpack.c.b16 %v1353, %v1329
        %v2074 = vpack.c.b16 %v1354, %v1330
        %v2075 = vpack.c.b16 %v1379, %v1355
        %v2076 = vpack.c.b16 %v1380, %v1356
        %v2077 = vpack.c.b16 %v1381, %v1357
        %v2078 = vpack.c.b16 %v1382, %v1358
        %v2079 = vpack.c.b16 %v1383, %v1359
        %v2080 = vpack.c.b16 %v1384, %v1360
        %v2081 = vpack.c.b16 %v1385, %v1361
        %v2082 = vpack.c.b16 %v1386, %v1362
        %v2083 = vpack.c.b16 %v1387, %v1363
        %v2084 = vpack.c.b16 %v1388, %v1364
        %v2085 = vpack.c.b16 %v1389, %v1365
        %v2086 = vpack.c.b16 %v1390, %v1366
        %v2087 = vpack.c.b16 %v1391, %v1367
        %v2088 = vpack.c.b16 %v1392, %v1368
        %v2089 = vpack.c.b16 %v1393, %v1369
        %v2090 = vpack.c.b16 %v1394, %v1370
        %v2091 = vpack.c.b16 %v1395, %v1371
        %v2092 = vpack.c.b16 %v1396, %v1372
        %v2093 = vpack.c.b16 %v1397, %v1373
        %v2094 = vpack.c.b16 %v1398, %v1374
        %v2095 = vpack.c.b16 %v1399, %v1375
        %v2096 = vpack.c.b16 %v1400, %v1376
        %v2097 = vpack.c.b16 %v1401, %v1377
        %v2098 = vpack.c.b16 %v1402, %v1378
        %v2099 = vpack.c.b16 %v1427, %v1403
        %v2100 = vpack.c.b16 %v1428, %v1404
        %v2101 = vpack.c.b16 %v1429, %v1405
        %v2102 = vpack.c.b16 %v1430, %v1406
        %v2103 = vpack.c.b16 %v1431, %v1407
        %v2104 = vpack.c.b16 %v1432, %v1408
        %v2105 = vpack.c.b16 %v1433, %v1409
        %v2106 = vpack.c.b16 %v1434, %v1410
        %v2107 = vpack.c.b16 %v1435, %v1411
        %v2108 = vpack.c.b16 %v1436, %v1412
        %v2109 = vpack.c.b16 %v1437, %v1413
        %v2110 = vpack.c.b16 %v1438, %v1414
        %v2111 = vpack.c.b16 %v1439, %v1415
        %v2112 = vpack.c.b16 %v1440, %v1416
        %v2113 = vpack.c.b16 %v1441, %v1417
        %v2114 = vpack.c.b16 %v1442, %v1418
        %v2115 = vpack.c.b16 %v1443, %v1419
        %v2116 = vpack.c.b16 %v1444, %v1420
        %v2117 = vpack.c.b16 %v1445, %v1421
        %v2118 = vpack.c.b16 %v1446, %v1422
        %v2119 = vpack.c.b16 %v1447, %v1423
        %v2120 = vpack.c.b16 %v1448, %v1424
        %v2121 = vpack.c.b16 %v1449, %v1425
        %v2122 = vpack.c.b16 %v1450, %v1426
        %v2123 = vpack.c.b16 %v1475, %v1451
        %v2124 = vpack.c.b16 %v1476, %v1452
        %v2125 = vpack.c.b16 %v1477, %v1453
        %v2126 = vpack.c.b16 %v1478, %v1454
        %v2127 = vpack.c.b16 %v1479, %v1455
        %v2128 = vpack.c.b16 %v1480, %v1456
        %v2129 = vpack.c.b16 %v1481, %v1457
        %v2130 = vpack.c.b16 %v1482, %v1458
        %v2131 = vpack.c.b16 %v1483, %v1459
        %v2132 = vpack.c.b16 %v1484, %v1460
        %v2133 = vpack.c.b16 %v1485, %v1461
        %v2134 = vpack.c.b16 %v1486, %v1462
        %v2135 = vpack.c.b16 %v1487, %v1463
        %v2136 = vpack.c.b16 %v1488, %v1464
        %v2137 = vpack.c.b16 %v1489, %v1465
        %v2138 = vpack.c.b16 %v1490, %v1466
        %v2139 = vpack.c.b16 %v1491, %v1467
        %v2140 = vpack.c.b16 %v1492, %v1468
        %v2141 = vpack.c.b16 %v1493, %v1469
        %v2142 = vpack.c.b16 %v1494, %v1470
        %v2143 = vpack.c.b16 %v1495, %v1471
        %v2144 = vpack.c.b16 %v1496, %v1472
        %v2145 = vpack.c.b16 %v1497, %v1473
        %v2146 = vpack.c.b16 %v1498, %v1474
        %v2147 = vpack.c.b16 %v1523, %v1499
        %v2148 = vpack.c.b16 %v1524, %v1500
        %v2149 = vpack.c.b16 %v1525, %v1501
        %v2150 = vpack.c.b16 %v1526, %v1502
        %v2151 = vpack.c.b16 %v1527, %v1503
        %v2152 = vpack.c.b16 %v1528, %v1504
        %v2153 = vpack.c.b16 %v1529, %v1505
        %v2154 = vpack.c.b16 %v1530, %v1506
        %v2155 = vpack.c.b16 %v1531, %v1507
        %v2156 = vpack.c.b16 %v1532, %v1508
        %v2157 = vpack.c.b16 %v1533, %v1509
        %v2158 = vpack.c.b16 %v1534, %v1510
        %v2159 = vpack.c.b16 %v1535, %v1511
        %v2160 = vpack.c.b16 %v1536, %v1512
        %v2161 = vpack.c.b16 %v1537, %v1513
        %v2162 = vpack.c.b16 %v1538, %v1514
        %v2163 = vpack.c.b16 %v1539, %v1515
        %v2164 = vpack.c.b16 %v1540, %v1516
        %v2165 = vpack.c.b16 %v1541, %v1517
        %v2166 = vpack.c.b16 %v1542, %v1518
        %v2167 = vpack.c.b16 %v1543, %v1519
        %v2168 = vpack.c.b16 %v1544, %v1520
        %v2169 = vpack.c.b16 %v1545, %v1521
        %v2170 = vpack.c.b16 %v1546, %v1522
        %v2171 = vpack.c.b16 %v1571, %v1547
        %v2172 = vpack.c.b16 %v1572, %v1548
        %v2173 = vpack.c.b16 %v1573, %v1549
        %v2174 = vpack.c.b16 %v1574, %v1550
        %v2175 = vpack.c.b16 %v1575, %v1551
        %v2176 = vpack.c.b16 %v1576, %v1552
        %v2177 = vpack.c.b16 %v1577, %v1553
        %v2178 = vpack.c.b16 %v1578, %v1554
        %v2179 = vpack.c.b16 %v1579, %v1555
        %v2180 = vpack.c.b16 %v1580, %v1556
        %v2181 = vpack.c.b16 %v1581, %v1557
        %v2182 = vpack.c.b16 %v1582, %v1558
        %v2183 = vpack.c.b16 %v1583, %v1559
        %v2184 = vpack.c.b16 %v1584, %v1560
        %v2185 = vpack.c.b16 %v1585, %v1561
        %v2186 = vpack.c.b16 %v1586, %v1562
        %v2187 = vpack.c.b16 %v1587, %v1563
        %v2188 = vpack.c.b16 %v1588, %v1564
        %v2189 = vpack.c.b16 %v1589, %v1565
        %v2190 = vpack.c.b16 %v1590, %v1566
        %v2191 = vpack.c.b16 %v1591, %v1567
        %v2192 = vpack.c.b16 %v1592, %v1568
        %v2193 = vpack.c.b16 %v1593, %v1569
        %v2194 = vpack.c.b16 %v1594, %v1570
        %v2195 = vpack.c.b16 %v1619, %v1595
        %v2196 = vpack.c.b16 %v1620, %v1596
        %v2197 = vpack.c.b16 %v1621, %v1597
        %v2198 = vpack.c.b16 %v1622, %v1598
        %v2199 = vpack.c.b16 %v1623, %v1599
        %v2200 = vpack.c.b16 %v1624, %v1600
        %v2201 = vpack.c.b16 %v1625, %v1601
        %v2202 = vpack.c.b16 %v1626, %v1602
        %v2203 = vpack.c.b16 %v1627, %v1603
        %v2204 = vpack.c.b16 %v1628, %v1604
        %v2205 = vpack.c.b16 %v1629, %v1605
        %v2206 = vpack.c.b16 %v1630, %v1606
        %v2207 = vpack.c.b16 %v1631, %v1607
        %v2208 = vpack.c.b16 %v1632, %v1608
        %v2209 = vpack.c.b16 %v1633, %v1609
        %v2210 = vpack.c.b16 %v1634, %v1610
        %v2211 = vpack.c.b16 %v1635, %v1611
        %v2212 = vpack.c.b16 %v1636, %v1612
        %v2213 = vpack.c.b16 %v1637, %v1613
        %v2214 = vpack.c.b16 %v1638, %v1614
        %v2215 = vpack.c.b16 %v1639, %v1615
        %v2216 = vpack.c.b16 %v1640, %v1616
        %v2217 = vpack.c.b16 %v1641, %v1617
        %v2218 = vpack.c.b16 %v1642, %v1618
        %v2219 = vpack.c.b16 %v1667, %v1643
        %v2220 = vpack.c.b16 %v1668, %v1644
        %v2221 = vpack.c.b16 %v1669, %v1645
        %v2222 = vpack.c.b16 %v1670, %v1646
        %v2223 = vpack.c.b16 %v1671, %v1647
        %v2224 = vpack.c.b16 %v1672, %v1648
        %v2225 = vpack.c.b16 %v1673, %v1649
        %v2226 = vpack.c.b16 %v1674, %v1650
        %v2227 = vpack.c.b16 %v1675, %v1651
        %v2228 = vpack.c.b16 %v1676, %v1652
        %v2229 = vpack.c.b16 %v1677, %v1653
        %v2230 = vpack.c.b16 %v1678, %v1654
        %v2231 = vpack.c.b16 %v1679, %v1655
        %v2232 = vpack.c.b16 %v1680, %v1656
        %v2233 = vpack.c.b16 %v1681, %v1657
        %v2234 = vpack.c.b16 %v1682, %v1658
        %v2235 = vpack.c.b16 %v1683, %v1659
        %v2236 = vpack.c.b16 %v1684, %v1660
        %v2237 = vpack.c.b16 %v1685, %v1661
        %v2238 = vpack.c.b16 %v1686, %v1662
        %v2239 = vpack.c.b16 %v1687, %v1663
        %v2240 = vpack.c.b16 %v1688, %v1664
        %v2241 = vpack.c.b16 %v1689, %v1665
        %v2242 = vpack.c.b16 %v1690, %v1666
        %v2243 = vpack.c.b16 %v1715, %v1691
        %v2244 = vpack.c.b16 %v1716, %v1692
        %v2245 = vpack.c.b16 %v1717, %v1693
        %v2246 = vpack.c.b16 %v1718, %v1694
        %v2247 = vpack.c.b16 %v1719, %v1695
        %v2248 = vpack.c.b16 %v1720, %v1696
        %v2249 = vpack.c.b16 %v1721, %v1697
        %v2250 = vpack.c.b16 %v1722, %v1698
        %v2251 = vpack.c.b16 %v1723, %v1699
        %v2252 = vpack.c.b16 %v1724, %v1700
        %v2253 = vpack.c.b16 %v1725, %v1701
        %v2254 = vpack.c.b16 %v1726, %v1702
        %v2255 = vpack.c.b16 %v1727, %v1703
        %v2256 = vpack.c.b16 %v1728, %v1704
        %v2257 = vpack.c.b16 %v1729, %v1705
        %v2258 = vpack.c.b16 %v1730, %v1706
        %v2259 = vpack.c.b16 %v1731, %v1707
        %v2260 = vpack.c.b16 %v1732, %v1708
        %v2261 = vpack.c.b16 %v1733, %v1709
        %v2262 = vpack.c.b16 %v1734, %v1710
        %v2263 = vpack.c.b16 %v1735, %v1711
        %v2264 = vpack.c.b16 %v1736, %v1712
        %v2265 = vpack.c.b16 %v1737, %v1713
        %v2266 = vpack.c.b16 %v1738, %v1714
        %v2267 = vpack.c.b16 %v1763, %v1739
        %v2268 = vpack.c.b16 %v1764, %v1740
        %v2269 = vpack.c.b16 %v1765, %v1741
        %v2270 = vpack.c.b16 %v1766, %v1742
        %v2271 = vpack.c.b16 %v1767, %v1743
        %v2272 = vpack.c.b16 %v1768, %v1744
        %v2273 = vpack.c.b16 %v1769, %v1745
        %v2274 = vpack.c.b16 %v1770, %v1746
        %v2275 = vpack.c.b16 %v1771, %v1747
        %v2276 = vpack.c.b16 %v1772, %v1748
        %v2277 = vpack.c.b16 %v1773, %v1749
        %v2278 = vpack.c.b16 %v1774, %v1750
        %v2279 = vpack.c.b16 %v1775, %v1751
        %v2280 = vpack.c.b16 %v1776, %v1752
        %v2281 = vpack.c.b16 %v1777, %v1753
        %v2282 = vpack.c.b16 %v1778, %v1754
        %v2283 = vpack.c.b16 %v1779, %v1755
        %v2284 = vpack.c.b16 %v1780, %v1756
        %v2285 = vpack.c.b16 %v1781, %v1757
        %v2286 = vpack.c.b16 %v1782, %v1758
        %v2287 = vpack.c.b16 %v1783, %v1759
        %v2288 = vpack.c.b16 %v1784, %v1760
        %v2289 = vpack.c.b16 %v1785, %v1761
        %v2290 = vpack.c.b16 %v1786, %v1762
        %v2291 = vpack.c.b16 %v1811, %v1787
        %v2292 = vpack.c.b16 %v1812, %v1788
        %v2293 = vpack.c.b16 %v1813, %v1789
        %v2294 = vpack.c.b16 %v1814, %v1790
        %v2295 = vpack.c.b16 %v1815, %v1791
        %v2296 = vpack.c.b16 %v1816, %v1792
        %v2297 = vpack.c.b16 %v1817, %v1793
        %v2298 = vpack.c.b16 %v1818, %v1794
        %v2299 = vpack.c.b16 %v1819, %v1795
        %v2300 = vpack.c.b16 %v1820, %v1796
        %v2301 = vpack.c.b16 %v1821, %v1797
        %v2302 = vpack.c.b16 %v1822, %v1798
        %v2303 = vpack.c.b16 %v1823, %v1799
        %v2304 = vpack.c.b16 %v1824, %v1800
        %v2305 = vpack.c.b16 %v1825, %v1801
        %v2306 = vpack.c.b16 %v1826, %v1802
        %v2307 = vpack.c.b16 %v1827, %v1803
        %v2308 = vpack.c.b16 %v1828, %v1804
        %v2309 = vpack.c.b16 %v1829, %v1805
        %v2310 = vpack.c.b16 %v1830, %v1806
        %v2311 = vpack.c.b16 %v1831, %v1807
        %v2312 = vpack.c.b16 %v1832, %v1808
        %v2313 = vpack.c.b16 %v1833, %v1809
        %v2314 = vpack.c.b16 %v1834, %v1810
        %v2315 = vpack.c.b16 %v1859, %v1835
        %v2316 = vpack.c.b16 %v1860, %v1836
        %v2317 = vpack.c.b16 %v1861, %v1837
        %v2318 = vpack.c.b16 %v1862, %v1838
        %v2319 = vpack.c.b16 %v1863, %v1839
        %v2320 = vpack.c.b16 %v1864, %v1840
        %v2321 = vpack.c.b16 %v1865, %v1841
        %v2322 = vpack.c.b16 %v1866, %v1842
        %v2323 = vpack.c.b16 %v1867, %v1843
        %v2324 = vpack.c.b16 %v1868, %v1844
        %v2325 = vpack.c.b16 %v1869, %v1845
        %v2326 = vpack.c.b16 %v1870, %v1846
        %v2327 = vpack.c.b16 %v1871, %v1847
        %v2328 = vpack.c.b16 %v1872, %v1848
        %v2329 = vpack.c.b16 %v1873, %v1849
        %v2330 = vpack.c.b16 %v1874, %v1850
        %v2331 = vpack.c.b16 %v1875, %v1851
        %v2332 = vpack.c.b16 %v1876, %v1852
        %v2333 = vpack.c.b16 %v1877, %v1853
        %v2334 = vpack.c.b16 %v1878, %v1854
        %v2335 = vpack.c.b16 %v1879, %v1855
        %v2336 = vpack.c.b16 %v1880, %v1856
        %v2337 = vpack.c.b16 %v1881, %v1857
        %v2338 = vpack.c.b16 %v1882, %v1858
        %v2339 = vpack.c.b16 %v1907, %v1883
        %v2340 = vpack.c.b16 %v1908, %v1884
        %v2341 = vpack.c.b16 %v1909, %v1885
        %v2342 = vpack.c.b16 %v1910, %v1886
        %v2343 = vpack.c.b16 %v1911, %v1887
        %v2344 = vpack.c.b16 %v1912, %v1888
        %v2345 = vpack.c.b16 %v1913, %v1889
        %v2346 = vpack.c.b16 %v1914, %v1890
        %v2347 = vpack.c.b16 %v1915, %v1891
        %v2348 = vpack.c.b16 %v1916, %v1892
        %v2349 = vpack.c.b16 %v1917, %v1893
        %v2350 = vpack.c.b16 %v1918, %v1894
        %v2351 = vpack.c.b16 %v1919, %v1895
        %v2352 = vpack.c.b16 %v1920, %v1896
        %v2353 = vpack.c.b16 %v1921, %v1897
        %v2354 = vpack.c.b16 %v1922, %v1898
        %v2355 = vpack.c.b16 %v1923, %v1899
        %v2356 = vpack.c.b16 %v1924, %v1900
        %v2357 = vpack.c.b16 %v1925, %v1901
        %v2358 = vpack.c.b16 %v1926, %v1902
        %v2359 = vpack.c.b16 %v1927, %v1903
        %v2360 = vpack.c.b16 %v1928, %v1904
        %v2361 = vpack.c.b16 %v1929, %v1905
        %v2362 = vpack.c.b16 %v1930, %v1906
        %v2363 = vpack.c.b16 %v1955, %v1931
        %v2364 = vpack.c.b16 %v1956, %v1932
        %v2365 = vpack.c.b16 %v1957, %v1933
        %v2366 = vpack.c.b16 %v1958, %v1934
        %v2367 = vpack.c.b16 %v1959, %v1935
        %v2368 = vpack.c.b16 %v1960, %v1936
        %v2369 = vpack.c.b16 %v1961, %v1937
        %v2370 = vpack.c.b16 %v1962, %v1938
        %v2371 = vpack.c.b16 %v1963, %v1939
        %v2372 = vpack.c.b16 %v1964, %v1940
        %v2373 = vpack.c.b16 %v1965, %v1941
        %v2374 = vpack.c.b16 %v1966, %v1942
        %v2375 = vpack.c.b16 %v1967, %v1943
        %v2376 = vpack.c.b16 %v1968, %v1944
        %v2377 = vpack.c.b16 %v1969, %v1945
        %v2378 = vpack.c.b16 %v1970, %v1946
        %v2379 = vpack.c.b16 %v1971, %v1947
        %v2380 = vpack.c.b16 %v1972, %v1948
        %v2381 = vpack.c.b16 %v1973, %v1949
        %v2382 = vpack.c.b16 %v1974, %v1950
        %v2383 = vpack.c.b16 %v1975, %v1951
        %v2384 = vpack.c.b16 %v1976, %v1952
        %v2385 = vpack.c.b16 %v1977, %v1953
        %v2386 = vpack.c.b16 %v1978, %v1954
        %v2387 = vpack.c.b16 %v2003, %v1979
        %v2388 = vpack.c.b16 %v2004, %v1980
        %v2389 = vpack.c.b16 %v2005, %v1981
        %v2390 = vpack.c.b16 %v2006, %v1982
        %v2391 = vpack.c.b16 %v2007, %v1983
        %v2392 = vpack.c.b16 %v2008, %v1984
        %v2393 = vpack.c.b16 %v2009, %v1985
        %v2394 = vpack.c.b16 %v2010, %v1986
        %v2395 = vpack.c.b16 %v2011, %v1987
        %v2396 = vpack.c.b16 %v2012, %v1988
        %v2397 = vpack.c.b16 %v2013, %v1989
        %v2398 = vpack.c.b16 %v2014, %v1990
        %v2399 = vpack.c.b16 %v2015, %v1991
        %v2400 = vpack.c.b16 %v2016, %v1992
        %v2401 = vpack.c.b16 %v2017, %v1993
        %v2402 = vpack.c.b16 %v2018, %v1994
        %v2403 = vpack.c.b16 %v2019, %v1995
        %v2404 = vpack.c.b16 %v2020, %v1996
        %v2405 = vpack.c.b16 %v2021, %v1997
        %v2406 = vpack.c.b16 %v2022, %v1998
        %v2407 = vpack.c.b16 %v2023, %v1999
        %v2408 = vpack.c.b16 %v2024, %v2000
        %v2409 = vpack.c.b16 %v2025, %v2001
        %v2410 = vpack.c.b16 %v2026, %v2002
        %2795 = vmatprep.subr.bf16.mxu0 %v2196
        %2796 = vmatpush1.bf16.xpose.msra.mxu0 %v2195
        %2797 = vmatprep.subr.bf16.mxu0 %v2172
        %2798 = vmatpush1.bf16.xpose.msra.mxu0 %v2171
        %2799 = vmatprep.subr.bf16.mxu0 %v2148
        %2800 = vmatpush1.bf16.xpose.msra.mxu0 %v2147
        %2801 = vmatprep.subr.bf16.mxu0 %v2124
        %2802 = vmatpush1.bf16.xpose.msra.mxu0 %v2123
        %2803 = vmatprep.subr.bf16.mxu0 %v2100
        %2804 = vmatpush1.bf16.xpose.msra.mxu0 %v2099
        %2805 = vmatprep.subr.bf16.mxu0 %v2076
        %2806 = vmatpush1.bf16.xpose.msra.mxu0 %v2075
        %2807 = vmatprep.subr.bf16.mxu0 %v2052
        %2808 = vmatpush1.bf16.xpose.msra.mxu0 %v2051
        %2809 = vmatprep.subr.bf16.mxu0 %v2028
        %2810 = vmatpush1.bf16.xpose.msra.mxu0 %v2027
        %2811 = vmatprep.subr.bf16.mxu0 %v2388
        %2812 = vmatpush2.bf16.xpose.msra.mxu0 %v2387
        %2813 = vmatprep.subr.bf16.mxu0 %v2364
        %2814 = vmatpush2.bf16.xpose.msra.mxu0 %v2363
        %2815 = vmatprep.subr.bf16.mxu0 %v2340
        %2816 = vmatpush2.bf16.xpose.msra.mxu0 %v2339
        %2817 = vmatprep.subr.bf16.mxu0 %v2316
        %2818 = vmatpush2.bf16.xpose.msra.mxu0 %v2315
        %2819 = vmatprep.subr.bf16.mxu0 %v2292
        %2820 = vmatpush2.bf16.xpose.msra.mxu0 %v2291
        %2821 = vmatprep.subr.bf16.mxu0 %v2268
        %2822 = vmatpush2.bf16.xpose.msra.mxu0 %v2267
        %2823 = vmatprep.subr.bf16.mxu0 %v2244
        %2824 = vmatpush2.bf16.xpose.msra.mxu0 %v2243
        %2825 = vmatprep.subr.bf16.mxu0 %v2220
        %2826 = vmatpush2.bf16.xpose.msra.mxu0 %v2219
        %2827 = vmatprep.mubr.bf16.mxu0 %v780
        %2828 = vmatmul.mubr.bf16.gmra.mxu0 %v779
        %v2829 = vpop.f32.mrf.mxu0
        %v2830 = vadd.f32 0.0, %v2829
        %v2831 = vpop.f32.mrf.mxu0
        %v2832 = vadd.f32 0.0, %v2831
        %v2833 = vpop.f32.mrf.mxu0
        %v2834 = vadd.f32 0.0, %v2833
        %v2835 = vpop.f32.mrf.mxu0
        %v2836 = vadd.f32 0.0, %v2835
        %2837 = vmatprep.mubr.bf16.mxu0 %v804
        %2838 = vmatmul.mubr.bf16.gmra.mxu0 %v803
        %v2839 = vpop.f32.mrf.mxu0
        %v2840 = vadd.f32 0.0, %v2839
        %v2841 = vpop.f32.mrf.mxu0
        %v2842 = vadd.f32 0.0, %v2841
        %v2843 = vpop.f32.mrf.mxu0
        %v2844 = vpop.f32.mrf.mxu0
        %2845 = vdwg.mxu0
        %2846 = vmatprep.subr.bf16.mxu0 %v2198
        %2847 = vmatpush1.bf16.xpose.msra.mxu0 %v2197
        %2848 = vmatprep.subr.bf16.mxu0 %v2174
        %2849 = vmatpush1.bf16.xpose.msra.mxu0 %v2173
        %2850 = vmatprep.subr.bf16.mxu0 %v2150
        %2851 = vmatpush1.bf16.xpose.msra.mxu0 %v2149
        %2852 = vmatprep.subr.bf16.mxu0 %v2126
        %2853 = vmatpush1.bf16.xpose.msra.mxu0 %v2125
        %2854 = vmatprep.subr.bf16.mxu0 %v2102
        %2855 = vmatpush1.bf16.xpose.msra.mxu0 %v2101
        %2856 = vmatprep.subr.bf16.mxu0 %v2078
        %2857 = vmatpush1.bf16.xpose.msra.mxu0 %v2077
        %2858 = vmatprep.subr.bf16.mxu0 %v2054
        %2859 = vmatpush1.bf16.xpose.msra.mxu0 %v2053
        %2860 = vmatprep.subr.bf16.mxu0 %v2030
        %2861 = vmatpush1.bf16.xpose.msra.mxu0 %v2029
        %2862 = vmatprep.subr.bf16.mxu0 %v2390
        %2863 = vmatpush2.bf16.xpose.msra.mxu0 %v2389
        %2864 = vmatprep.subr.bf16.mxu0 %v2366
        %2865 = vmatpush2.bf16.xpose.msra.mxu0 %v2365
        %2866 = vmatprep.subr.bf16.mxu0 %v2342
        %2867 = vmatpush2.bf16.xpose.msra.mxu0 %v2341
        %2868 = vmatprep.subr.bf16.mxu0 %v2318
        %2869 = vmatpush2.bf16.xpose.msra.mxu0 %v2317
        %2870 = vmatprep.subr.bf16.mxu0 %v2294
        %2871 = vmatpush2.bf16.xpose.msra.mxu0 %v2293
        %2872 = vmatprep.subr.bf16.mxu0 %v2270
        %2873 = vmatpush2.bf16.xpose.msra.mxu0 %v2269
        %2874 = vmatprep.subr.bf16.mxu0 %v2246
        %2875 = vmatpush2.bf16.xpose.msra.mxu0 %v2245
        %2876 = vmatprep.subr.bf16.mxu0 %v2222
        %2877 = vmatpush2.bf16.xpose.msra.mxu0 %v2221
        %2878 = vmatprep.mubr.bf16.mxu0 %v782
        %2879 = vmatmul.mubr.bf16.gmra.mxu0 %v781
        %v2880 = vpop.f32.mrf.mxu0
        %v2881 = vadd.f32 %v2830, %v2880
        %v2882 = vpop.f32.mrf.mxu0
        %v2883 = vadd.f32 %v2832, %v2882
        %v2884 = vpop.f32.mrf.mxu0
        %v2885 = vadd.f32 %v2834, %v2884
        %v2886 = vpop.f32.mrf.mxu0
        %v2887 = vadd.f32 %v2836, %v2886
        %2888 = vmatprep.mubr.bf16.mxu0 %v806
        %2889 = vmatmul.mubr.bf16.gmra.mxu0 %v805
        %v2890 = vpop.f32.mrf.mxu0
        %v2891 = vadd.f32 %v2840, %v2890
        %v2892 = vpop.f32.mrf.mxu0
        %v2893 = vadd.f32 %v2842, %v2892
        %v2894 = vpop.f32.mrf.mxu0
        %v2895 = vpop.f32.mrf.mxu0
        %2896 = vdwg.mxu0
        %2897 = vmatprep.subr.bf16.mxu0 %v2200
        %2898 = vmatpush1.bf16.xpose.msra.mxu0 %v2199
        %2899 = vmatprep.subr.bf16.mxu0 %v2176
        %2900 = vmatpush1.bf16.xpose.msra.mxu0 %v2175
        %2901 = vmatprep.subr.bf16.mxu0 %v2152
        %2902 = vmatpush1.bf16.xpose.msra.mxu0 %v2151
        %2903 = vmatprep.subr.bf16.mxu0 %v2128
        %2904 = vmatpush1.bf16.xpose.msra.mxu0 %v2127
        %2905 = vmatprep.subr.bf16.mxu0 %v2104
        %2906 = vmatpush1.bf16.xpose.msra.mxu0 %v2103
        %2907 = vmatprep.subr.bf16.mxu0 %v2080
        %2908 = vmatpush1.bf16.xpose.msra.mxu0 %v2079
        %2909 = vmatprep.subr.bf16.mxu0 %v2056
        %2910 = vmatpush1.bf16.xpose.msra.mxu0 %v2055
        %2911 = vmatprep.subr.bf16.mxu0 %v2032
        %2912 = vmatpush1.bf16.xpose.msra.mxu0 %v2031
        %2913 = vmatprep.subr.bf16.mxu0 %v2392
        %2914 = vmatpush2.bf16.xpose.msra.mxu0 %v2391
        %2915 = vmatprep.subr.bf16.mxu0 %v2368
        %2916 = vmatpush2.bf16.xpose.msra.mxu0 %v2367
        %2917 = vmatprep.subr.bf16.mxu0 %v2344
        %2918 = vmatpush2.bf16.xpose.msra.mxu0 %v2343
        %2919 = vmatprep.subr.bf16.mxu0 %v2320
        %2920 = vmatpush2.bf16.xpose.msra.mxu0 %v2319
        %2921 = vmatprep.subr.bf16.mxu0 %v2296
        %2922 = vmatpush2.bf16.xpose.msra.mxu0 %v2295
        %2923 = vmatprep.subr.bf16.mxu0 %v2272
        %2924 = vmatpush2.bf16.xpose.msra.mxu0 %v2271
        %2925 = vmatprep.subr.bf16.mxu0 %v2248
        %2926 = vmatpush2.bf16.xpose.msra.mxu0 %v2247
        %2927 = vmatprep.subr.bf16.mxu0 %v2224
        %2928 = vmatpush2.bf16.xpose.msra.mxu0 %v2223
        %2929 = vmatprep.mubr.bf16.mxu0 %v784
        %2930 = vmatmul.mubr.bf16.gmra.mxu0 %v783
        %v2931 = vpop.f32.mrf.mxu0
        %v2932 = vadd.f32 %v2881, %v2931
        %v2933 = vpop.f32.mrf.mxu0
        %v2934 = vadd.f32 %v2883, %v2933
        %v2935 = vpop.f32.mrf.mxu0
        %v2936 = vadd.f32 %v2885, %v2935
        %v2937 = vpop.f32.mrf.mxu0
        %v2938 = vadd.f32 %v2887, %v2937
        %2939 = vmatprep.mubr.bf16.mxu0 %v808
        %2940 = vmatmul.mubr.bf16.gmra.mxu0 %v807
        %v2941 = vpop.f32.mrf.mxu0
        %v2942 = vadd.f32 %v2891, %v2941
        %v2943 = vpop.f32.mrf.mxu0
        %v2944 = vadd.f32 %v2893, %v2943
        %v2945 = vpop.f32.mrf.mxu0
        %v2946 = vpop.f32.mrf.mxu0
        %2947 = vdwg.mxu0
        %2948 = vmatprep.subr.bf16.mxu0 %v2202
        %2949 = vmatpush1.bf16.xpose.msra.mxu0 %v2201
        %2950 = vmatprep.subr.bf16.mxu0 %v2178
        %2951 = vmatpush1.bf16.xpose.msra.mxu0 %v2177
        %2952 = vmatprep.subr.bf16.mxu0 %v2154
        %2953 = vmatpush1.bf16.xpose.msra.mxu0 %v2153
        %2954 = vmatprep.subr.bf16.mxu0 %v2130
        %2955 = vmatpush1.bf16.xpose.msra.mxu0 %v2129
        %2956 = vmatprep.subr.bf16.mxu0 %v2106
        %2957 = vmatpush1.bf16.xpose.msra.mxu0 %v2105
        %2958 = vmatprep.subr.bf16.mxu0 %v2082
        %2959 = vmatpush1.bf16.xpose.msra.mxu0 %v2081
        %2960 = vmatprep.subr.bf16.mxu0 %v2058
        %2961 = vmatpush1.bf16.xpose.msra.mxu0 %v2057
        %2962 = vmatprep.subr.bf16.mxu0 %v2034
        %2963 = vmatpush1.bf16.xpose.msra.mxu0 %v2033
        %2964 = vmatprep.subr.bf16.mxu0 %v2394
        %2965 = vmatpush2.bf16.xpose.msra.mxu0 %v2393
        %2966 = vmatprep.subr.bf16.mxu0 %v2370
        %2967 = vmatpush2.bf16.xpose.msra.mxu0 %v2369
        %2968 = vmatprep.subr.bf16.mxu0 %v2346
        %2969 = vmatpush2.bf16.xpose.msra.mxu0 %v2345
        %2970 = vmatprep.subr.bf16.mxu0 %v2322
        %2971 = vmatpush2.bf16.xpose.msra.mxu0 %v2321
        %2972 = vmatprep.subr.bf16.mxu0 %v2298
        %2973 = vmatpush2.bf16.xpose.msra.mxu0 %v2297
        %2974 = vmatprep.subr.bf16.mxu0 %v2274
        %2975 = vmatpush2.bf16.xpose.msra.mxu0 %v2273
        %2976 = vmatprep.subr.bf16.mxu0 %v2250
        %2977 = vmatpush2.bf16.xpose.msra.mxu0 %v2249
        %2978 = vmatprep.subr.bf16.mxu0 %v2226
        %2979 = vmatpush2.bf16.xpose.msra.mxu0 %v2225
        %2980 = vmatprep.mubr.bf16.mxu0 %v786
        %2981 = vmatmul.mubr.bf16.gmra.mxu0 %v785
        %v2982 = vpop.f32.mrf.mxu0
        %v2983 = vadd.f32 %v2932, %v2982
        %v2984 = vpop.f32.mrf.mxu0
        %v2985 = vadd.f32 %v2934, %v2984
        %v2986 = vpop.f32.mrf.mxu0
        %v2987 = vadd.f32 %v2936, %v2986
        %v2988 = vpop.f32.mrf.mxu0
        %v2989 = vadd.f32 %v2938, %v2988
        %2990 = vmatprep.mubr.bf16.mxu0 %v810
        %2991 = vmatmul.mubr.bf16.gmra.mxu0 %v809
        %v2992 = vpop.f32.mrf.mxu0
        %v2993 = vadd.f32 %v2942, %v2992
        %v2994 = vpop.f32.mrf.mxu0
        %v2995 = vadd.f32 %v2944, %v2994
        %v2996 = vpop.f32.mrf.mxu0
        %v2997 = vpop.f32.mrf.mxu0
        %2998 = vdwg.mxu0
        %2999 = vmatprep.subr.bf16.mxu0 %v2204
        %3000 = vmatpush1.bf16.xpose.msra.mxu0 %v2203
        %3001 = vmatprep.subr.bf16.mxu0 %v2180
        %3002 = vmatpush1.bf16.xpose.msra.mxu0 %v2179
        %3003 = vmatprep.subr.bf16.mxu0 %v2156
        %3004 = vmatpush1.bf16.xpose.msra.mxu0 %v2155
        %3005 = vmatprep.subr.bf16.mxu0 %v2132
        %3006 = vmatpush1.bf16.xpose.msra.mxu0 %v2131
        %3007 = vmatprep.subr.bf16.mxu0 %v2108
        %3008 = vmatpush1.bf16.xpose.msra.mxu0 %v2107
        %3009 = vmatprep.subr.bf16.mxu0 %v2084
        %3010 = vmatpush1.bf16.xpose.msra.mxu0 %v2083
        %3011 = vmatprep.subr.bf16.mxu0 %v2060
        %3012 = vmatpush1.bf16.xpose.msra.mxu0 %v2059
        %3013 = vmatprep.subr.bf16.mxu0 %v2036
        %3014 = vmatpush1.bf16.xpose.msra.mxu0 %v2035
        %3015 = vmatprep.subr.bf16.mxu0 %v2396
        %3016 = vmatpush2.bf16.xpose.msra.mxu0 %v2395
        %3017 = vmatprep.subr.bf16.mxu0 %v2372
        %3018 = vmatpush2.bf16.xpose.msra.mxu0 %v2371
        %3019 = vmatprep.subr.bf16.mxu0 %v2348
        %3020 = vmatpush2.bf16.xpose.msra.mxu0 %v2347
        %3021 = vmatprep.subr.bf16.mxu0 %v2324
        %3022 = vmatpush2.bf16.xpose.msra.mxu0 %v2323
        %3023 = vmatprep.subr.bf16.mxu0 %v2300
        %3024 = vmatpush2.bf16.xpose.msra.mxu0 %v2299
        %3025 = vmatprep.subr.bf16.mxu0 %v2276
        %3026 = vmatpush2.bf16.xpose.msra.mxu0 %v2275
        %3027 = vmatprep.subr.bf16.mxu0 %v2252
        %3028 = vmatpush2.bf16.xpose.msra.mxu0 %v2251
        %3029 = vmatprep.subr.bf16.mxu0 %v2228
        %3030 = vmatpush2.bf16.xpose.msra.mxu0 %v2227
        %3031 = vmatprep.mubr.bf16.mxu0 %v788
        %3032 = vmatmul.mubr.bf16.gmra.mxu0 %v787
        %v3033 = vpop.f32.mrf.mxu0
        %v3034 = vadd.f32 %v2983, %v3033
        %v3035 = vpop.f32.mrf.mxu0
        %v3036 = vadd.f32 %v2985, %v3035
        %v3037 = vpop.f32.mrf.mxu0
        %v3038 = vadd.f32 %v2987, %v3037
        %v3039 = vpop.f32.mrf.mxu0
        %v3040 = vadd.f32 %v2989, %v3039
        %3041 = vmatprep.mubr.bf16.mxu0 %v812
        %3042 = vmatmul.mubr.bf16.gmra.mxu0 %v811
        %v3043 = vpop.f32.mrf.mxu0
        %v3044 = vadd.f32 %v2993, %v3043
        %v3045 = vpop.f32.mrf.mxu0
        %v3046 = vadd.f32 %v2995, %v3045
        %v3047 = vpop.f32.mrf.mxu0
        %v3048 = vpop.f32.mrf.mxu0
        %3049 = vdwg.mxu0
        %3050 = vmatprep.subr.bf16.mxu0 %v2206
        %3051 = vmatpush1.bf16.xpose.msra.mxu0 %v2205
        %3052 = vmatprep.subr.bf16.mxu0 %v2182
        %3053 = vmatpush1.bf16.xpose.msra.mxu0 %v2181
        %3054 = vmatprep.subr.bf16.mxu0 %v2158
        %3055 = vmatpush1.bf16.xpose.msra.mxu0 %v2157
        %3056 = vmatprep.subr.bf16.mxu0 %v2134
        %3057 = vmatpush1.bf16.xpose.msra.mxu0 %v2133
        %3058 = vmatprep.subr.bf16.mxu0 %v2110
        %3059 = vmatpush1.bf16.xpose.msra.mxu0 %v2109
        %3060 = vmatprep.subr.bf16.mxu0 %v2086
        %3061 = vmatpush1.bf16.xpose.msra.mxu0 %v2085
        %3062 = vmatprep.subr.bf16.mxu0 %v2062
        %3063 = vmatpush1.bf16.xpose.msra.mxu0 %v2061
        %3064 = vmatprep.subr.bf16.mxu0 %v2038
        %3065 = vmatpush1.bf16.xpose.msra.mxu0 %v2037
        %3066 = vmatprep.subr.bf16.mxu0 %v2398
        %3067 = vmatpush2.bf16.xpose.msra.mxu0 %v2397
        %3068 = vmatprep.subr.bf16.mxu0 %v2374
        %3069 = vmatpush2.bf16.xpose.msra.mxu0 %v2373
        %3070 = vmatprep.subr.bf16.mxu0 %v2350
        %3071 = vmatpush2.bf16.xpose.msra.mxu0 %v2349
        %3072 = vmatprep.subr.bf16.mxu0 %v2326
        %3073 = vmatpush2.bf16.xpose.msra.mxu0 %v2325
        %3074 = vmatprep.subr.bf16.mxu0 %v2302
        %3075 = vmatpush2.bf16.xpose.msra.mxu0 %v2301
        %3076 = vmatprep.subr.bf16.mxu0 %v2278
        %3077 = vmatpush2.bf16.xpose.msra.mxu0 %v2277
        %3078 = vmatprep.subr.bf16.mxu0 %v2254
        %3079 = vmatpush2.bf16.xpose.msra.mxu0 %v2253
        %3080 = vmatprep.subr.bf16.mxu0 %v2230
        %3081 = vmatpush2.bf16.xpose.msra.mxu0 %v2229
        %3082 = vmatprep.mubr.bf16.mxu0 %v790
        %3083 = vmatmul.mubr.bf16.gmra.mxu0 %v789
        %v3084 = vpop.f32.mrf.mxu0
        %v3085 = vadd.f32 %v3034, %v3084
        %v3086 = vpop.f32.mrf.mxu0
        %v3087 = vadd.f32 %v3036, %v3086
        %v3088 = vpop.f32.mrf.mxu0
        %v3089 = vadd.f32 %v3038, %v3088
        %v3090 = vpop.f32.mrf.mxu0
        %v3091 = vadd.f32 %v3040, %v3090
        %3092 = vmatprep.mubr.bf16.mxu0 %v814
        %3093 = vmatmul.mubr.bf16.gmra.mxu0 %v813
        %v3094 = vpop.f32.mrf.mxu0
        %v3095 = vadd.f32 %v3044, %v3094
        %v3096 = vpop.f32.mrf.mxu0
        %v3097 = vadd.f32 %v3046, %v3096
        %v3098 = vpop.f32.mrf.mxu0
        %v3099 = vpop.f32.mrf.mxu0
        %3100 = vdwg.mxu0
        %3101 = vmatprep.subr.bf16.mxu0 %v2208
        %3102 = vmatpush1.bf16.xpose.msra.mxu0 %v2207
        %3103 = vmatprep.subr.bf16.mxu0 %v2184
        %3104 = vmatpush1.bf16.xpose.msra.mxu0 %v2183
        %3105 = vmatprep.subr.bf16.mxu0 %v2160
        %3106 = vmatpush1.bf16.xpose.msra.mxu0 %v2159
        %3107 = vmatprep.subr.bf16.mxu0 %v2136
        %3108 = vmatpush1.bf16.xpose.msra.mxu0 %v2135
        %3109 = vmatprep.subr.bf16.mxu0 %v2112
        %3110 = vmatpush1.bf16.xpose.msra.mxu0 %v2111
        %3111 = vmatprep.subr.bf16.mxu0 %v2088
        %3112 = vmatpush1.bf16.xpose.msra.mxu0 %v2087
        %3113 = vmatprep.subr.bf16.mxu0 %v2064
        %3114 = vmatpush1.bf16.xpose.msra.mxu0 %v2063
        %3115 = vmatprep.subr.bf16.mxu0 %v2040
        %3116 = vmatpush1.bf16.xpose.msra.mxu0 %v2039
        %3117 = vmatprep.subr.bf16.mxu0 %v2400
        %3118 = vmatpush2.bf16.xpose.msra.mxu0 %v2399
        %3119 = vmatprep.subr.bf16.mxu0 %v2376
        %3120 = vmatpush2.bf16.xpose.msra.mxu0 %v2375
        %3121 = vmatprep.subr.bf16.mxu0 %v2352
        %3122 = vmatpush2.bf16.xpose.msra.mxu0 %v2351
        %3123 = vmatprep.subr.bf16.mxu0 %v2328
        %3124 = vmatpush2.bf16.xpose.msra.mxu0 %v2327
        %3125 = vmatprep.subr.bf16.mxu0 %v2304
        %3126 = vmatpush2.bf16.xpose.msra.mxu0 %v2303
        %3127 = vmatprep.subr.bf16.mxu0 %v2280
        %3128 = vmatpush2.bf16.xpose.msra.mxu0 %v2279
        %3129 = vmatprep.subr.bf16.mxu0 %v2256
        %3130 = vmatpush2.bf16.xpose.msra.mxu0 %v2255
        %3131 = vmatprep.subr.bf16.mxu0 %v2232
        %3132 = vmatpush2.bf16.xpose.msra.mxu0 %v2231
        %3133 = vmatprep.mubr.bf16.mxu0 %v792
        %3134 = vmatmul.mubr.bf16.gmra.mxu0 %v791
        %v3135 = vpop.f32.mrf.mxu0
        %v3136 = vadd.f32 %v3085, %v3135
        %v3137 = vpop.f32.mrf.mxu0
        %v3138 = vadd.f32 %v3087, %v3137
        %v3139 = vpop.f32.mrf.mxu0
        %v3140 = vadd.f32 %v3089, %v3139
        %v3141 = vpop.f32.mrf.mxu0
        %v3142 = vadd.f32 %v3091, %v3141
        %3143 = vmatprep.mubr.bf16.mxu0 %v816
        %3144 = vmatmul.mubr.bf16.gmra.mxu0 %v815
        %v3145 = vpop.f32.mrf.mxu0
        %v3146 = vadd.f32 %v3095, %v3145
        %v3147 = vpop.f32.mrf.mxu0
        %v3148 = vadd.f32 %v3097, %v3147
        %v3149 = vpop.f32.mrf.mxu0
        %v3150 = vpop.f32.mrf.mxu0
        %3151 = vdwg.mxu0
        %3152 = vmatprep.subr.bf16.mxu0 %v2210
        %3153 = vmatpush1.bf16.xpose.msra.mxu0 %v2209
        %3154 = vmatprep.subr.bf16.mxu0 %v2186
        %3155 = vmatpush1.bf16.xpose.msra.mxu0 %v2185
        %3156 = vmatprep.subr.bf16.mxu0 %v2162
        %3157 = vmatpush1.bf16.xpose.msra.mxu0 %v2161
        %3158 = vmatprep.subr.bf16.mxu0 %v2138
        %3159 = vmatpush1.bf16.xpose.msra.mxu0 %v2137
        %3160 = vmatprep.subr.bf16.mxu0 %v2114
        %3161 = vmatpush1.bf16.xpose.msra.mxu0 %v2113
        %3162 = vmatprep.subr.bf16.mxu0 %v2090
        %3163 = vmatpush1.bf16.xpose.msra.mxu0 %v2089
        %3164 = vmatprep.subr.bf16.mxu0 %v2066
        %3165 = vmatpush1.bf16.xpose.msra.mxu0 %v2065
        %3166 = vmatprep.subr.bf16.mxu0 %v2042
        %3167 = vmatpush1.bf16.xpose.msra.mxu0 %v2041
        %3168 = vmatprep.subr.bf16.mxu0 %v2402
        %3169 = vmatpush2.bf16.xpose.msra.mxu0 %v2401
        %3170 = vmatprep.subr.bf16.mxu0 %v2378
        %3171 = vmatpush2.bf16.xpose.msra.mxu0 %v2377
        %3172 = vmatprep.subr.bf16.mxu0 %v2354
        %3173 = vmatpush2.bf16.xpose.msra.mxu0 %v2353
        %3174 = vmatprep.subr.bf16.mxu0 %v2330
        %3175 = vmatpush2.bf16.xpose.msra.mxu0 %v2329
        %3176 = vmatprep.subr.bf16.mxu0 %v2306
        %3177 = vmatpush2.bf16.xpose.msra.mxu0 %v2305
        %3178 = vmatprep.subr.bf16.mxu0 %v2282
        %3179 = vmatpush2.bf16.xpose.msra.mxu0 %v2281
        %3180 = vmatprep.subr.bf16.mxu0 %v2258
        %3181 = vmatpush2.bf16.xpose.msra.mxu0 %v2257
        %3182 = vmatprep.subr.bf16.mxu0 %v2234
        %3183 = vmatpush2.bf16.xpose.msra.mxu0 %v2233
        %3184 = vmatprep.mubr.bf16.mxu0 %v794
        %3185 = vmatmul.mubr.bf16.gmra.mxu0 %v793
        %v3186 = vpop.f32.mrf.mxu0
        %v3187 = vadd.f32 %v3136, %v3186
        %v3188 = vpop.f32.mrf.mxu0
        %v3189 = vadd.f32 %v3138, %v3188
        %v3190 = vpop.f32.mrf.mxu0
        %v3191 = vadd.f32 %v3140, %v3190
        %v3192 = vpop.f32.mrf.mxu0
        %v3193 = vadd.f32 %v3142, %v3192
        %3194 = vmatprep.mubr.bf16.mxu0 %v818
        %3195 = vmatmul.mubr.bf16.gmra.mxu0 %v817
        %v3196 = vpop.f32.mrf.mxu0
        %v3197 = vadd.f32 %v3146, %v3196
        %v3198 = vpop.f32.mrf.mxu0
        %v3199 = vadd.f32 %v3148, %v3198
        %v3200 = vpop.f32.mrf.mxu0
        %v3201 = vpop.f32.mrf.mxu0
        %3202 = vdwg.mxu0
        %3203 = vmatprep.subr.bf16.mxu0 %v2212
        %3204 = vmatpush1.bf16.xpose.msra.mxu0 %v2211
        %3205 = vmatprep.subr.bf16.mxu0 %v2188
        %3206 = vmatpush1.bf16.xpose.msra.mxu0 %v2187
        %3207 = vmatprep.subr.bf16.mxu0 %v2164
        %3208 = vmatpush1.bf16.xpose.msra.mxu0 %v2163
        %3209 = vmatprep.subr.bf16.mxu0 %v2140
        %3210 = vmatpush1.bf16.xpose.msra.mxu0 %v2139
        %3211 = vmatprep.subr.bf16.mxu0 %v2116
        %3212 = vmatpush1.bf16.xpose.msra.mxu0 %v2115
        %3213 = vmatprep.subr.bf16.mxu0 %v2092
        %3214 = vmatpush1.bf16.xpose.msra.mxu0 %v2091
        %3215 = vmatprep.subr.bf16.mxu0 %v2068
        %3216 = vmatpush1.bf16.xpose.msra.mxu0 %v2067
        %3217 = vmatprep.subr.bf16.mxu0 %v2044
        %3218 = vmatpush1.bf16.xpose.msra.mxu0 %v2043
        %3219 = vmatprep.subr.bf16.mxu0 %v2404
        %3220 = vmatpush2.bf16.xpose.msra.mxu0 %v2403
        %3221 = vmatprep.subr.bf16.mxu0 %v2380
        %3222 = vmatpush2.bf16.xpose.msra.mxu0 %v2379
        %3223 = vmatprep.subr.bf16.mxu0 %v2356
        %3224 = vmatpush2.bf16.xpose.msra.mxu0 %v2355
        %3225 = vmatprep.subr.bf16.mxu0 %v2332
        %3226 = vmatpush2.bf16.xpose.msra.mxu0 %v2331
        %3227 = vmatprep.subr.bf16.mxu0 %v2308
        %3228 = vmatpush2.bf16.xpose.msra.mxu0 %v2307
        %3229 = vmatprep.subr.bf16.mxu0 %v2284
        %3230 = vmatpush2.bf16.xpose.msra.mxu0 %v2283
        %3231 = vmatprep.subr.bf16.mxu0 %v2260
        %3232 = vmatpush2.bf16.xpose.msra.mxu0 %v2259
        %3233 = vmatprep.subr.bf16.mxu0 %v2236
        %3234 = vmatpush2.bf16.xpose.msra.mxu0 %v2235
        %3235 = vmatprep.mubr.bf16.mxu0 %v796
        %3236 = vmatmul.mubr.bf16.gmra.mxu0 %v795
        %v3237 = vpop.f32.mrf.mxu0
        %v3238 = vadd.f32 %v3187, %v3237
        %v3239 = vpop.f32.mrf.mxu0
        %v3240 = vadd.f32 %v3189, %v3239
        %v3241 = vpop.f32.mrf.mxu0
        %v3242 = vadd.f32 %v3191, %v3241
        %v3243 = vpop.f32.mrf.mxu0
        %v3244 = vadd.f32 %v3193, %v3243
        %3245 = vmatprep.mubr.bf16.mxu0 %v820
        %3246 = vmatmul.mubr.bf16.gmra.mxu0 %v819
        %v3247 = vpop.f32.mrf.mxu0
        %v3248 = vadd.f32 %v3197, %v3247
        %v3249 = vpop.f32.mrf.mxu0
        %v3250 = vadd.f32 %v3199, %v3249
        %v3251 = vpop.f32.mrf.mxu0
        %v3252 = vpop.f32.mrf.mxu0
        %3253 = vdwg.mxu0
        %3254 = vmatprep.subr.bf16.mxu0 %v2214
        %3255 = vmatpush1.bf16.xpose.msra.mxu0 %v2213
        %3256 = vmatprep.subr.bf16.mxu0 %v2190
        %3257 = vmatpush1.bf16.xpose.msra.mxu0 %v2189
        %3258 = vmatprep.subr.bf16.mxu0 %v2166
        %3259 = vmatpush1.bf16.xpose.msra.mxu0 %v2165
        %3260 = vmatprep.subr.bf16.mxu0 %v2142
        %3261 = vmatpush1.bf16.xpose.msra.mxu0 %v2141
        %3262 = vmatprep.subr.bf16.mxu0 %v2118
        %3263 = vmatpush1.bf16.xpose.msra.mxu0 %v2117
        %3264 = vmatprep.subr.bf16.mxu0 %v2094
        %3265 = vmatpush1.bf16.xpose.msra.mxu0 %v2093
        %3266 = vmatprep.subr.bf16.mxu0 %v2070
        %3267 = vmatpush1.bf16.xpose.msra.mxu0 %v2069
        %3268 = vmatprep.subr.bf16.mxu0 %v2046
        %3269 = vmatpush1.bf16.xpose.msra.mxu0 %v2045
        %3270 = vmatprep.subr.bf16.mxu0 %v2406
        %3271 = vmatpush2.bf16.xpose.msra.mxu0 %v2405
        %3272 = vmatprep.subr.bf16.mxu0 %v2382
        %3273 = vmatpush2.bf16.xpose.msra.mxu0 %v2381
        %3274 = vmatprep.subr.bf16.mxu0 %v2358
        %3275 = vmatpush2.bf16.xpose.msra.mxu0 %v2357
        %3276 = vmatprep.subr.bf16.mxu0 %v2334
        %3277 = vmatpush2.bf16.xpose.msra.mxu0 %v2333
        %3278 = vmatprep.subr.bf16.mxu0 %v2310
        %3279 = vmatpush2.bf16.xpose.msra.mxu0 %v2309
        %3280 = vmatprep.subr.bf16.mxu0 %v2286
        %3281 = vmatpush2.bf16.xpose.msra.mxu0 %v2285
        %3282 = vmatprep.subr.bf16.mxu0 %v2262
        %3283 = vmatpush2.bf16.xpose.msra.mxu0 %v2261
        %3284 = vmatprep.subr.bf16.mxu0 %v2238
        %3285 = vmatpush2.bf16.xpose.msra.mxu0 %v2237
        %3286 = vmatprep.mubr.bf16.mxu0 %v798
        %3287 = vmatmul.mubr.bf16.gmra.mxu0 %v797
        %v3288 = vpop.f32.mrf.mxu0
        %v3289 = vadd.f32 %v3238, %v3288
        %v3290 = vpop.f32.mrf.mxu0
        %v3291 = vadd.f32 %v3240, %v3290
        %v3292 = vpop.f32.mrf.mxu0
        %v3293 = vadd.f32 %v3242, %v3292
        %v3294 = vpop.f32.mrf.mxu0
        %v3295 = vadd.f32 %v3244, %v3294
        %3296 = vmatprep.mubr.bf16.mxu0 %v822
        %3297 = vmatmul.mubr.bf16.gmra.mxu0 %v821
        %v3298 = vpop.f32.mrf.mxu0
        %v3299 = vadd.f32 %v3248, %v3298
        %v3300 = vpop.f32.mrf.mxu0
        %v3301 = vadd.f32 %v3250, %v3300
        %v3302 = vpop.f32.mrf.mxu0
        %v3303 = vpop.f32.mrf.mxu0
        %3304 = vdwg.mxu0
        %3305 = vmatprep.subr.bf16.mxu0 %v2216
        %3306 = vmatpush1.bf16.xpose.msra.mxu0 %v2215
        %3307 = vmatprep.subr.bf16.mxu0 %v2192
        %3308 = vmatpush1.bf16.xpose.msra.mxu0 %v2191
        %3309 = vmatprep.subr.bf16.mxu0 %v2168
        %3310 = vmatpush1.bf16.xpose.msra.mxu0 %v2167
        %3311 = vmatprep.subr.bf16.mxu0 %v2144
        %3312 = vmatpush1.bf16.xpose.msra.mxu0 %v2143
        %3313 = vmatprep.subr.bf16.mxu0 %v2120
        %3314 = vmatpush1.bf16.xpose.msra.mxu0 %v2119
        %3315 = vmatprep.subr.bf16.mxu0 %v2096
        %3316 = vmatpush1.bf16.xpose.msra.mxu0 %v2095
        %3317 = vmatprep.subr.bf16.mxu0 %v2072
        %3318 = vmatpush1.bf16.xpose.msra.mxu0 %v2071
        %3319 = vmatprep.subr.bf16.mxu0 %v2048
        %3320 = vmatpush1.bf16.xpose.msra.mxu0 %v2047
        %3321 = vmatprep.subr.bf16.mxu0 %v2408
        %3322 = vmatpush2.bf16.xpose.msra.mxu0 %v2407
        %3323 = vmatprep.subr.bf16.mxu0 %v2384
        %3324 = vmatpush2.bf16.xpose.msra.mxu0 %v2383
        %3325 = vmatprep.subr.bf16.mxu0 %v2360
        %3326 = vmatpush2.bf16.xpose.msra.mxu0 %v2359
        %3327 = vmatprep.subr.bf16.mxu0 %v2336
        %3328 = vmatpush2.bf16.xpose.msra.mxu0 %v2335
        %3329 = vmatprep.subr.bf16.mxu0 %v2312
        %3330 = vmatpush2.bf16.xpose.msra.mxu0 %v2311
        %3331 = vmatprep.subr.bf16.mxu0 %v2288
        %3332 = vmatpush2.bf16.xpose.msra.mxu0 %v2287
        %3333 = vmatprep.subr.bf16.mxu0 %v2264
        %3334 = vmatpush2.bf16.xpose.msra.mxu0 %v2263
        %3335 = vmatprep.subr.bf16.mxu0 %v2240
        %3336 = vmatpush2.bf16.xpose.msra.mxu0 %v2239
        %3337 = vmatprep.mubr.bf16.mxu0 %v800
        %3338 = vmatmul.mubr.bf16.gmra.mxu0 %v799
        %v3339 = vpop.f32.mrf.mxu0
        %v3340 = vadd.f32 %v3289, %v3339
        %v3341 = vpop.f32.mrf.mxu0
        %v3342 = vadd.f32 %v3291, %v3341
        %v3343 = vpop.f32.mrf.mxu0
        %v3344 = vadd.f32 %v3293, %v3343
        %v3345 = vpop.f32.mrf.mxu0
        %v3346 = vadd.f32 %v3295, %v3345
        %3347 = vmatprep.mubr.bf16.mxu0 %v824
        %3348 = vmatmul.mubr.bf16.gmra.mxu0 %v823
        %v3349 = vpop.f32.mrf.mxu0
        %v3350 = vadd.f32 %v3299, %v3349
        %v3351 = vpop.f32.mrf.mxu0
        %v3352 = vadd.f32 %v3301, %v3351
        %v3353 = vpop.f32.mrf.mxu0
        %v3354 = vpop.f32.mrf.mxu0
        %3355 = vdwg.mxu0
        %3356 = vmatprep.subr.bf16.mxu0 %v2218
        %3357 = vmatpush1.bf16.xpose.msra.mxu0 %v2217
        %3358 = vmatprep.subr.bf16.mxu0 %v2194
        %3359 = vmatpush1.bf16.xpose.msra.mxu0 %v2193
        %3360 = vmatprep.subr.bf16.mxu0 %v2170
        %3361 = vmatpush1.bf16.xpose.msra.mxu0 %v2169
        %3362 = vmatprep.subr.bf16.mxu0 %v2146
        %3363 = vmatpush1.bf16.xpose.msra.mxu0 %v2145
        %3364 = vmatprep.subr.bf16.mxu0 %v2122
        %3365 = vmatpush1.bf16.xpose.msra.mxu0 %v2121
        %3366 = vmatprep.subr.bf16.mxu0 %v2098
        %3367 = vmatpush1.bf16.xpose.msra.mxu0 %v2097
        %3368 = vmatprep.subr.bf16.mxu0 %v2074
        %3369 = vmatpush1.bf16.xpose.msra.mxu0 %v2073
        %3370 = vmatprep.subr.bf16.mxu0 %v2050
        %3371 = vmatpush1.bf16.xpose.msra.mxu0 %v2049
        %3372 = vmatprep.subr.bf16.mxu0 %v2410
        %3373 = vmatpush2.bf16.xpose.msra.mxu0 %v2409
        %3374 = vmatprep.subr.bf16.mxu0 %v2386
        %3375 = vmatpush2.bf16.xpose.msra.mxu0 %v2385
        %3376 = vmatprep.subr.bf16.mxu0 %v2362
        %3377 = vmatpush2.bf16.xpose.msra.mxu0 %v2361
        %3378 = vmatprep.subr.bf16.mxu0 %v2338
        %3379 = vmatpush2.bf16.xpose.msra.mxu0 %v2337
        %3380 = vmatprep.subr.bf16.mxu0 %v2314
        %3381 = vmatpush2.bf16.xpose.msra.mxu0 %v2313
        %3382 = vmatprep.subr.bf16.mxu0 %v2290
        %3383 = vmatpush2.bf16.xpose.msra.mxu0 %v2289
        %3384 = vmatprep.subr.bf16.mxu0 %v2266
        %3385 = vmatpush2.bf16.xpose.msra.mxu0 %v2265
        %3386 = vmatprep.subr.bf16.mxu0 %v2242
        %3387 = vmatpush2.bf16.xpose.msra.mxu0 %v2241
        %3388 = vmatprep.mubr.bf16.mxu0 %v802
        %3389 = vmatmul.mubr.bf16.gmra.mxu0 %v801
        %v3390 = vpop.f32.mrf.mxu0
        %v3391 = vadd.f32 %v3340, %v3390
        %v3392 = vpop.f32.mrf.mxu0
        %v3393 = vadd.f32 %v3342, %v3392
        %v3394 = vpop.f32.mrf.mxu0
        %v3395 = vadd.f32 %v3344, %v3394
        %v3396 = vpop.f32.mrf.mxu0
        %v3397 = vadd.f32 %v3346, %v3396
        %3398 = vmatprep.mubr.bf16.mxu0 %v826
        %3399 = vmatmul.mubr.bf16.gmra.mxu0 %v825
        %v3400 = vpop.f32.mrf.mxu0
        %v3401 = vadd.f32 %v3350, %v3400
        %v3402 = vpop.f32.mrf.mxu0
        %v3403 = vadd.f32 %v3352, %v3402
        %v3404 = vpop.f32.mrf.mxu0
        %v3405 = vpop.f32.mrf.mxu0
        %3406 = vdwg.mxu0
        %v3407 = vadd.f32 %v665, %v3391
        %v3408 = vadd.f32 %v666, %v3393
        %v3409 = vadd.f32 %v667, %v3395
        %v3410 = vadd.f32 %v668, %v3397
        %v3411 = vadd.f32 %v669, %v3401
        %v3412 = vadd.f32 %v670, %v3403
        %3413 = vst [vmem:[#allocation2] sm:$0xff] %v3407
        %3414 = vst [vmem:[#allocation2 + $0x8] sm:$0xff] %v3408
        %3415 = vst [vmem:[#allocation2 + $0x10] sm:$0xff] %v3409
        %3416 = vst [vmem:[#allocation2 + $0x18] sm:$0xff] %v3410
        %3417 = vst [vmem:[#allocation2 + $0x20] sm:$0xff] %v3411
        %3418 = vst [vmem:[#allocation2 + $0x28] sm:$0xff] %v3412
        %v3419 = vld [vmem:[#allocation3] sm:$0x1]
        %v3420 = vunpack.c.l.bf16 %v245
        %v3421 = vunpack.c.h.bf16 %v245
        %v3422 = vunpack.c.l.bf16 %v246
        %v3423 = vunpack.c.h.bf16 %v246
        %v3424 = vunpack.c.l.bf16 %v247
        %v3425 = vunpack.c.h.bf16 %v247
        %v3426 = vunpack.c.l.bf16 %v248
        %v3427 = vunpack.c.h.bf16 %v248
        %v3428 = vunpack.c.l.bf16 %v249
        %v3429 = vunpack.c.h.bf16 %v249
        %v3430 = vunpack.c.l.bf16 %v250
        %v3431 = vunpack.c.h.bf16 %v250
        %v3432 = vunpack.c.l.bf16 %v251
        %v3433 = vunpack.c.h.bf16 %v251
        %v3434 = vunpack.c.l.bf16 %v252
        %v3435 = vunpack.c.h.bf16 %v252
        %v3436 = vunpack.c.l.bf16 %v253
        %v3437 = vunpack.c.h.bf16 %v253
        %v3438 = vunpack.c.l.bf16 %v254
        %v3439 = vunpack.c.h.bf16 %v254
        %v3440 = vunpack.c.l.bf16 %v255
        %v3441 = vunpack.c.h.bf16 %v255
        %v3442 = vunpack.c.l.bf16 %v256
        %v3443 = vunpack.c.h.bf16 %v256
        %v3444 = vunpack.c.l.bf16 %v257
        %v3445 = vunpack.c.h.bf16 %v257
        %v3446 = vunpack.c.l.bf16 %v258
        %v3447 = vunpack.c.h.bf16 %v258
        %v3448 = vunpack.c.l.bf16 %v259
        %v3449 = vunpack.c.h.bf16 %v259
        %v3450 = vunpack.c.l.bf16 %v260
        %v3451 = vunpack.c.h.bf16 %v260
        %v3452 = vunpack.c.l.bf16 %v261
        %v3453 = vunpack.c.h.bf16 %v261
        %v3454 = vunpack.c.l.bf16 %v262
        %v3455 = vunpack.c.h.bf16 %v262
        %v3456 = vunpack.c.l.bf16 %v263
        %v3457 = vunpack.c.h.bf16 %v263
        %v3458 = vunpack.c.l.bf16 %v264
        %v3459 = vunpack.c.h.bf16 %v264
        %v3460 = vunpack.c.l.bf16 %v265
        %v3461 = vunpack.c.h.bf16 %v265
        %v3462 = vunpack.c.l.bf16 %v266
        %v3463 = vunpack.c.h.bf16 %v266
        %v3464 = vunpack.c.l.bf16 %v267
        %v3465 = vunpack.c.h.bf16 %v267
        %v3466 = vunpack.c.l.bf16 %v268
        %v3467 = vunpack.c.h.bf16 %v268
        %v3468 = vunpack.c.l.bf16 %v269
        %v3469 = vunpack.c.h.bf16 %v269
        %v3470 = vunpack.c.l.bf16 %v270
        %v3471 = vunpack.c.h.bf16 %v270
        %v3472 = vunpack.c.l.bf16 %v271
        %v3473 = vunpack.c.h.bf16 %v271
        %v3474 = vunpack.c.l.bf16 %v272
        %v3475 = vunpack.c.h.bf16 %v272
        %v3476 = vunpack.c.l.bf16 %v273
        %v3477 = vunpack.c.h.bf16 %v273
        %v3478 = vunpack.c.l.bf16 %v274
        %v3479 = vunpack.c.h.bf16 %v274
        %v3480 = vunpack.c.l.bf16 %v275
        %v3481 = vunpack.c.h.bf16 %v275
        %v3482 = vunpack.c.l.bf16 %v276
        %v3483 = vunpack.c.h.bf16 %v276
        %v3484 = vunpack.c.l.bf16 %v277
        %v3485 = vunpack.c.h.bf16 %v277
        %v3486 = vunpack.c.l.bf16 %v278
        %v3487 = vunpack.c.h.bf16 %v278
        %v3488 = vunpack.c.l.bf16 %v279
        %v3489 = vunpack.c.h.bf16 %v279
        %v3490 = vunpack.c.l.bf16 %v280
        %v3491 = vunpack.c.h.bf16 %v280
        %v3492 = vand.u32 2147483647, %v3420
        %v3493 = vand.u32 2147483647, %v3421
        %v3494 = vand.u32 2147483647, %v3422
        %v3495 = vand.u32 2147483647, %v3423
        %v3496 = vand.u32 2147483647, %v3424
        %v3497 = vand.u32 2147483647, %v3425
        %v3498 = vand.u32 2147483647, %v3426
        %v3499 = vand.u32 2147483647, %v3427
        %v3500 = vand.u32 2147483647, %v3428
        %v3501 = vand.u32 2147483647, %v3429
        %v3502 = vand.u32 2147483647, %v3430
        %v3503 = vand.u32 2147483647, %v3431
        %v3504 = vand.u32 2147483647, %v3432
        %v3505 = vand.u32 2147483647, %v3433
        %v3506 = vand.u32 2147483647, %v3434
        %v3507 = vand.u32 2147483647, %v3435
        %v3508 = vand.u32 2147483647, %v3436
        %v3509 = vand.u32 2147483647, %v3437
        %v3510 = vand.u32 2147483647, %v3438
        %v3511 = vand.u32 2147483647, %v3439
        %v3512 = vand.u32 2147483647, %v3440
        %v3513 = vand.u32 2147483647, %v3441
        %v3514 = vand.u32 2147483647, %v3442
        %v3515 = vand.u32 2147483647, %v3443
        %v3516 = vand.u32 2147483647, %v3444
        %v3517 = vand.u32 2147483647, %v3445
        %v3518 = vand.u32 2147483647, %v3446
        %v3519 = vand.u32 2147483647, %v3447
        %v3520 = vand.u32 2147483647, %v3448
        %v3521 = vand.u32 2147483647, %v3449
        %v3522 = vand.u32 2147483647, %v3450
        %v3523 = vand.u32 2147483647, %v3451
        %v3524 = vand.u32 2147483647, %v3452
        %v3525 = vand.u32 2147483647, %v3453
        %v3526 = vand.u32 2147483647, %v3454
        %v3527 = vand.u32 2147483647, %v3455
        %v3528 = vand.u32 2147483647, %v3456
        %v3529 = vand.u32 2147483647, %v3457
        %v3530 = vand.u32 2147483647, %v3458
        %v3531 = vand.u32 2147483647, %v3459
        %v3532 = vand.u32 2147483647, %v3460
        %v3533 = vand.u32 2147483647, %v3461
        %v3534 = vand.u32 2147483647, %v3462
        %v3535 = vand.u32 2147483647, %v3463
        %v3536 = vand.u32 2147483647, %v3464
        %v3537 = vand.u32 2147483647, %v3465
        %v3538 = vand.u32 2147483647, %v3466
        %v3539 = vand.u32 2147483647, %v3467
        %v3540 = vand.u32 2147483647, %v3468
        %v3541 = vand.u32 2147483647, %v3469
        %v3542 = vand.u32 2147483647, %v3470
        %v3543 = vand.u32 2147483647, %v3471
        %v3544 = vand.u32 2147483647, %v3472
        %v3545 = vand.u32 2147483647, %v3473
        %v3546 = vand.u32 2147483647, %v3474
        %v3547 = vand.u32 2147483647, %v3475
        %v3548 = vand.u32 2147483647, %v3476
        %v3549 = vand.u32 2147483647, %v3477
        %v3550 = vand.u32 2147483647, %v3478
        %v3551 = vand.u32 2147483647, %v3479
        %v3552 = vand.u32 2147483647, %v3480
        %v3553 = vand.u32 2147483647, %v3481
        %v3554 = vand.u32 2147483647, %v3482
        %v3555 = vand.u32 2147483647, %v3483
        %v3556 = vand.u32 2147483647, %v3484
        %v3557 = vand.u32 2147483647, %v3485
        %v3558 = vand.u32 2147483647, %v3486
        %v3559 = vand.u32 2147483647, %v3487
        %v3560 = vand.u32 2147483647, %v3488
        %v3561 = vand.u32 2147483647, %v3489
        %v3562 = vand.u32 2147483647, %v3490
        %v3563 = vand.u32 2147483647, %v3491
        %v3564 = vadd.f32 %v3492, %v3493
        %v3565 = vadd.f32 %v3564, %v3494
        %v3566 = vadd.f32 %v3565, %v3495
        %v3567 = vadd.f32 %v3566, %v3496
        %v3568 = vadd.f32 %v3567, %v3497
        %v3569 = vadd.f32 %v3568, %v3498
        %v3570 = vadd.f32 %v3569, %v3499
        %v3571 = vadd.f32 %v3570, %v3500
        %v3572 = vadd.f32 %v3571, %v3501
        %v3573 = vadd.f32 %v3572, %v3502
        %v3574 = vadd.f32 %v3573, %v3503
        %v3575 = vadd.f32 %v3574, %v3504
        %v3576 = vadd.f32 %v3575, %v3505
        %v3577 = vadd.f32 %v3576, %v3506
        %v3578 = vadd.f32 %v3577, %v3507
        %v3579 = vadd.f32 %v3578, %v3508
        %v3580 = vadd.f32 %v3579, %v3509
        %v3581 = vadd.f32 %v3580, %v3510
        %v3582 = vadd.f32 %v3581, %v3511
        %v3583 = vadd.f32 %v3582, %v3512
        %v3584 = vadd.f32 %v3583, %v3513
        %v3585 = vadd.f32 %v3584, %v3514
        %v3586 = vadd.f32 %v3585, %v3515
        %v3587 = vadd.f32 %v3586, %v3516
        %v3588 = vadd.f32 %v3587, %v3517
        %v3589 = vadd.f32 %v3588, %v3518
        %v3590 = vadd.f32 %v3589, %v3519
        %v3591 = vadd.f32 %v3590, %v3520
        %v3592 = vadd.f32 %v3591, %v3521
        %v3593 = vadd.f32 %v3592, %v3522
        %v3594 = vadd.f32 %v3593, %v3523
        %v3595 = vadd.f32 %v3594, %v3524
        %v3596 = vadd.f32 %v3595, %v3525
        %v3597 = vadd.f32 %v3596, %v3526
        %v3598 = vadd.f32 %v3597, %v3527
        %v3599 = vadd.f32 %v3598, %v3528
        %v3600 = vadd.f32 %v3599, %v3529
        %v3601 = vadd.f32 %v3600, %v3530
        %v3602 = vadd.f32 %v3601, %v3531
        %v3603 = vadd.f32 %v3602, %v3532
        %v3604 = vadd.f32 %v3603, %v3533
        %v3605 = vadd.f32 %v3604, %v3534
        %v3606 = vadd.f32 %v3605, %v3535
        %v3607 = vadd.f32 %v3606, %v3536
        %v3608 = vadd.f32 %v3607, %v3537
        %v3609 = vadd.f32 %v3608, %v3538
        %v3610 = vadd.f32 %v3609, %v3539
        %v3611 = vadd.f32 %v3610, %v3540
        %v3612 = vadd.f32 %v3611, %v3541
        %v3613 = vadd.f32 %v3612, %v3542
        %v3614 = vadd.f32 %v3613, %v3543
        %v3615 = vadd.f32 %v3614, %v3544
        %v3616 = vadd.f32 %v3615, %v3545
        %v3617 = vadd.f32 %v3616, %v3546
        %v3618 = vadd.f32 %v3617, %v3547
        %v3619 = vadd.f32 %v3618, %v3548
        %v3620 = vadd.f32 %v3619, %v3549
        %v3621 = vadd.f32 %v3620, %v3550
        %v3622 = vadd.f32 %v3621, %v3551
        %v3623 = vadd.f32 %v3622, %v3552
        %v3624 = vadd.f32 %v3623, %v3553
        %v3625 = vadd.f32 %v3624, %v3554
        %v3626 = vadd.f32 %v3625, %v3555
        %v3627 = vadd.f32 %v3626, %v3556
        %v3628 = vadd.f32 %v3627, %v3557
        %v3629 = vadd.f32 %v3628, %v3558
        %v3630 = vadd.f32 %v3629, %v3559
        %v3631 = vadd.f32 %v3630, %v3560
        %v3632 = vadd.f32 %v3631, %v3561
        %v3633 = vadd.f32 %v3632, %v3562
        %v3634 = vadd.f32 %v3633, %v3563
        %3635 = vadd.xlane.f32.xlu0 %v3634
        %v3636 = vpop.xlane.xlu0 %3635
        %v3637 = vrot.slane %v3636, 4
        %v3638 = vadd.f32 %v3636, %v3637
        %v3639 = vrot.slane %v3638, 2
        %v3640 = vadd.f32 %v3638, %v3639
        %v3641 = vrot.slane %v3640, 1
        %v3642 = vadd.f32 %v3640, %v3641
        %s3643 = vtos %v3642
        %v3644 = vstv %s3643
        %v3645 = vadd.f32 %v3419, %v3644
        %vm3646 = vcmask 0
        %3647 = vst.msk [vmem:[#allocation3] sm:$0x1] %vm3646, %v3645
        %p3648 = scmp.eq.s32.totalorder %s21, 3
        // Predicated region
        $region49: #{tpu_custom_call.1} parent=31 // pred_check
          %p3649 = pneg %p3648
        $region50: #{tpu_custom_call.1} parent=31 // pred_check_branch
          %3651 = sbr.rel (%p3649) target = $region52
        $region51: #{tpu_custom_call.1} parent=31 // pred_region
          %v3652 = vld [vmem:[#allocation2] sm:$0xff]
          %v3653 = vld [vmem:[#allocation2 + $0x8] sm:$0xff]
          %v3654 = vld [vmem:[#allocation2 + $0x10] sm:$0xff]
          %v3655 = vld [vmem:[#allocation2 + $0x18] sm:$0xff]
          %v3656 = vld [vmem:[#allocation2 + $0x20] sm:$0xff]
          %v3657 = vld [vmem:[#allocation2 + $0x28] sm:$0xff]
          %v3658 = vpack.c.bf16 %v3654, %v3652
          %v3659 = vpack.c.bf16 %v3655, %v3653
          %v3660 = vpack.c.bf16 %v3656, %v3656
          %v3661 = vpack.c.bf16 %v3657, %v3657
          %v3662 = vld [vmem:[#allocation9] sm:$0xff]
          %v3663 = vld [vmem:[#allocation9 + $0x8] sm:$0xff]
          %v3664 = vld [vmem:[#allocation9 + $0x10] sm:$0xff]
          %v3665 = vld [vmem:[#allocation9 + $0x18] sm:$0xff]
          %v3666 = vld [vmem:[#allocation9 + $0x20] sm:$0xff]
          %v3667 = vld [vmem:[#allocation9 + $0x28] sm:$0xff]
          %v3668 = vld [vmem:[#allocation9 + $0x30] sm:$0xff]
          %v3669 = vld [vmem:[#allocation9 + $0x38] sm:$0xff]
          %v3670 = vld [vmem:[#allocation9 + $0x40] sm:$0xff]
          %v3671 = vld [vmem:[#allocation9 + $0x48] sm:$0xff]
          %v3672 = vld [vmem:[#allocation9 + $0x50] sm:$0xff]
          %v3673 = vld [vmem:[#allocation9 + $0x58] sm:$0xff]
          %v3674 = vld [vmem:[#allocation9 + $0x60] sm:$0xff]
          %v3675 = vld [vmem:[#allocation9 + $0x68] sm:$0xff]
          %v3676 = vld [vmem:[#allocation9 + $0x70] sm:$0xff]
          %v3677 = vld [vmem:[#allocation9 + $0x78] sm:$0xff]
          %v3678 = vld [vmem:[#allocation9 + $0x80] sm:$0xff]
          %v3679 = vld [vmem:[#allocation9 + $0x88] sm:$0xff]
          %v3680 = vld [vmem:[#allocation9 + $0x90] sm:$0xff]
          %v3681 = vld [vmem:[#allocation9 + $0x98] sm:$0xff]
          %v3682 = vld [vmem:[#allocation9 + $0xa0] sm:$0xff]
          %v3683 = vld [vmem:[#allocation9 + $0xa8] sm:$0xff]
          %v3684 = vld [vmem:[#allocation9 + $0xb0] sm:$0xff]
          %v3685 = vld [vmem:[#allocation9 + $0xb8] sm:$0xff]
          %v3686 = vld [vmem:[#allocation9 + $0xc0] sm:$0xff]
          %v3687 = vld [vmem:[#allocation9 + $0xc8] sm:$0xff]
          %v3688 = vld [vmem:[#allocation9 + $0xd0] sm:$0xff]
          %v3689 = vld [vmem:[#allocation9 + $0xd8] sm:$0xff]
          %v3690 = vld [vmem:[#allocation9 + $0xe0] sm:$0xff]
          %v3691 = vld [vmem:[#allocation9 + $0xe8] sm:$0xff]
          %v3692 = vld [vmem:[#allocation9 + $0xf0] sm:$0xff]
          %v3693 = vld [vmem:[#allocation9 + $0xf8] sm:$0xff]
          %v3726 = vunpack.c.l.b16 %v3662
          %v3727 = vunpack.c.h.b16 %v3662
          %v3728 = vunpack.c.l.b16 %v3663
          %v3729 = vunpack.c.h.b16 %v3663
          %v3730 = vunpack.c.l.b16 %v3664
          %v3731 = vunpack.c.h.b16 %v3664
          %v3732 = vunpack.c.l.b16 %v3665
          %v3733 = vunpack.c.h.b16 %v3665
          %v3734 = vunpack.c.l.b16 %v3666
          %v3735 = vunpack.c.h.b16 %v3666
          %v3736 = vunpack.c.l.b16 %v3667
          %v3737 = vunpack.c.h.b16 %v3667
          %v3738 = vunpack.c.l.b16 %v3668
          %v3739 = vunpack.c.h.b16 %v3668
          %v3740 = vunpack.c.l.b16 %v3669
          %v3741 = vunpack.c.h.b16 %v3669
          %v3742 = vunpack.c.l.b16 %v3670
          %v3743 = vunpack.c.h.b16 %v3670
          %v3744 = vunpack.c.l.b16 %v3671
          %v3745 = vunpack.c.h.b16 %v3671
          %v3746 = vunpack.c.l.b16 %v3672
          %v3747 = vunpack.c.h.b16 %v3672
          %v3748 = vunpack.c.l.b16 %v3673
          %v3749 = vunpack.c.h.b16 %v3673
          %v3750 = vunpack.c.l.b16 %v3674
          %v3751 = vunpack.c.h.b16 %v3674
          %v3752 = vunpack.c.l.b16 %v3675
          %v3753 = vunpack.c.h.b16 %v3675
          %v3754 = vunpack.c.l.b16 %v3676
          %v3755 = vunpack.c.h.b16 %v3676
          %v3756 = vunpack.c.l.b16 %v3677
          %v3757 = vunpack.c.h.b16 %v3677
          %v3758 = vunpack.c.l.b16 %v3678
          %v3759 = vunpack.c.h.b16 %v3678
          %v3760 = vunpack.c.l.b16 %v3679
          %v3761 = vunpack.c.h.b16 %v3679
          %v3762 = vunpack.c.l.b16 %v3680
          %v3763 = vunpack.c.h.b16 %v3680
          %v3764 = vunpack.c.l.b16 %v3681
          %v3765 = vunpack.c.h.b16 %v3681
          %v3766 = vunpack.c.l.b16 %v3682
          %v3767 = vunpack.c.h.b16 %v3682
          %v3768 = vunpack.c.l.b16 %v3683
          %v3769 = vunpack.c.h.b16 %v3683
          %v3770 = vunpack.c.l.b16 %v3684
          %v3771 = vunpack.c.h.b16 %v3684
          %v3772 = vunpack.c.l.b16 %v3685
          %v3773 = vunpack.c.h.b16 %v3685
          %v3774 = vunpack.c.l.b16 %v3686
          %v3775 = vunpack.c.h.b16 %v3686
          %v3776 = vunpack.c.l.b16 %v3687
          %v3777 = vunpack.c.h.b16 %v3687
          %v3778 = vunpack.c.l.b16 %v3688
          %v3779 = vunpack.c.h.b16 %v3688
          %v3780 = vunpack.c.l.b16 %v3689
          %v3781 = vunpack.c.h.b16 %v3689
          %v3782 = vunpack.c.l.b16 %v3690
          %v3783 = vunpack.c.h.b16 %v3690
          %v3784 = vunpack.c.l.b16 %v3691
          %v3785 = vunpack.c.h.b16 %v3691
          %v3786 = vunpack.c.l.b16 %v3692
          %v3787 = vunpack.c.h.b16 %v3692
          %v3788 = vunpack.c.l.b16 %v3693
          %v3789 = vunpack.c.h.b16 %v3693
          %v3790 = vpack.c.b16 %v3728, %v3726
          %v3791 = vpack.c.b16 %v3729, %v3727
          %v3792 = vpack.c.b16 %v3732, %v3730
          %v3793 = vpack.c.b16 %v3733, %v3731
          %v3794 = vpack.c.b16 %v3736, %v3734
          %v3795 = vpack.c.b16 %v3737, %v3735
          %v3796 = vpack.c.b16 %v3740, %v3738
          %v3797 = vpack.c.b16 %v3741, %v3739
          %v3798 = vpack.c.b16 %v3744, %v3742
          %v3799 = vpack.c.b16 %v3745, %v3743
          %v3800 = vpack.c.b16 %v3748, %v3746
          %v3801 = vpack.c.b16 %v3749, %v3747
          %v3802 = vpack.c.b16 %v3752, %v3750
          %v3803 = vpack.c.b16 %v3753, %v3751
          %v3804 = vpack.c.b16 %v3756, %v3754
          %v3805 = vpack.c.b16 %v3757, %v3755
          %v3806 = vpack.c.b16 %v3760, %v3758
          %v3807 = vpack.c.b16 %v3761, %v3759
          %v3808 = vpack.c.b16 %v3764, %v3762
          %v3809 = vpack.c.b16 %v3765, %v3763
          %v3810 = vpack.c.b16 %v3768, %v3766
          %v3811 = vpack.c.b16 %v3769, %v3767
          %v3812 = vpack.c.b16 %v3772, %v3770
          %v3813 = vpack.c.b16 %v3773, %v3771
          %v3814 = vpack.c.b16 %v3776, %v3774
          %v3815 = vpack.c.b16 %v3777, %v3775
          %v3816 = vpack.c.b16 %v3780, %v3778
          %v3817 = vpack.c.b16 %v3781, %v3779
          %v3818 = vpack.c.b16 %v3784, %v3782
          %v3819 = vpack.c.b16 %v3785, %v3783
          %v3820 = vpack.c.b16 %v3788, %v3786
          %v3821 = vpack.c.b16 %v3789, %v3787
          %3854 = vmatprep.subr.bf16.mxu0 %v3805
          %3855 = vmatpush1.bf16.xpose.msra.mxu0 %v3804
          %3856 = vmatprep.subr.bf16.mxu0 %v3803
          %3857 = vmatpush1.bf16.xpose.msra.mxu0 %v3802
          %3858 = vmatprep.subr.bf16.mxu0 %v3801
          %3859 = vmatpush1.bf16.xpose.msra.mxu0 %v3800
          %3860 = vmatprep.subr.bf16.mxu0 %v3799
          %3861 = vmatpush1.bf16.xpose.msra.mxu0 %v3798
          %3862 = vmatprep.subr.bf16.mxu0 %v3797
          %3863 = vmatpush1.bf16.xpose.msra.mxu0 %v3796
          %3864 = vmatprep.subr.bf16.mxu0 %v3795
          %3865 = vmatpush1.bf16.xpose.msra.mxu0 %v3794
          %3866 = vmatprep.subr.bf16.mxu0 %v3793
          %3867 = vmatpush1.bf16.xpose.msra.mxu0 %v3792
          %3868 = vmatprep.subr.bf16.mxu0 %v3791
          %3869 = vmatpush1.bf16.xpose.msra.mxu0 %v3790
          %3870 = vmatprep.subr.bf16.mxu0 %v3821
          %3871 = vmatpush2.bf16.xpose.msra.mxu0 %v3820
          %3872 = vmatprep.subr.bf16.mxu0 %v3819
          %3873 = vmatpush2.bf16.xpose.msra.mxu0 %v3818
          %3874 = vmatprep.subr.bf16.mxu0 %v3817
          %3875 = vmatpush2.bf16.xpose.msra.mxu0 %v3816
          %3876 = vmatprep.subr.bf16.mxu0 %v3815
          %3877 = vmatpush2.bf16.xpose.msra.mxu0 %v3814
          %3878 = vmatprep.subr.bf16.mxu0 %v3813
          %3879 = vmatpush2.bf16.xpose.msra.mxu0 %v3812
          %3880 = vmatprep.subr.bf16.mxu0 %v3811
          %3881 = vmatpush2.bf16.xpose.msra.mxu0 %v3810
          %3882 = vmatprep.subr.bf16.mxu0 %v3809
          %3883 = vmatpush2.bf16.xpose.msra.mxu0 %v3808
          %3884 = vmatprep.subr.bf16.mxu0 %v3807
          %3885 = vmatpush2.bf16.xpose.msra.mxu0 %v3806
          %3886 = vmatprep.mubr.bf16.mxu0 %v3659
          %3887 = vmatmul.mubr.bf16.gmra.mxu0 %v3658
          %v3888 = vpop.f32.mrf.mxu0
          %v3889 = vadd.f32 0.0, %v3888
          %v3890 = vpop.f32.mrf.mxu0
          %v3891 = vadd.f32 0.0, %v3890
          %v3892 = vpop.f32.mrf.mxu0
          %v3893 = vadd.f32 0.0, %v3892
          %v3894 = vpop.f32.mrf.mxu0
          %v3895 = vadd.f32 0.0, %v3894
          %3896 = vmatprep.mubr.bf16.mxu0 %v3661
          %3897 = vmatmul.mubr.bf16.gmra.mxu0 %v3660
          %v3898 = vpop.f32.mrf.mxu0
          %v3899 = vadd.f32 0.0, %v3898
          %v3900 = vpop.f32.mrf.mxu0
          %v3901 = vadd.f32 0.0, %v3900
          %v3902 = vpop.f32.mrf.mxu0
          %v3903 = vpop.f32.mrf.mxu0
          %3904 = vdwg.mxu0
          %v3905 = vand.u32 2147483647, %v3889
          %v3906 = vand.u32 2147483647, %v3891
          %v3907 = vand.u32 2147483647, %v3893
          %v3908 = vand.u32 2147483647, %v3895
          %v3909 = vand.u32 2147483647, %v3899
          %v3910 = vand.u32 2147483647, %v3901
          %v3911 = vadd.f32 %v3905, %v3906
          %v3912 = vadd.f32 %v3911, %v3907
          %v3913 = vadd.f32 %v3912, %v3908
          %v3914 = vadd.f32 %v3913, %v3909
          %v3915 = vadd.f32 %v3914, %v3910
          %3916 = vadd.xlane.f32.xlu0 %v3915
          %v3917 = vpop.xlane.xlu0 %3916
          %v3918 = vrot.slane %v3917, 4
          %v3919 = vadd.f32 %v3917, %v3918
          %v3920 = vrot.slane %v3919, 2
          %v3921 = vadd.f32 %v3919, %v3920
          %v3922 = vrot.slane %v3921, 1
          %v3923 = vadd.f32 %v3921, %v3922
          %s3924 = vtos %v3923
          %v3925 = vld [vmem:[#allocation3] sm:$0x1]
          %v3926 = vstv %s3924
          %v3927 = vrcp.pop %v3925
          %v3928 = vmul.f32 %v3926, %v3927
          %v3929 = vrsqrt.pop %v3928
          %v3931 = vlaneseq
          %v3932 = vshrl.u32 %v3931, 7
          %v3933 = vsub.s32 0, %v3932
          %v3934 = vrot.slane %v3929, %v3933
          %3935 = vset.pattern.permute.xlu0 0
          %3936 = vperm.xlu0 %3935, %v3934
          %v3937 = vpop.permute.xlu0 %3936
          %v3939 = vmul.f32 %v3652, %v3937
          %v3940 = vmul.f32 %v3653, %v3937
          %v3941 = vmul.f32 %v3654, %v3937
          %v3942 = vmul.f32 %v3655, %v3937
          %v3943 = vmul.f32 %v3656, %v3937
          %v3944 = vmul.f32 %v3657, %v3937
          %3945 = vst [vmem:[#allocation10] sm:$0xff] %v3939
          %3946 = vst [vmem:[#allocation10 + $0x8] sm:$0xff] %v3940
          %3947 = vst [vmem:[#allocation10 + $0x10] sm:$0xff] %v3941
          %3948 = vst [vmem:[#allocation10 + $0x18] sm:$0xff] %v3942
          %3949 = vst [vmem:[#allocation10 + $0x20] sm:$0xff] %v3943
          %3950 = vst [vmem:[#allocation10 + $0x28] sm:$0xff] %v3944
        $region52: #{tpu_custom_call.1} parent=31 // pred_fallthru
          _
        // Predicated region
        $region53: #{tpu_custom_call.1} parent=31 // pred_check
          %p3951 = pneg %p107
        $region54: #{tpu_custom_call.1} parent=31 // pred_check_branch
          %3953 = sbr.rel (%p3951) target = $region56
        $region55: #{tpu_custom_call.1} parent=31 // pred_region
          %s3955 = ssub.s32 768, 768
          %3956 = vsyncadd [#allocation6], %s3955
          %s3957 = sshll.u32 [#allocation10], 4
          %s3958 = int_to_ptr.vmem [resolvable:$true] %s3957
          %3963 = dma.vmem_to_hbm [thread:$0]  %s3958, 768, %s3, [#allocation6], 256, 256, 16
        $region56: #{tpu_custom_call.1} parent=31 // pred_fallthru
          _
        // Predicated region
        $region57: #{tpu_custom_call.1} parent=31 // pred_check
          %p3964 = pneg %p107
        $region58: #{tpu_custom_call.1} parent=31 // pred_check_branch
          %3966 = sbr.rel (%p3964) target = $region60
        $region59: #{tpu_custom_call.1} parent=31 // pred_region
          %3967 = dma.done [#allocation6], 768
        $region60: #{tpu_custom_call.1} parent=31 // pred_fallthru
          _
      $region32: #{tpu_custom_call.1} parent=5 // pred_fallthru
        _
      %p3968 = scmp.le.s32.totalorder 2, %s16
      // Predicated region
      $region61: #{tpu_custom_call.1} parent=5 // pred_check
        %p3969 = pneg %p3968
      $region62: #{tpu_custom_call.1} parent=5 // pred_check_branch
        %3971 = sbr.rel (%p3969) target = $region64
      $region63: #{tpu_custom_call.1} parent=5 // pred_region
        %s3972 = ssub.s32 %s16, 2
      $region64: #{tpu_custom_call.1} parent=5 // pred_fallthru
        _
    $region6: #{tpu_custom_call.1} parent=1 // loop_footer
      %s20 = sadd.s32 1, %s16
    $region7: #{tpu_custom_call.1} parent=1 // loop_footer_branch
      %15 = sbr.rel target = $region3
    $region8: #{tpu_custom_call.1} parent=1 // loop_exit
      _
    %3973 = vsyncpa [#allocation5], 1
    %s3974 = scalar_lea.sflag [#allocation5], 1
    %3975 = vsyncpa %s3974, 1
    %3976 = vsyncpa [#allocation8], 1
    %s3977 = scalar_lea.sflag [#allocation8], 1
    %3978 = vsyncpa %s3977, 1
    %3979 = vsyncpa [#allocation6], 1
    %s3980 = scalar_lea.sflag [#allocation6], 1
    %3981 = vsyncpa %s3980, 1

</llo_original>
